<compile_context>
chip_gen: v7x
topology: tpu7x:2x2x1
jax: 0.10.0
libtpu: 0.0.40
codegen_flags: <defaults>
</compile_context>

<pallas_src>
import jax
import jax.numpy as jnp
from jax.experimental import pallas as pl
from jax.experimental.pallas import tpu as pltpu

# ---- model dims (small but structurally identical to the module's backbone) ----
IMG = 16
PATCH = 8
IN_CH = 3
EMBED_DIM = 32            # self.vit.num_features (768 in vit_base, scaled down)
DEPTH = 2
NUM_HEADS = 4
HEAD_DIM = EMBED_DIM // NUM_HEADS
MLP_DIM = EMBED_DIM * 2
NUM_PATCHES = (IMG // PATCH) ** 2
TOKENS = NUM_PATCHES + 1  # cls token + patches
PATCH_DIM = IN_CH * PATCH * PATCH
HIDDEN = 256              # classifier hidden width (from the module)
NUM_CLASSES = 4
LN_EPS = 1e-6             # timm ViT LayerNorm eps
INV_SQRT2 = 0.7071067811865476
ATTN_SCALE = 1.0 / (HEAD_DIM ** 0.5)


# -------------------------- fused Pallas kernel --------------------------

def _ln(x, g, b):
    mu = jnp.mean(x, axis=-1, keepdims=True)
    var = jnp.mean((x - mu) ** 2, axis=-1, keepdims=True)
    return (x - mu) * jax.lax.rsqrt(var + LN_EPS) * g + b


def _fused_vit_kernel(tok_ref, addrow_ref, vid_r_ref, vid_c_ref, pool_ref,
                      patch_w_ref,
                      ln1_g_ref, ln1_b_ref, qkv_w_ref, qkv_b_ref,
                      proj_w_ref, proj_b_ref, ln2_g_ref, ln2_b_ref,
                      fc1_w_ref, fc1_b_ref, fc2_w_ref, fc2_b_ref,
                      norm_g_ref, norm_b_ref,
                      head1_w_ref, head1_b_ref, head2_w_ref, head2_b_ref,
                      out_ref):
    # ---- patch embed (bf16 MXU, f32 accum) + cls/pos bias rows ----
    # tok has a zero row per view at the cls slot; addrow carries cls+pos[0] there
    # and pos[t]+patch_bias on patch rows, so one matmul + add builds the sequence.
    x = (jnp.dot(tok_ref[0], patch_w_ref[...], preferred_element_type=jnp.float32)
         + addrow_ref[...])                                            # (ROWS, D) f32

    # ---- block-diagonal additive mask built on the VPU (no O(rows^2) DMA) ----
    mask_bias = jnp.where(vid_r_ref[...] == vid_c_ref[...],
                          jnp.float32(0.0), jnp.float32(-1e30))        # (ROWS, ROWS)

    for d in range(DEPTH):
        # ---- multi-head self-attention (pre-norm, residual) ----
        n1 = _ln(x, ln1_g_ref[d], ln1_b_ref[d])
        qkv = (jnp.dot(n1.astype(jnp.bfloat16), qkv_w_ref[d],
                       preferred_element_type=jnp.float32) + qkv_b_ref[d])
        qkv = qkv.astype(jnp.bfloat16)                                 # (ROWS, 3D)
        o_parts = []
        for h in range(NUM_HEADS):
            lo = h * HEAD_DIM
            q = qkv[:, lo:lo + HEAD_DIM]                       # scale folded in W/b
            k = qkv[:, EMBED_DIM + lo:EMBED_DIM + lo + HEAD_DIM]
            v = qkv[:, 2 * EMBED_DIM + lo:2 * EMBED_DIM + lo + HEAD_DIM]
            s = jax.lax.dot_general(q, k, (((1,), (1,)), ((), ())),
                                    preferred_element_type=jnp.float32) + mask_bias
            s = s - jnp.max(s, axis=-1, keepdims=True)
            p_att = jnp.exp(s)
            p_att = p_att * pl.reciprocal(jnp.sum(p_att, axis=-1, keepdims=True),
                                          approx=False)
            o_parts.append(jnp.dot(p_att.astype(jnp.bfloat16), v,
                                   preferred_element_type=jnp.float32))
        # merged output projection: concat(heads) once, ONE (ROWS,D)@(D,D) matmul
        o_cat = jnp.concatenate(o_parts, axis=-1).astype(jnp.bfloat16)  # (ROWS, D)
        x = x + (jnp.dot(o_cat, proj_w_ref[d], preferred_element_type=jnp.float32)
                 + proj_b_ref[d])

        # ---- MLP (pre-norm, residual), exact-erf GELU (torch.nn.GELU default) ----
        n2 = _ln(x, ln2_g_ref[d], ln2_b_ref[d])
        m = (jnp.dot(n2.astype(jnp.bfloat16), fc1_w_ref[d],
                     preferred_element_type=jnp.float32) + fc1_b_ref[d])
        m = 0.5 * m * (1.0 + jax.lax.erf(m * INV_SQRT2))
        x = x + (jnp.dot(m.astype(jnp.bfloat16), fc2_w_ref[d],
                         preferred_element_type=jnp.float32) + fc2_b_ref[d])

    # ---- final LN, "token" pooling + mean over N views (selection matmul, f32) ----
    x = _ln(x, norm_g_ref[...], norm_b_ref[...])
    pooled = jnp.dot(pool_ref[...], x, preferred_element_type=jnp.float32)  # (TB, D)

    # ---- classifier: Linear -> ReLU -> Dropout(eval=identity) -> Linear ----
    h1 = (jnp.dot(pooled.astype(jnp.bfloat16), head1_w_ref[...],
                  preferred_element_type=jnp.float32) + head1_b_ref[...])
    h1 = jnp.maximum(h1, 0.0)
    # TODO(synk): Dropout(0.3) is the identity in eval/inference mode; training-mode stochastic dropout omitted.
    out_ref[0] = (jnp.dot(h1.astype(jnp.bfloat16), head2_w_ref[...],
                          preferred_element_type=jnp.float32) + head2_b_ref[...])


# -------------------------- glue --------------------------

def patchify(x):
    # x: (BN, C, H, W) NCHW -> (BN, num_patches, C*P*P) (same flatten order as conv weight)
    BN, C, H, W = x.shape
    gh, gw = H // PATCH, W // PATCH
    x = x.reshape(BN, C, gh, PATCH, gw, PATCH)
    x = x.transpose(0, 2, 4, 1, 3, 5)
    return x.reshape(BN, gh * gw, C * PATCH * PATCH)


def _full_spec(shape):
    nd = len(shape)
    return pl.BlockSpec(shape, lambda g, nd=nd: (0,) * nd)


def _choose_tile_b(batch, rows_per_b, target_rows=256):
    """Largest divisor of `batch` whose row slab stays near the MXU-friendly target,
    preferring >=2 grid steps so both v7x TensorCores get work."""
    divs = [d for d in range(1, batch + 1) if batch % d == 0]
    fitting = [d for d in divs if d * rows_per_b <= max(target_rows, rows_per_b)]
    tile = max(fitting)
    if batch // tile == 1 and len(fitting) > 1:
        tile = sorted(fitting)[-2]
    return tile


def vit_mushroom_forward(x, p):
    B, N, C, H, W = x.shape
    xf = x.reshape(B * N, C, H, W)                  # x.view(B*N, C, H, W)
    NT = N * TOKENS
    TILE_B = _choose_tile_b(B, NT)
    ROWS = TILE_B * NT
    num_tiles = B // TILE_B

    # patch tokens with a zero row per view at the cls slot, grouped per grid tile:
    # (num_tiles, ROWS, C*P*P) in bf16 (the only streaming input)
    tok = patchify(xf)
    tok = jnp.concatenate(
        [jnp.zeros((B * N, 1, PATCH_DIM), jnp.float32), tok], axis=1)
    tok = tok.reshape(num_tiles, ROWS, PATCH_DIM).astype(jnp.bfloat16)

    # per-token additive row: cls slot -> cls + pos[0]; patch slots -> pos[t] + patch_b
    row0 = p["cls"].reshape(1, EMBED_DIM) + p["pos"][0, 0:1, :]
    rows = p["pos"][0, 1:, :] + p["patch_b"].reshape(1, EMBED_DIM)
    addrow = jnp.tile(jnp.concatenate([row0, rows], axis=0),
                      (TILE_B * N, 1)).astype(jnp.float32)              # (ROWS, D)

    # view ids (one per (batch-in-tile, view)); the dense block-diag mask is built
    # in-kernel from these O(ROWS) vectors instead of DMAing an O(ROWS^2) table.
    vid = jnp.arange(ROWS, dtype=jnp.int32) // TOKENS
    vid_r = vid.reshape(ROWS, 1)
    vid_c = vid.reshape(1, ROWS)

    # selection matrix implementing embeddings.view(B,N,-1)[:, :, cls].mean(dim=1)
    rowpos = jnp.arange(ROWS)
    is_cls = (rowpos % TOKENS) == 0
    owner = rowpos // NT
    pool_sel = jnp.where(
        (owner[None, :] == jnp.arange(TILE_B)[:, None]) & is_cls[None, :],
        1.0 / N, 0.0).astype(jnp.float32)                               # (TILE_B, ROWS)

    stack = lambda name: jnp.stack([blk[name] for blk in p["blocks"]], axis=0)
    bf16 = jnp.bfloat16

    # fold the attention scale into the q-part of the qkv weights/bias (timm applies
    # it after the bias, so both W_q and b_q are scaled)
    qkv_w = stack("qkv_w").at[:, :, :EMBED_DIM].multiply(ATTN_SCALE).astype(bf16)
    qkv_b = stack("qkv_b").at[:, :EMBED_DIM].multiply(ATTN_SCALE) \
                          .reshape(DEPTH, 1, 3 * EMBED_DIM).astype(jnp.float32)

    args = (
        tok, addrow, vid_r, vid_c, pool_sel,
        p["patch_w"].astype(bf16),
        stack("ln1_g").reshape(DEPTH, 1, EMBED_DIM),
        stack("ln1_b").reshape(DEPTH, 1, EMBED_DIM),
        qkv_w, qkv_b,
        stack("proj_w").astype(bf16),
        stack("proj_b").reshape(DEPTH, 1, EMBED_DIM),
        stack("ln2_g").reshape(DEPTH, 1, EMBED_DIM),
        stack("ln2_b").reshape(DEPTH, 1, EMBED_DIM),
        stack("fc1_w").astype(bf16),
        stack("fc1_b").reshape(DEPTH, 1, MLP_DIM),
        stack("fc2_w").astype(bf16),
        stack("fc2_b").reshape(DEPTH, 1, EMBED_DIM),
        p["norm_g"].reshape(1, EMBED_DIM), p["norm_b"].reshape(1, EMBED_DIM),
        p["head1_w"].astype(bf16), p["head1_b"].reshape(1, HIDDEN),
        p["head2_w"].astype(bf16), p["head2_b"].reshape(1, NUM_CLASSES),
    )
    in_specs = ([pl.BlockSpec((1, ROWS, PATCH_DIM), lambda g: (g, 0, 0))]
                + [_full_spec(a.shape) for a in args[1:]])

    out = pl.pallas_call(
        _fused_vit_kernel,
        grid=(num_tiles,),
        in_specs=in_specs,
        out_specs=pl.BlockSpec((1, TILE_B, NUM_CLASSES), lambda g: (g, 0, 0)),
        out_shape=jax.ShapeDtypeStruct((num_tiles, TILE_B, NUM_CLASSES), jnp.float32),
        compiler_params=pltpu.CompilerParams(
            dimension_semantics=("parallel",)),   # shards batch tiles across TCs
    )(*args)
    return out.reshape(B, NUM_CLASSES)


# -------------------------- params --------------------------

def init_params(key):
    ks = iter(jax.random.split(key, 64))

    def dense(k, fan_in, fan_out):
        return jax.random.normal(k, (fan_in, fan_out), jnp.float32) * 0.02

    p = {
        "patch_w": dense(next(ks), PATCH_DIM, EMBED_DIM),
        "patch_b": jnp.zeros((EMBED_DIM,), jnp.float32),
        "cls": jax.random.normal(next(ks), (1, 1, EMBED_DIM), jnp.float32) * 0.02,
        "pos": jax.random.normal(next(ks), (1, TOKENS, EMBED_DIM), jnp.float32) * 0.02,
        "blocks": [],
        "norm_g": jnp.ones((EMBED_DIM,), jnp.float32),
        "norm_b": jnp.zeros((EMBED_DIM,), jnp.float32),
        "head1_w": dense(next(ks), EMBED_DIM, HIDDEN),
        "head1_b": jnp.zeros((HIDDEN,), jnp.float32),
        "head2_w": dense(next(ks), HIDDEN, NUM_CLASSES),
        "head2_b": jnp.zeros((NUM_CLASSES,), jnp.float32),
    }
    for _ in range(DEPTH):
        p["blocks"].append({
            "ln1_g": jnp.ones((EMBED_DIM,), jnp.float32),
            "ln1_b": jnp.zeros((EMBED_DIM,), jnp.float32),
            "qkv_w": dense(next(ks), EMBED_DIM, 3 * EMBED_DIM),
            "qkv_b": jnp.zeros((3 * EMBED_DIM,), jnp.float32),
            "proj_w": dense(next(ks), EMBED_DIM, EMBED_DIM),
            "proj_b": jnp.zeros((EMBED_DIM,), jnp.float32),
            "ln2_g": jnp.ones((EMBED_DIM,), jnp.float32),
            "ln2_b": jnp.zeros((EMBED_DIM,), jnp.float32),
            "fc1_w": dense(next(ks), EMBED_DIM, MLP_DIM),
            "fc1_b": jnp.zeros((MLP_DIM,), jnp.float32),
            "fc2_w": dense(next(ks), MLP_DIM, EMBED_DIM),
            "fc2_b": jnp.zeros((EMBED_DIM,), jnp.float32),
        })
    return p


if __name__ == "__main__":
    key = jax.random.PRNGKey(0)
    kx, kp = jax.random.split(key)
    # (B, N, C, H, W) = (4, 2, 3, 16, 16): B=4 exercises batch tiling (TILE_B=2, grid=2)
    x = jax.random.normal(kx, (4, 2, IN_CH, IMG, IMG), jnp.float32)
    params = init_params(kp)

    out = jax.jit(vit_mushroom_forward)(x, params)
    out = jax.block_until_ready(out)
    assert out.shape == (4, NUM_CLASSES) and out.dtype == jnp.float32
    assert bool(jnp.isfinite(out).all())
    print("KERNEL_OK")
</pallas_src>

<mosaic_0001>
module attributes {stable_mosaic.version = 11 : i64} {
  func.func @_fused_vit_kernel(%arg0: i32, %arg1: memref<1x20x192xbf16, #tpu.memory_space<vmem>>, %arg2: memref<20x32xf32, #tpu.memory_space<vmem>>, %arg3: memref<20x1xi32, #tpu.memory_space<vmem>>, %arg4: memref<1x20xi32, #tpu.memory_space<vmem>>, %arg5: memref<2x20xf32, #tpu.memory_space<vmem>>, %arg6: memref<192x32xbf16, #tpu.memory_space<vmem>>, %arg7: memref<2x1x32xf32, #tpu.memory_space<vmem>>, %arg8: memref<2x1x32xf32, #tpu.memory_space<vmem>>, %arg9: memref<2x32x96xbf16, #tpu.memory_space<vmem>>, %arg10: memref<2x1x96xf32, #tpu.memory_space<vmem>>, %arg11: memref<2x32x32xbf16, #tpu.memory_space<vmem>>, %arg12: memref<2x1x32xf32, #tpu.memory_space<vmem>>, %arg13: memref<2x1x32xf32, #tpu.memory_space<vmem>>, %arg14: memref<2x1x32xf32, #tpu.memory_space<vmem>>, %arg15: memref<2x32x64xbf16, #tpu.memory_space<vmem>>, %arg16: memref<2x1x64xf32, #tpu.memory_space<vmem>>, %arg17: memref<2x64x32xbf16, #tpu.memory_space<vmem>>, %arg18: memref<2x1x32xf32, #tpu.memory_space<vmem>>, %arg19: memref<1x32xf32, #tpu.memory_space<vmem>>, %arg20: memref<1x32xf32, #tpu.memory_space<vmem>>, %arg21: memref<32x256xbf16, #tpu.memory_space<vmem>>, %arg22: memref<1x256xf32, #tpu.memory_space<vmem>>, %arg23: memref<256x4xbf16, #tpu.memory_space<vmem>>, %arg24: memref<1x4xf32, #tpu.memory_space<vmem>>, %arg25: memref<1x2x4xf32, #tpu.memory_space<vmem>>) attributes {dimension_semantics = [#tpu.dimension_semantics<parallel>], iteration_bounds = array<i64: 2>, scalar_prefetch = 0 : i64, scratch_operands = 0 : i64, tpu.core_type = #tpu.core_type<tc>, window_params = [{transform_indices = @transform_0, window_bounds = array<i64: 1, 20, 192>}, {pipeline_mode = #tpu.pipeline_mode<synchronous>, transform_indices = @transform_1, window_bounds = array<i64: 20, 32>}, {pipeline_mode = #tpu.pipeline_mode<synchronous>, transform_indices = @transform_2, window_bounds = array<i64: 20, 1>}, {pipeline_mode = #tpu.pipeline_mode<synchronous>, transform_indices = @transform_3, window_bounds = array<i64: 1, 20>}, {pipeline_mode = #tpu.pipeline_mode<synchronous>, transform_indices = @transform_4, window_bounds = array<i64: 2, 20>}, {pipeline_mode = #tpu.pipeline_mode<synchronous>, transform_indices = @transform_5, window_bounds = array<i64: 192, 32>}, {pipeline_mode = #tpu.pipeline_mode<synchronous>, transform_indices = @transform_6, window_bounds = array<i64: 2, 1, 32>}, {pipeline_mode = #tpu.pipeline_mode<synchronous>, transform_indices = @transform_7, window_bounds = array<i64: 2, 1, 32>}, {pipeline_mode = #tpu.pipeline_mode<synchronous>, transform_indices = @transform_8, window_bounds = array<i64: 2, 32, 96>}, {pipeline_mode = #tpu.pipeline_mode<synchronous>, transform_indices = @transform_9, window_bounds = array<i64: 2, 1, 96>}, {pipeline_mode = #tpu.pipeline_mode<synchronous>, transform_indices = @transform_10, window_bounds = array<i64: 2, 32, 32>}, {pipeline_mode = #tpu.pipeline_mode<synchronous>, transform_indices = @transform_11, window_bounds = array<i64: 2, 1, 32>}, {pipeline_mode = #tpu.pipeline_mode<synchronous>, transform_indices = @transform_12, window_bounds = array<i64: 2, 1, 32>}, {pipeline_mode = #tpu.pipeline_mode<synchronous>, transform_indices = @transform_13, window_bounds = array<i64: 2, 1, 32>}, {pipeline_mode = #tpu.pipeline_mode<synchronous>, transform_indices = @transform_14, window_bounds = array<i64: 2, 32, 64>}, {pipeline_mode = #tpu.pipeline_mode<synchronous>, transform_indices = @transform_15, window_bounds = array<i64: 2, 1, 64>}, {pipeline_mode = #tpu.pipeline_mode<synchronous>, transform_indices = @transform_16, window_bounds = array<i64: 2, 64, 32>}, {pipeline_mode = #tpu.pipeline_mode<synchronous>, transform_indices = @transform_17, window_bounds = array<i64: 2, 1, 32>}, {pipeline_mode = #tpu.pipeline_mode<synchronous>, transform_indices = @transform_18, window_bounds = array<i64: 1, 32>}, {pipeline_mode = #tpu.pipeline_mode<synchronous>, transform_indices = @transform_19, window_bounds = array<i64: 1, 32>}, {pipeline_mode = #tpu.pipeline_mode<synchronous>, transform_indices = @transform_20, window_bounds = array<i64: 32, 256>}, {pipeline_mode = #tpu.pipeline_mode<synchronous>, transform_indices = @transform_21, window_bounds = array<i64: 1, 256>}, {pipeline_mode = #tpu.pipeline_mode<synchronous>, transform_indices = @transform_22, window_bounds = array<i64: 256, 4>}, {pipeline_mode = #tpu.pipeline_mode<synchronous>, transform_indices = @transform_23, window_bounds = array<i64: 1, 4>}, {transform_indices = @transform_24, window_bounds = array<i64: 1, 2, 4>}]} {
    %c0 = arith.constant 0 : index
    %c0_0 = arith.constant 0 : index
    %c0_1 = arith.constant 0 : index
    %0 = vector.load %arg1[%c0, %c0_0, %c0_1] : memref<1x20x192xbf16, #tpu.memory_space<vmem>>, vector<1x20x192xbf16>
    %1 = vector.shape_cast %0 : vector<1x20x192xbf16> to vector<20x192xbf16>
    %c0_2 = arith.constant 0 : index
    %c0_3 = arith.constant 0 : index
    %2 = vector.load %arg6[%c0_2, %c0_3] : memref<192x32xbf16, #tpu.memory_space<vmem>>, vector<192x32xbf16>
    %cst = arith.constant dense<0.000000e+00> : vector<20x32xf32>
    %3 = tpu.matmul %1, %2, %cst {dimension_numbers = #tpu.dot_dimension_numbers<[1], [0], [0], [1], [0, 0, 1, 1], [], []>} : vector<20x192xbf16>, vector<192x32xbf16>, vector<20x32xf32> -> vector<20x32xf32>
    %c0_4 = arith.constant 0 : index
    %c0_5 = arith.constant 0 : index
    %4 = vector.load %arg2[%c0_4, %c0_5] : memref<20x32xf32, #tpu.memory_space<vmem>>, vector<20x32xf32>
    %5 = arith.addf %3, %4 : vector<20x32xf32>
    %c0_6 = arith.constant 0 : index
    %c0_7 = arith.constant 0 : index
    %6 = vector.load %arg3[%c0_6, %c0_7] : memref<20x1xi32, #tpu.memory_space<vmem>>, vector<20x1xi32>
    %c0_8 = arith.constant 0 : index
    %c0_9 = arith.constant 0 : index
    %7 = vector.load %arg4[%c0_8, %c0_9] : memref<1x20xi32, #tpu.memory_space<vmem>>, vector<1x20xi32>
    %8 = vector.broadcast %6 : vector<20x1xi32> to vector<20x20xi32>
    %9 = vector.broadcast %7 : vector<1x20xi32> to vector<20x20xi32>
    %10 = arith.cmpi eq, %8, %9 : vector<20x20xi32>
    %cst_10 = arith.constant 0.000000e+00 : f32
    %cst_11 = arith.constant -1.000000e+30 : f32
    %11 = vector.broadcast %cst_10 : f32 to vector<20x20xf32>
    %12 = vector.broadcast %cst_11 : f32 to vector<20x20xf32>
    %13 = arith.select %10, %11, %12 : vector<20x20xi1>, vector<20x20xf32>
    %c0_12 = arith.constant 0 : index
    %c0_13 = arith.constant 0 : index
    %c0_14 = arith.constant 0 : index
    %14 = vector.load %arg7[%c0_12, %c0_13, %c0_14] : memref<2x1x32xf32, #tpu.memory_space<vmem>>, vector<1x1x32xf32>
    %15 = vector.shape_cast %14 : vector<1x1x32xf32> to vector<1x32xf32>
    %c0_15 = arith.constant 0 : index
    %c0_16 = arith.constant 0 : index
    %c0_17 = arith.constant 0 : index
    %16 = vector.load %arg8[%c0_15, %c0_16, %c0_17] : memref<2x1x32xf32, #tpu.memory_space<vmem>>, vector<1x1x32xf32>
    %17 = vector.shape_cast %16 : vector<1x1x32xf32> to vector<1x32xf32>
    %cst_18 = arith.constant dense<0.000000e+00> : vector<20xf32>
    %18 = vector.multi_reduction <add>, %5, %cst_18 [1] : vector<20x32xf32> to vector<20xf32>
    %19 = vector.shape_cast %18 : vector<20xf32> to vector<20x1xf32>
    %cst_19 = arith.constant 3.200000e+01 : f32
    %20 = vector.broadcast %cst_19 : f32 to vector<20x1xf32>
    %21 = arith.divf %19, %20 : vector<20x1xf32>
    %22 = vector.broadcast %21 : vector<20x1xf32> to vector<20x32xf32>
    %23 = arith.subf %5, %22 : vector<20x32xf32>
    %24 = arith.mulf %23, %23 : vector<20x32xf32>
    %cst_20 = arith.constant dense<0.000000e+00> : vector<20xf32>
    %25 = vector.multi_reduction <add>, %24, %cst_20 [1] : vector<20x32xf32> to vector<20xf32>
    %26 = vector.shape_cast %25 : vector<20xf32> to vector<20x1xf32>
    %cst_21 = arith.constant 3.200000e+01 : f32
    %27 = vector.broadcast %cst_21 : f32 to vector<20x1xf32>
    %28 = arith.divf %26, %27 : vector<20x1xf32>
    %29 = vector.broadcast %21 : vector<20x1xf32> to vector<20x32xf32>
    %30 = arith.subf %5, %29 : vector<20x32xf32>
    %cst_22 = arith.constant 9.99999997E-7 : f32
    %31 = vector.broadcast %cst_22 : f32 to vector<20x1xf32>
    %32 = arith.addf %28, %31 : vector<20x1xf32>
    %33 = math.rsqrt %32 : vector<20x1xf32>
    %34 = vector.broadcast %33 : vector<20x1xf32> to vector<20x32xf32>
    %35 = arith.mulf %30, %34 : vector<20x32xf32>
    %36 = vector.broadcast %15 : vector<1x32xf32> to vector<20x32xf32>
    %37 = arith.mulf %35, %36 : vector<20x32xf32>
    %38 = vector.broadcast %17 : vector<1x32xf32> to vector<20x32xf32>
    %39 = arith.addf %37, %38 : vector<20x32xf32>
    %40 = arith.truncf %39 : vector<20x32xf32> to vector<20x32xbf16>
    %c0_23 = arith.constant 0 : index
    %c0_24 = arith.constant 0 : index
    %c0_25 = arith.constant 0 : index
    %41 = vector.load %arg9[%c0_23, %c0_24, %c0_25] : memref<2x32x96xbf16, #tpu.memory_space<vmem>>, vector<1x32x96xbf16>
    %42 = vector.shape_cast %41 : vector<1x32x96xbf16> to vector<32x96xbf16>
    %cst_26 = arith.constant dense<0.000000e+00> : vector<20x96xf32>
    %43 = tpu.matmul %40, %42, %cst_26 {dimension_numbers = #tpu.dot_dimension_numbers<[1], [0], [0], [1], [0, 0, 1, 1], [], []>} : vector<20x32xbf16>, vector<32x96xbf16>, vector<20x96xf32> -> vector<20x96xf32>
    %c0_27 = arith.constant 0 : index
    %c0_28 = arith.constant 0 : index
    %c0_29 = arith.constant 0 : index
    %44 = vector.load %arg10[%c0_27, %c0_28, %c0_29] : memref<2x1x96xf32, #tpu.memory_space<vmem>>, vector<1x1x96xf32>
    %45 = vector.shape_cast %44 : vector<1x1x96xf32> to vector<1x96xf32>
    %46 = vector.broadcast %45 : vector<1x96xf32> to vector<20x96xf32>
    %47 = arith.addf %43, %46 : vector<20x96xf32>
    %48 = arith.truncf %47 : vector<20x96xf32> to vector<20x96xbf16>
    %49 = vector.extract_strided_slice %48 {offsets = [0, 0], sizes = [20, 8], strides = [1, 1]} : vector<20x96xbf16> to vector<20x8xbf16>
    %50 = vector.extract_strided_slice %48 {offsets = [0, 32], sizes = [20, 8], strides = [1, 1]} : vector<20x96xbf16> to vector<20x8xbf16>
    %51 = vector.extract_strided_slice %48 {offsets = [0, 64], sizes = [20, 8], strides = [1, 1]} : vector<20x96xbf16> to vector<20x8xbf16>
    %cst_30 = arith.constant dense<0.000000e+00> : vector<20x20xf32>
    %52 = tpu.matmul %49, %50, %cst_30 {dimension_numbers = #tpu.dot_dimension_numbers<[1], [1], [0], [0], [0, 0, 1, 0], [], []>} : vector<20x8xbf16>, vector<20x8xbf16>, vector<20x20xf32> -> vector<20x20xf32>
    %53 = arith.addf %52, %13 : vector<20x20xf32>
    %cst_31 = arith.constant dense<0xFF800000> : vector<20xf32>
    %54 = vector.multi_reduction <maximumf>, %53, %cst_31 [1] : vector<20x20xf32> to vector<20xf32>
    %55 = vector.shape_cast %54 : vector<20xf32> to vector<20x1xf32>
    %56 = vector.broadcast %55 : vector<20x1xf32> to vector<20x20xf32>
    %57 = arith.subf %53, %56 : vector<20x20xf32>
    %58 = math.exp %57 : vector<20x20xf32>
    %cst_32 = arith.constant dense<0.000000e+00> : vector<20xf32>
    %59 = vector.multi_reduction <add>, %58, %cst_32 [1] : vector<20x20xf32> to vector<20xf32>
    %60 = vector.shape_cast %59 : vector<20xf32> to vector<20x1xf32>
    %61 = tpu.reciprocal %60 : vector<20x1xf32> -> vector<20x1xf32>
    %62 = vector.broadcast %61 : vector<20x1xf32> to vector<20x20xf32>
    %63 = arith.mulf %58, %62 : vector<20x20xf32>
    %64 = arith.truncf %63 : vector<20x20xf32> to vector<20x20xbf16>
    %cst_33 = arith.constant dense<0.000000e+00> : vector<20x8xf32>
    %65 = tpu.matmul %64, %51, %cst_33 {dimension_numbers = #tpu.dot_dimension_numbers<[1], [0], [0], [1], [0, 0, 1, 1], [], []>} : vector<20x20xbf16>, vector<20x8xbf16>, vector<20x8xf32> -> vector<20x8xf32>
    %66 = vector.extract_strided_slice %48 {offsets = [0, 8], sizes = [20, 8], strides = [1, 1]} : vector<20x96xbf16> to vector<20x8xbf16>
    %67 = vector.extract_strided_slice %48 {offsets = [0, 40], sizes = [20, 8], strides = [1, 1]} : vector<20x96xbf16> to vector<20x8xbf16>
    %68 = vector.extract_strided_slice %48 {offsets = [0, 72], sizes = [20, 8], strides = [1, 1]} : vector<20x96xbf16> to vector<20x8xbf16>
    %cst_34 = arith.constant dense<0.000000e+00> : vector<20x20xf32>
    %69 = tpu.matmul %66, %67, %cst_34 {dimension_numbers = #tpu.dot_dimension_numbers<[1], [1], [0], [0], [0, 0, 1, 0], [], []>} : vector<20x8xbf16>, vector<20x8xbf16>, vector<20x20xf32> -> vector<20x20xf32>
    %70 = arith.addf %69, %13 : vector<20x20xf32>
    %cst_35 = arith.constant dense<0xFF800000> : vector<20xf32>
    %71 = vector.multi_reduction <maximumf>, %70, %cst_35 [1] : vector<20x20xf32> to vector<20xf32>
    %72 = vector.shape_cast %71 : vector<20xf32> to vector<20x1xf32>
    %73 = vector.broadcast %72 : vector<20x1xf32> to vector<20x20xf32>
    %74 = arith.subf %70, %73 : vector<20x20xf32>
    %75 = math.exp %74 : vector<20x20xf32>
    %cst_36 = arith.constant dense<0.000000e+00> : vector<20xf32>
    %76 = vector.multi_reduction <add>, %75, %cst_36 [1] : vector<20x20xf32> to vector<20xf32>
    %77 = vector.shape_cast %76 : vector<20xf32> to vector<20x1xf32>
    %78 = tpu.reciprocal %77 : vector<20x1xf32> -> vector<20x1xf32>
    %79 = vector.broadcast %78 : vector<20x1xf32> to vector<20x20xf32>
    %80 = arith.mulf %75, %79 : vector<20x20xf32>
    %81 = arith.truncf %80 : vector<20x20xf32> to vector<20x20xbf16>
    %cst_37 = arith.constant dense<0.000000e+00> : vector<20x8xf32>
    %82 = tpu.matmul %81, %68, %cst_37 {dimension_numbers = #tpu.dot_dimension_numbers<[1], [0], [0], [1], [0, 0, 1, 1], [], []>} : vector<20x20xbf16>, vector<20x8xbf16>, vector<20x8xf32> -> vector<20x8xf32>
    %83 = vector.extract_strided_slice %48 {offsets = [0, 16], sizes = [20, 8], strides = [1, 1]} : vector<20x96xbf16> to vector<20x8xbf16>
    %84 = vector.extract_strided_slice %48 {offsets = [0, 48], sizes = [20, 8], strides = [1, 1]} : vector<20x96xbf16> to vector<20x8xbf16>
    %85 = vector.extract_strided_slice %48 {offsets = [0, 80], sizes = [20, 8], strides = [1, 1]} : vector<20x96xbf16> to vector<20x8xbf16>
    %cst_38 = arith.constant dense<0.000000e+00> : vector<20x20xf32>
    %86 = tpu.matmul %83, %84, %cst_38 {dimension_numbers = #tpu.dot_dimension_numbers<[1], [1], [0], [0], [0, 0, 1, 0], [], []>} : vector<20x8xbf16>, vector<20x8xbf16>, vector<20x20xf32> -> vector<20x20xf32>
    %87 = arith.addf %86, %13 : vector<20x20xf32>
    %cst_39 = arith.constant dense<0xFF800000> : vector<20xf32>
    %88 = vector.multi_reduction <maximumf>, %87, %cst_39 [1] : vector<20x20xf32> to vector<20xf32>
    %89 = vector.shape_cast %88 : vector<20xf32> to vector<20x1xf32>
    %90 = vector.broadcast %89 : vector<20x1xf32> to vector<20x20xf32>
    %91 = arith.subf %87, %90 : vector<20x20xf32>
    %92 = math.exp %91 : vector<20x20xf32>
    %cst_40 = arith.constant dense<0.000000e+00> : vector<20xf32>
    %93 = vector.multi_reduction <add>, %92, %cst_40 [1] : vector<20x20xf32> to vector<20xf32>
    %94 = vector.shape_cast %93 : vector<20xf32> to vector<20x1xf32>
    %95 = tpu.reciprocal %94 : vector<20x1xf32> -> vector<20x1xf32>
    %96 = vector.broadcast %95 : vector<20x1xf32> to vector<20x20xf32>
    %97 = arith.mulf %92, %96 : vector<20x20xf32>
    %98 = arith.truncf %97 : vector<20x20xf32> to vector<20x20xbf16>
    %cst_41 = arith.constant dense<0.000000e+00> : vector<20x8xf32>
    %99 = tpu.matmul %98, %85, %cst_41 {dimension_numbers = #tpu.dot_dimension_numbers<[1], [0], [0], [1], [0, 0, 1, 1], [], []>} : vector<20x20xbf16>, vector<20x8xbf16>, vector<20x8xf32> -> vector<20x8xf32>
    %100 = vector.extract_strided_slice %48 {offsets = [0, 24], sizes = [20, 8], strides = [1, 1]} : vector<20x96xbf16> to vector<20x8xbf16>
    %101 = vector.extract_strided_slice %48 {offsets = [0, 56], sizes = [20, 8], strides = [1, 1]} : vector<20x96xbf16> to vector<20x8xbf16>
    %102 = vector.extract_strided_slice %48 {offsets = [0, 88], sizes = [20, 8], strides = [1, 1]} : vector<20x96xbf16> to vector<20x8xbf16>
    %cst_42 = arith.constant dense<0.000000e+00> : vector<20x20xf32>
    %103 = tpu.matmul %100, %101, %cst_42 {dimension_numbers = #tpu.dot_dimension_numbers<[1], [1], [0], [0], [0, 0, 1, 0], [], []>} : vector<20x8xbf16>, vector<20x8xbf16>, vector<20x20xf32> -> vector<20x20xf32>
    %104 = arith.addf %103, %13 : vector<20x20xf32>
    %cst_43 = arith.constant dense<0xFF800000> : vector<20xf32>
    %105 = vector.multi_reduction <maximumf>, %104, %cst_43 [1] : vector<20x20xf32> to vector<20xf32>
    %106 = vector.shape_cast %105 : vector<20xf32> to vector<20x1xf32>
    %107 = vector.broadcast %106 : vector<20x1xf32> to vector<20x20xf32>
    %108 = arith.subf %104, %107 : vector<20x20xf32>
    %109 = math.exp %108 : vector<20x20xf32>
    %cst_44 = arith.constant dense<0.000000e+00> : vector<20xf32>
    %110 = vector.multi_reduction <add>, %109, %cst_44 [1] : vector<20x20xf32> to vector<20xf32>
    %111 = vector.shape_cast %110 : vector<20xf32> to vector<20x1xf32>
    %112 = tpu.reciprocal %111 : vector<20x1xf32> -> vector<20x1xf32>
    %113 = vector.broadcast %112 : vector<20x1xf32> to vector<20x20xf32>
    %114 = arith.mulf %109, %113 : vector<20x20xf32>
    %115 = arith.truncf %114 : vector<20x20xf32> to vector<20x20xbf16>
    %cst_45 = arith.constant dense<0.000000e+00> : vector<20x8xf32>
    %116 = tpu.matmul %115, %102, %cst_45 {dimension_numbers = #tpu.dot_dimension_numbers<[1], [0], [0], [1], [0, 0, 1, 1], [], []>} : vector<20x20xbf16>, vector<20x8xbf16>, vector<20x8xf32> -> vector<20x8xf32>
    %117 = tpu.concatenate %65, %82, %99, %116 in 1 : vector<20x8xf32>, vector<20x8xf32>, vector<20x8xf32>, vector<20x8xf32> -> vector<20x32xf32>
    %118 = arith.truncf %117 : vector<20x32xf32> to vector<20x32xbf16>
    %c0_46 = arith.constant 0 : index
    %c0_47 = arith.constant 0 : index
    %c0_48 = arith.constant 0 : index
    %119 = vector.load %arg11[%c0_46, %c0_47, %c0_48] : memref<2x32x32xbf16, #tpu.memory_space<vmem>>, vector<1x32x32xbf16>
    %120 = vector.shape_cast %119 : vector<1x32x32xbf16> to vector<32x32xbf16>
    %cst_49 = arith.constant dense<0.000000e+00> : vector<20x32xf32>
    %121 = tpu.matmul %118, %120, %cst_49 {dimension_numbers = #tpu.dot_dimension_numbers<[1], [0], [0], [1], [0, 0, 1, 1], [], []>} : vector<20x32xbf16>, vector<32x32xbf16>, vector<20x32xf32> -> vector<20x32xf32>
    %c0_50 = arith.constant 0 : index
    %c0_51 = arith.constant 0 : index
    %c0_52 = arith.constant 0 : index
    %122 = vector.load %arg12[%c0_50, %c0_51, %c0_52] : memref<2x1x32xf32, #tpu.memory_space<vmem>>, vector<1x1x32xf32>
    %123 = vector.shape_cast %122 : vector<1x1x32xf32> to vector<1x32xf32>
    %124 = vector.broadcast %123 : vector<1x32xf32> to vector<20x32xf32>
    %125 = arith.addf %121, %124 : vector<20x32xf32>
    %126 = arith.addf %5, %125 : vector<20x32xf32>
    %c0_53 = arith.constant 0 : index
    %c0_54 = arith.constant 0 : index
    %c0_55 = arith.constant 0 : index
    %127 = vector.load %arg13[%c0_53, %c0_54, %c0_55] : memref<2x1x32xf32, #tpu.memory_space<vmem>>, vector<1x1x32xf32>
    %128 = vector.shape_cast %127 : vector<1x1x32xf32> to vector<1x32xf32>
    %c0_56 = arith.constant 0 : index
    %c0_57 = arith.constant 0 : index
    %c0_58 = arith.constant 0 : index
    %129 = vector.load %arg14[%c0_56, %c0_57, %c0_58] : memref<2x1x32xf32, #tpu.memory_space<vmem>>, vector<1x1x32xf32>
    %130 = vector.shape_cast %129 : vector<1x1x32xf32> to vector<1x32xf32>
    %cst_59 = arith.constant dense<0.000000e+00> : vector<20xf32>
    %131 = vector.multi_reduction <add>, %126, %cst_59 [1] : vector<20x32xf32> to vector<20xf32>
    %132 = vector.shape_cast %131 : vector<20xf32> to vector<20x1xf32>
    %cst_60 = arith.constant 3.200000e+01 : f32
    %133 = vector.broadcast %cst_60 : f32 to vector<20x1xf32>
    %134 = arith.divf %132, %133 : vector<20x1xf32>
    %135 = vector.broadcast %134 : vector<20x1xf32> to vector<20x32xf32>
    %136 = arith.subf %126, %135 : vector<20x32xf32>
    %137 = arith.mulf %136, %136 : vector<20x32xf32>
    %cst_61 = arith.constant dense<0.000000e+00> : vector<20xf32>
    %138 = vector.multi_reduction <add>, %137, %cst_61 [1] : vector<20x32xf32> to vector<20xf32>
    %139 = vector.shape_cast %138 : vector<20xf32> to vector<20x1xf32>
    %cst_62 = arith.constant 3.200000e+01 : f32
    %140 = vector.broadcast %cst_62 : f32 to vector<20x1xf32>
    %141 = arith.divf %139, %140 : vector<20x1xf32>
    %142 = vector.broadcast %134 : vector<20x1xf32> to vector<20x32xf32>
    %143 = arith.subf %126, %142 : vector<20x32xf32>
    %cst_63 = arith.constant 9.99999997E-7 : f32
    %144 = vector.broadcast %cst_63 : f32 to vector<20x1xf32>
    %145 = arith.addf %141, %144 : vector<20x1xf32>
    %146 = math.rsqrt %145 : vector<20x1xf32>
    %147 = vector.broadcast %146 : vector<20x1xf32> to vector<20x32xf32>
    %148 = arith.mulf %143, %147 : vector<20x32xf32>
    %149 = vector.broadcast %128 : vector<1x32xf32> to vector<20x32xf32>
    %150 = arith.mulf %148, %149 : vector<20x32xf32>
    %151 = vector.broadcast %130 : vector<1x32xf32> to vector<20x32xf32>
    %152 = arith.addf %150, %151 : vector<20x32xf32>
    %153 = arith.truncf %152 : vector<20x32xf32> to vector<20x32xbf16>
    %c0_64 = arith.constant 0 : index
    %c0_65 = arith.constant 0 : index
    %c0_66 = arith.constant 0 : index
    %154 = vector.load %arg15[%c0_64, %c0_65, %c0_66] : memref<2x32x64xbf16, #tpu.memory_space<vmem>>, vector<1x32x64xbf16>
    %155 = vector.shape_cast %154 : vector<1x32x64xbf16> to vector<32x64xbf16>
    %cst_67 = arith.constant dense<0.000000e+00> : vector<20x64xf32>
    %156 = tpu.matmul %153, %155, %cst_67 {dimension_numbers = #tpu.dot_dimension_numbers<[1], [0], [0], [1], [0, 0, 1, 1], [], []>} : vector<20x32xbf16>, vector<32x64xbf16>, vector<20x64xf32> -> vector<20x64xf32>
    %c0_68 = arith.constant 0 : index
    %c0_69 = arith.constant 0 : index
    %c0_70 = arith.constant 0 : index
    %157 = vector.load %arg16[%c0_68, %c0_69, %c0_70] : memref<2x1x64xf32, #tpu.memory_space<vmem>>, vector<1x1x64xf32>
    %158 = vector.shape_cast %157 : vector<1x1x64xf32> to vector<1x64xf32>
    %159 = vector.broadcast %158 : vector<1x64xf32> to vector<20x64xf32>
    %160 = arith.addf %156, %159 : vector<20x64xf32>
    %cst_71 = arith.constant 5.000000e-01 : f32
    %161 = vector.broadcast %cst_71 : f32 to vector<20x64xf32>
    %162 = arith.mulf %161, %160 : vector<20x64xf32>
    %cst_72 = arith.constant 0.707106769 : f32
    %163 = vector.broadcast %cst_72 : f32 to vector<20x64xf32>
    %164 = arith.mulf %160, %163 : vector<20x64xf32>
    %165 = math.erf %164 : vector<20x64xf32>
    %cst_73 = arith.constant 1.000000e+00 : f32
    %166 = vector.broadcast %cst_73 : f32 to vector<20x64xf32>
    %167 = arith.addf %166, %165 : vector<20x64xf32>
    %168 = arith.mulf %162, %167 : vector<20x64xf32>
    %169 = arith.truncf %168 : vector<20x64xf32> to vector<20x64xbf16>
    %c0_74 = arith.constant 0 : index
    %c0_75 = arith.constant 0 : index
    %c0_76 = arith.constant 0 : index
    %170 = vector.load %arg17[%c0_74, %c0_75, %c0_76] : memref<2x64x32xbf16, #tpu.memory_space<vmem>>, vector<1x64x32xbf16>
    %171 = vector.shape_cast %170 : vector<1x64x32xbf16> to vector<64x32xbf16>
    %cst_77 = arith.constant dense<0.000000e+00> : vector<20x32xf32>
    %172 = tpu.matmul %169, %171, %cst_77 {dimension_numbers = #tpu.dot_dimension_numbers<[1], [0], [0], [1], [0, 0, 1, 1], [], []>} : vector<20x64xbf16>, vector<64x32xbf16>, vector<20x32xf32> -> vector<20x32xf32>
    %c0_78 = arith.constant 0 : index
    %c0_79 = arith.constant 0 : index
    %c0_80 = arith.constant 0 : index
    %173 = vector.load %arg18[%c0_78, %c0_79, %c0_80] : memref<2x1x32xf32, #tpu.memory_space<vmem>>, vector<1x1x32xf32>
    %174 = vector.shape_cast %173 : vector<1x1x32xf32> to vector<1x32xf32>
    %175 = vector.broadcast %174 : vector<1x32xf32> to vector<20x32xf32>
    %176 = arith.addf %172, %175 : vector<20x32xf32>
    %177 = arith.addf %126, %176 : vector<20x32xf32>
    %c1 = arith.constant 1 : index
    %c0_81 = arith.constant 0 : index
    %c0_82 = arith.constant 0 : index
    %178 = vector.load %arg7[%c1, %c0_81, %c0_82] : memref<2x1x32xf32, #tpu.memory_space<vmem>>, vector<1x1x32xf32>
    %179 = vector.shape_cast %178 : vector<1x1x32xf32> to vector<1x32xf32>
    %c1_83 = arith.constant 1 : index
    %c0_84 = arith.constant 0 : index
    %c0_85 = arith.constant 0 : index
    %180 = vector.load %arg8[%c1_83, %c0_84, %c0_85] : memref<2x1x32xf32, #tpu.memory_space<vmem>>, vector<1x1x32xf32>
    %181 = vector.shape_cast %180 : vector<1x1x32xf32> to vector<1x32xf32>
    %cst_86 = arith.constant dense<0.000000e+00> : vector<20xf32>
    %182 = vector.multi_reduction <add>, %177, %cst_86 [1] : vector<20x32xf32> to vector<20xf32>
    %183 = vector.shape_cast %182 : vector<20xf32> to vector<20x1xf32>
    %cst_87 = arith.constant 3.200000e+01 : f32
    %184 = vector.broadcast %cst_87 : f32 to vector<20x1xf32>
    %185 = arith.divf %183, %184 : vector<20x1xf32>
    %186 = vector.broadcast %185 : vector<20x1xf32> to vector<20x32xf32>
    %187 = arith.subf %177, %186 : vector<20x32xf32>
    %188 = arith.mulf %187, %187 : vector<20x32xf32>
    %cst_88 = arith.constant dense<0.000000e+00> : vector<20xf32>
    %189 = vector.multi_reduction <add>, %188, %cst_88 [1] : vector<20x32xf32> to vector<20xf32>
    %190 = vector.shape_cast %189 : vector<20xf32> to vector<20x1xf32>
    %cst_89 = arith.constant 3.200000e+01 : f32
    %191 = vector.broadcast %cst_89 : f32 to vector<20x1xf32>
    %192 = arith.divf %190, %191 : vector<20x1xf32>
    %193 = vector.broadcast %185 : vector<20x1xf32> to vector<20x32xf32>
    %194 = arith.subf %177, %193 : vector<20x32xf32>
    %cst_90 = arith.constant 9.99999997E-7 : f32
    %195 = vector.broadcast %cst_90 : f32 to vector<20x1xf32>
    %196 = arith.addf %192, %195 : vector<20x1xf32>
    %197 = math.rsqrt %196 : vector<20x1xf32>
    %198 = vector.broadcast %197 : vector<20x1xf32> to vector<20x32xf32>
    %199 = arith.mulf %194, %198 : vector<20x32xf32>
    %200 = vector.broadcast %179 : vector<1x32xf32> to vector<20x32xf32>
    %201 = arith.mulf %199, %200 : vector<20x32xf32>
    %202 = vector.broadcast %181 : vector<1x32xf32> to vector<20x32xf32>
    %203 = arith.addf %201, %202 : vector<20x32xf32>
    %204 = arith.truncf %203 : vector<20x32xf32> to vector<20x32xbf16>
    %c1_91 = arith.constant 1 : index
    %c0_92 = arith.constant 0 : index
    %c0_93 = arith.constant 0 : index
    %205 = vector.load %arg9[%c1_91, %c0_92, %c0_93] : memref<2x32x96xbf16, #tpu.memory_space<vmem>>, vector<1x32x96xbf16>
    %206 = vector.shape_cast %205 : vector<1x32x96xbf16> to vector<32x96xbf16>
    %cst_94 = arith.constant dense<0.000000e+00> : vector<20x96xf32>
    %207 = tpu.matmul %204, %206, %cst_94 {dimension_numbers = #tpu.dot_dimension_numbers<[1], [0], [0], [1], [0, 0, 1, 1], [], []>} : vector<20x32xbf16>, vector<32x96xbf16>, vector<20x96xf32> -> vector<20x96xf32>
    %c1_95 = arith.constant 1 : index
    %c0_96 = arith.constant 0 : index
    %c0_97 = arith.constant 0 : index
    %208 = vector.load %arg10[%c1_95, %c0_96, %c0_97] : memref<2x1x96xf32, #tpu.memory_space<vmem>>, vector<1x1x96xf32>
    %209 = vector.shape_cast %208 : vector<1x1x96xf32> to vector<1x96xf32>
    %210 = vector.broadcast %209 : vector<1x96xf32> to vector<20x96xf32>
    %211 = arith.addf %207, %210 : vector<20x96xf32>
    %212 = arith.truncf %211 : vector<20x96xf32> to vector<20x96xbf16>
    %213 = vector.extract_strided_slice %212 {offsets = [0, 0], sizes = [20, 8], strides = [1, 1]} : vector<20x96xbf16> to vector<20x8xbf16>
    %214 = vector.extract_strided_slice %212 {offsets = [0, 32], sizes = [20, 8], strides = [1, 1]} : vector<20x96xbf16> to vector<20x8xbf16>
    %215 = vector.extract_strided_slice %212 {offsets = [0, 64], sizes = [20, 8], strides = [1, 1]} : vector<20x96xbf16> to vector<20x8xbf16>
    %cst_98 = arith.constant dense<0.000000e+00> : vector<20x20xf32>
    %216 = tpu.matmul %213, %214, %cst_98 {dimension_numbers = #tpu.dot_dimension_numbers<[1], [1], [0], [0], [0, 0, 1, 0], [], []>} : vector<20x8xbf16>, vector<20x8xbf16>, vector<20x20xf32> -> vector<20x20xf32>
    %217 = arith.addf %216, %13 : vector<20x20xf32>
    %cst_99 = arith.constant dense<0xFF800000> : vector<20xf32>
    %218 = vector.multi_reduction <maximumf>, %217, %cst_99 [1] : vector<20x20xf32> to vector<20xf32>
    %219 = vector.shape_cast %218 : vector<20xf32> to vector<20x1xf32>
    %220 = vector.broadcast %219 : vector<20x1xf32> to vector<20x20xf32>
    %221 = arith.subf %217, %220 : vector<20x20xf32>
    %222 = math.exp %221 : vector<20x20xf32>
    %cst_100 = arith.constant dense<0.000000e+00> : vector<20xf32>
    %223 = vector.multi_reduction <add>, %222, %cst_100 [1] : vector<20x20xf32> to vector<20xf32>
    %224 = vector.shape_cast %223 : vector<20xf32> to vector<20x1xf32>
    %225 = tpu.reciprocal %224 : vector<20x1xf32> -> vector<20x1xf32>
    %226 = vector.broadcast %225 : vector<20x1xf32> to vector<20x20xf32>
    %227 = arith.mulf %222, %226 : vector<20x20xf32>
    %228 = arith.truncf %227 : vector<20x20xf32> to vector<20x20xbf16>
    %cst_101 = arith.constant dense<0.000000e+00> : vector<20x8xf32>
    %229 = tpu.matmul %228, %215, %cst_101 {dimension_numbers = #tpu.dot_dimension_numbers<[1], [0], [0], [1], [0, 0, 1, 1], [], []>} : vector<20x20xbf16>, vector<20x8xbf16>, vector<20x8xf32> -> vector<20x8xf32>
    %230 = vector.extract_strided_slice %212 {offsets = [0, 8], sizes = [20, 8], strides = [1, 1]} : vector<20x96xbf16> to vector<20x8xbf16>
    %231 = vector.extract_strided_slice %212 {offsets = [0, 40], sizes = [20, 8], strides = [1, 1]} : vector<20x96xbf16> to vector<20x8xbf16>
    %232 = vector.extract_strided_slice %212 {offsets = [0, 72], sizes = [20, 8], strides = [1, 1]} : vector<20x96xbf16> to vector<20x8xbf16>
    %cst_102 = arith.constant dense<0.000000e+00> : vector<20x20xf32>
    %233 = tpu.matmul %230, %231, %cst_102 {dimension_numbers = #tpu.dot_dimension_numbers<[1], [1], [0], [0], [0, 0, 1, 0], [], []>} : vector<20x8xbf16>, vector<20x8xbf16>, vector<20x20xf32> -> vector<20x20xf32>
    %234 = arith.addf %233, %13 : vector<20x20xf32>
    %cst_103 = arith.constant dense<0xFF800000> : vector<20xf32>
    %235 = vector.multi_reduction <maximumf>, %234, %cst_103 [1] : vector<20x20xf32> to vector<20xf32>
    %236 = vector.shape_cast %235 : vector<20xf32> to vector<20x1xf32>
    %237 = vector.broadcast %236 : vector<20x1xf32> to vector<20x20xf32>
    %238 = arith.subf %234, %237 : vector<20x20xf32>
    %239 = math.exp %238 : vector<20x20xf32>
    %cst_104 = arith.constant dense<0.000000e+00> : vector<20xf32>
    %240 = vector.multi_reduction <add>, %239, %cst_104 [1] : vector<20x20xf32> to vector<20xf32>
    %241 = vector.shape_cast %240 : vector<20xf32> to vector<20x1xf32>
    %242 = tpu.reciprocal %241 : vector<20x1xf32> -> vector<20x1xf32>
    %243 = vector.broadcast %242 : vector<20x1xf32> to vector<20x20xf32>
    %244 = arith.mulf %239, %243 : vector<20x20xf32>
    %245 = arith.truncf %244 : vector<20x20xf32> to vector<20x20xbf16>
    %cst_105 = arith.constant dense<0.000000e+00> : vector<20x8xf32>
    %246 = tpu.matmul %245, %232, %cst_105 {dimension_numbers = #tpu.dot_dimension_numbers<[1], [0], [0], [1], [0, 0, 1, 1], [], []>} : vector<20x20xbf16>, vector<20x8xbf16>, vector<20x8xf32> -> vector<20x8xf32>
    %247 = vector.extract_strided_slice %212 {offsets = [0, 16], sizes = [20, 8], strides = [1, 1]} : vector<20x96xbf16> to vector<20x8xbf16>
    %248 = vector.extract_strided_slice %212 {offsets = [0, 48], sizes = [20, 8], strides = [1, 1]} : vector<20x96xbf16> to vector<20x8xbf16>
    %249 = vector.extract_strided_slice %212 {offsets = [0, 80], sizes = [20, 8], strides = [1, 1]} : vector<20x96xbf16> to vector<20x8xbf16>
    %cst_106 = arith.constant dense<0.000000e+00> : vector<20x20xf32>
    %250 = tpu.matmul %247, %248, %cst_106 {dimension_numbers = #tpu.dot_dimension_numbers<[1], [1], [0], [0], [0, 0, 1, 0], [], []>} : vector<20x8xbf16>, vector<20x8xbf16>, vector<20x20xf32> -> vector<20x20xf32>
    %251 = arith.addf %250, %13 : vector<20x20xf32>
    %cst_107 = arith.constant dense<0xFF800000> : vector<20xf32>
    %252 = vector.multi_reduction <maximumf>, %251, %cst_107 [1] : vector<20x20xf32> to vector<20xf32>
    %253 = vector.shape_cast %252 : vector<20xf32> to vector<20x1xf32>
    %254 = vector.broadcast %253 : vector<20x1xf32> to vector<20x20xf32>
    %255 = arith.subf %251, %254 : vector<20x20xf32>
    %256 = math.exp %255 : vector<20x20xf32>
    %cst_108 = arith.constant dense<0.000000e+00> : vector<20xf32>
    %257 = vector.multi_reduction <add>, %256, %cst_108 [1] : vector<20x20xf32> to vector<20xf32>
    %258 = vector.shape_cast %257 : vector<20xf32> to vector<20x1xf32>
    %259 = tpu.reciprocal %258 : vector<20x1xf32> -> vector<20x1xf32>
    %260 = vector.broadcast %259 : vector<20x1xf32> to vector<20x20xf32>
    %261 = arith.mulf %256, %260 : vector<20x20xf32>
    %262 = arith.truncf %261 : vector<20x20xf32> to vector<20x20xbf16>
    %cst_109 = arith.constant dense<0.000000e+00> : vector<20x8xf32>
    %263 = tpu.matmul %262, %249, %cst_109 {dimension_numbers = #tpu.dot_dimension_numbers<[1], [0], [0], [1], [0, 0, 1, 1], [], []>} : vector<20x20xbf16>, vector<20x8xbf16>, vector<20x8xf32> -> vector<20x8xf32>
    %264 = vector.extract_strided_slice %212 {offsets = [0, 24], sizes = [20, 8], strides = [1, 1]} : vector<20x96xbf16> to vector<20x8xbf16>
    %265 = vector.extract_strided_slice %212 {offsets = [0, 56], sizes = [20, 8], strides = [1, 1]} : vector<20x96xbf16> to vector<20x8xbf16>
    %266 = vector.extract_strided_slice %212 {offsets = [0, 88], sizes = [20, 8], strides = [1, 1]} : vector<20x96xbf16> to vector<20x8xbf16>
    %cst_110 = arith.constant dense<0.000000e+00> : vector<20x20xf32>
    %267 = tpu.matmul %264, %265, %cst_110 {dimension_numbers = #tpu.dot_dimension_numbers<[1], [1], [0], [0], [0, 0, 1, 0], [], []>} : vector<20x8xbf16>, vector<20x8xbf16>, vector<20x20xf32> -> vector<20x20xf32>
    %268 = arith.addf %267, %13 : vector<20x20xf32>
    %cst_111 = arith.constant dense<0xFF800000> : vector<20xf32>
    %269 = vector.multi_reduction <maximumf>, %268, %cst_111 [1] : vector<20x20xf32> to vector<20xf32>
    %270 = vector.shape_cast %269 : vector<20xf32> to vector<20x1xf32>
    %271 = vector.broadcast %270 : vector<20x1xf32> to vector<20x20xf32>
    %272 = arith.subf %268, %271 : vector<20x20xf32>
    %273 = math.exp %272 : vector<20x20xf32>
    %cst_112 = arith.constant dense<0.000000e+00> : vector<20xf32>
    %274 = vector.multi_reduction <add>, %273, %cst_112 [1] : vector<20x20xf32> to vector<20xf32>
    %275 = vector.shape_cast %274 : vector<20xf32> to vector<20x1xf32>
    %276 = tpu.reciprocal %275 : vector<20x1xf32> -> vector<20x1xf32>
    %277 = vector.broadcast %276 : vector<20x1xf32> to vector<20x20xf32>
    %278 = arith.mulf %273, %277 : vector<20x20xf32>
    %279 = arith.truncf %278 : vector<20x20xf32> to vector<20x20xbf16>
    %cst_113 = arith.constant dense<0.000000e+00> : vector<20x8xf32>
    %280 = tpu.matmul %279, %266, %cst_113 {dimension_numbers = #tpu.dot_dimension_numbers<[1], [0], [0], [1], [0, 0, 1, 1], [], []>} : vector<20x20xbf16>, vector<20x8xbf16>, vector<20x8xf32> -> vector<20x8xf32>
    %281 = tpu.concatenate %229, %246, %263, %280 in 1 : vector<20x8xf32>, vector<20x8xf32>, vector<20x8xf32>, vector<20x8xf32> -> vector<20x32xf32>
    %282 = arith.truncf %281 : vector<20x32xf32> to vector<20x32xbf16>
    %c1_114 = arith.constant 1 : index
    %c0_115 = arith.constant 0 : index
    %c0_116 = arith.constant 0 : index
    %283 = vector.load %arg11[%c1_114, %c0_115, %c0_116] : memref<2x32x32xbf16, #tpu.memory_space<vmem>>, vector<1x32x32xbf16>
    %284 = vector.shape_cast %283 : vector<1x32x32xbf16> to vector<32x32xbf16>
    %cst_117 = arith.constant dense<0.000000e+00> : vector<20x32xf32>
    %285 = tpu.matmul %282, %284, %cst_117 {dimension_numbers = #tpu.dot_dimension_numbers<[1], [0], [0], [1], [0, 0, 1, 1], [], []>} : vector<20x32xbf16>, vector<32x32xbf16>, vector<20x32xf32> -> vector<20x32xf32>
    %c1_118 = arith.constant 1 : index
    %c0_119 = arith.constant 0 : index
    %c0_120 = arith.constant 0 : index
    %286 = vector.load %arg12[%c1_118, %c0_119, %c0_120] : memref<2x1x32xf32, #tpu.memory_space<vmem>>, vector<1x1x32xf32>
    %287 = vector.shape_cast %286 : vector<1x1x32xf32> to vector<1x32xf32>
    %288 = vector.broadcast %287 : vector<1x32xf32> to vector<20x32xf32>
    %289 = arith.addf %285, %288 : vector<20x32xf32>
    %290 = arith.addf %177, %289 : vector<20x32xf32>
    %c1_121 = arith.constant 1 : index
    %c0_122 = arith.constant 0 : index
    %c0_123 = arith.constant 0 : index
    %291 = vector.load %arg13[%c1_121, %c0_122, %c0_123] : memref<2x1x32xf32, #tpu.memory_space<vmem>>, vector<1x1x32xf32>
    %292 = vector.shape_cast %291 : vector<1x1x32xf32> to vector<1x32xf32>
    %c1_124 = arith.constant 1 : index
    %c0_125 = arith.constant 0 : index
    %c0_126 = arith.constant 0 : index
    %293 = vector.load %arg14[%c1_124, %c0_125, %c0_126] : memref<2x1x32xf32, #tpu.memory_space<vmem>>, vector<1x1x32xf32>
    %294 = vector.shape_cast %293 : vector<1x1x32xf32> to vector<1x32xf32>
    %cst_127 = arith.constant dense<0.000000e+00> : vector<20xf32>
    %295 = vector.multi_reduction <add>, %290, %cst_127 [1] : vector<20x32xf32> to vector<20xf32>
    %296 = vector.shape_cast %295 : vector<20xf32> to vector<20x1xf32>
    %cst_128 = arith.constant 3.200000e+01 : f32
    %297 = vector.broadcast %cst_128 : f32 to vector<20x1xf32>
    %298 = arith.divf %296, %297 : vector<20x1xf32>
    %299 = vector.broadcast %298 : vector<20x1xf32> to vector<20x32xf32>
    %300 = arith.subf %290, %299 : vector<20x32xf32>
    %301 = arith.mulf %300, %300 : vector<20x32xf32>
    %cst_129 = arith.constant dense<0.000000e+00> : vector<20xf32>
    %302 = vector.multi_reduction <add>, %301, %cst_129 [1] : vector<20x32xf32> to vector<20xf32>
    %303 = vector.shape_cast %302 : vector<20xf32> to vector<20x1xf32>
    %cst_130 = arith.constant 3.200000e+01 : f32
    %304 = vector.broadcast %cst_130 : f32 to vector<20x1xf32>
    %305 = arith.divf %303, %304 : vector<20x1xf32>
    %306 = vector.broadcast %298 : vector<20x1xf32> to vector<20x32xf32>
    %307 = arith.subf %290, %306 : vector<20x32xf32>
    %cst_131 = arith.constant 9.99999997E-7 : f32
    %308 = vector.broadcast %cst_131 : f32 to vector<20x1xf32>
    %309 = arith.addf %305, %308 : vector<20x1xf32>
    %310 = math.rsqrt %309 : vector<20x1xf32>
    %311 = vector.broadcast %310 : vector<20x1xf32> to vector<20x32xf32>
    %312 = arith.mulf %307, %311 : vector<20x32xf32>
    %313 = vector.broadcast %292 : vector<1x32xf32> to vector<20x32xf32>
    %314 = arith.mulf %312, %313 : vector<20x32xf32>
    %315 = vector.broadcast %294 : vector<1x32xf32> to vector<20x32xf32>
    %316 = arith.addf %314, %315 : vector<20x32xf32>
    %317 = arith.truncf %316 : vector<20x32xf32> to vector<20x32xbf16>
    %c1_132 = arith.constant 1 : index
    %c0_133 = arith.constant 0 : index
    %c0_134 = arith.constant 0 : index
    %318 = vector.load %arg15[%c1_132, %c0_133, %c0_134] : memref<2x32x64xbf16, #tpu.memory_space<vmem>>, vector<1x32x64xbf16>
    %319 = vector.shape_cast %318 : vector<1x32x64xbf16> to vector<32x64xbf16>
    %cst_135 = arith.constant dense<0.000000e+00> : vector<20x64xf32>
    %320 = tpu.matmul %317, %319, %cst_135 {dimension_numbers = #tpu.dot_dimension_numbers<[1], [0], [0], [1], [0, 0, 1, 1], [], []>} : vector<20x32xbf16>, vector<32x64xbf16>, vector<20x64xf32> -> vector<20x64xf32>
    %c1_136 = arith.constant 1 : index
    %c0_137 = arith.constant 0 : index
    %c0_138 = arith.constant 0 : index
    %321 = vector.load %arg16[%c1_136, %c0_137, %c0_138] : memref<2x1x64xf32, #tpu.memory_space<vmem>>, vector<1x1x64xf32>
    %322 = vector.shape_cast %321 : vector<1x1x64xf32> to vector<1x64xf32>
    %323 = vector.broadcast %322 : vector<1x64xf32> to vector<20x64xf32>
    %324 = arith.addf %320, %323 : vector<20x64xf32>
    %cst_139 = arith.constant 5.000000e-01 : f32
    %325 = vector.broadcast %cst_139 : f32 to vector<20x64xf32>
    %326 = arith.mulf %325, %324 : vector<20x64xf32>
    %cst_140 = arith.constant 0.707106769 : f32
    %327 = vector.broadcast %cst_140 : f32 to vector<20x64xf32>
    %328 = arith.mulf %324, %327 : vector<20x64xf32>
    %329 = math.erf %328 : vector<20x64xf32>
    %cst_141 = arith.constant 1.000000e+00 : f32
    %330 = vector.broadcast %cst_141 : f32 to vector<20x64xf32>
    %331 = arith.addf %330, %329 : vector<20x64xf32>
    %332 = arith.mulf %326, %331 : vector<20x64xf32>
    %333 = arith.truncf %332 : vector<20x64xf32> to vector<20x64xbf16>
    %c1_142 = arith.constant 1 : index
    %c0_143 = arith.constant 0 : index
    %c0_144 = arith.constant 0 : index
    %334 = vector.load %arg17[%c1_142, %c0_143, %c0_144] : memref<2x64x32xbf16, #tpu.memory_space<vmem>>, vector<1x64x32xbf16>
    %335 = vector.shape_cast %334 : vector<1x64x32xbf16> to vector<64x32xbf16>
    %cst_145 = arith.constant dense<0.000000e+00> : vector<20x32xf32>
    %336 = tpu.matmul %333, %335, %cst_145 {dimension_numbers = #tpu.dot_dimension_numbers<[1], [0], [0], [1], [0, 0, 1, 1], [], []>} : vector<20x64xbf16>, vector<64x32xbf16>, vector<20x32xf32> -> vector<20x32xf32>
    %c1_146 = arith.constant 1 : index
    %c0_147 = arith.constant 0 : index
    %c0_148 = arith.constant 0 : index
    %337 = vector.load %arg18[%c1_146, %c0_147, %c0_148] : memref<2x1x32xf32, #tpu.memory_space<vmem>>, vector<1x1x32xf32>
    %338 = vector.shape_cast %337 : vector<1x1x32xf32> to vector<1x32xf32>
    %339 = vector.broadcast %338 : vector<1x32xf32> to vector<20x32xf32>
    %340 = arith.addf %336, %339 : vector<20x32xf32>
    %341 = arith.addf %290, %340 : vector<20x32xf32>
    %c0_149 = arith.constant 0 : index
    %c0_150 = arith.constant 0 : index
    %342 = vector.load %arg19[%c0_149, %c0_150] : memref<1x32xf32, #tpu.memory_space<vmem>>, vector<1x32xf32>
    %c0_151 = arith.constant 0 : index
    %c0_152 = arith.constant 0 : index
    %343 = vector.load %arg20[%c0_151, %c0_152] : memref<1x32xf32, #tpu.memory_space<vmem>>, vector<1x32xf32>
    %cst_153 = arith.constant dense<0.000000e+00> : vector<20xf32>
    %344 = vector.multi_reduction <add>, %341, %cst_153 [1] : vector<20x32xf32> to vector<20xf32>
    %345 = vector.shape_cast %344 : vector<20xf32> to vector<20x1xf32>
    %cst_154 = arith.constant 3.200000e+01 : f32
    %346 = vector.broadcast %cst_154 : f32 to vector<20x1xf32>
    %347 = arith.divf %345, %346 : vector<20x1xf32>
    %348 = vector.broadcast %347 : vector<20x1xf32> to vector<20x32xf32>
    %349 = arith.subf %341, %348 : vector<20x32xf32>
    %350 = arith.mulf %349, %349 : vector<20x32xf32>
    %cst_155 = arith.constant dense<0.000000e+00> : vector<20xf32>
    %351 = vector.multi_reduction <add>, %350, %cst_155 [1] : vector<20x32xf32> to vector<20xf32>
    %352 = vector.shape_cast %351 : vector<20xf32> to vector<20x1xf32>
    %cst_156 = arith.constant 3.200000e+01 : f32
    %353 = vector.broadcast %cst_156 : f32 to vector<20x1xf32>
    %354 = arith.divf %352, %353 : vector<20x1xf32>
    %355 = vector.broadcast %347 : vector<20x1xf32> to vector<20x32xf32>
    %356 = arith.subf %341, %355 : vector<20x32xf32>
    %cst_157 = arith.constant 9.99999997E-7 : f32
    %357 = vector.broadcast %cst_157 : f32 to vector<20x1xf32>
    %358 = arith.addf %354, %357 : vector<20x1xf32>
    %359 = math.rsqrt %358 : vector<20x1xf32>
    %360 = vector.broadcast %359 : vector<20x1xf32> to vector<20x32xf32>
    %361 = arith.mulf %356, %360 : vector<20x32xf32>
    %362 = vector.broadcast %342 : vector<1x32xf32> to vector<20x32xf32>
    %363 = arith.mulf %361, %362 : vector<20x32xf32>
    %364 = vector.broadcast %343 : vector<1x32xf32> to vector<20x32xf32>
    %365 = arith.addf %363, %364 : vector<20x32xf32>
    %c0_158 = arith.constant 0 : index
    %c0_159 = arith.constant 0 : index
    %366 = vector.load %arg5[%c0_158, %c0_159] : memref<2x20xf32, #tpu.memory_space<vmem>>, vector<2x20xf32>
    %cst_160 = arith.constant dense<0.000000e+00> : vector<2x32xf32>
    %367 = tpu.matmul %366, %365, %cst_160 {dimension_numbers = #tpu.dot_dimension_numbers<[1], [0], [0], [1], [0, 0, 1, 1], [], []>} : vector<2x20xf32>, vector<20x32xf32>, vector<2x32xf32> -> vector<2x32xf32>
    %368 = arith.truncf %367 : vector<2x32xf32> to vector<2x32xbf16>
    %c0_161 = arith.constant 0 : index
    %c0_162 = arith.constant 0 : index
    %369 = vector.load %arg21[%c0_161, %c0_162] : memref<32x256xbf16, #tpu.memory_space<vmem>>, vector<32x256xbf16>
    %cst_163 = arith.constant dense<0.000000e+00> : vector<2x256xf32>
    %370 = tpu.matmul %368, %369, %cst_163 {dimension_numbers = #tpu.dot_dimension_numbers<[1], [0], [0], [1], [0, 0, 1, 1], [], []>} : vector<2x32xbf16>, vector<32x256xbf16>, vector<2x256xf32> -> vector<2x256xf32>
    %c0_164 = arith.constant 0 : index
    %c0_165 = arith.constant 0 : index
    %371 = vector.load %arg22[%c0_164, %c0_165] : memref<1x256xf32, #tpu.memory_space<vmem>>, vector<1x256xf32>
    %372 = vector.broadcast %371 : vector<1x256xf32> to vector<2x256xf32>
    %373 = arith.addf %370, %372 : vector<2x256xf32>
    %cst_166 = arith.constant 0.000000e+00 : f32
    %374 = vector.broadcast %cst_166 : f32 to vector<2x256xf32>
    %375 = arith.maximumf %373, %374 : vector<2x256xf32>
    %376 = arith.truncf %375 : vector<2x256xf32> to vector<2x256xbf16>
    %c0_167 = arith.constant 0 : index
    %c0_168 = arith.constant 0 : index
    %377 = vector.load %arg23[%c0_167, %c0_168] : memref<256x4xbf16, #tpu.memory_space<vmem>>, vector<256x4xbf16>
    %cst_169 = arith.constant dense<0.000000e+00> : vector<2x4xf32>
    %378 = tpu.matmul %376, %377, %cst_169 {dimension_numbers = #tpu.dot_dimension_numbers<[1], [0], [0], [1], [0, 0, 1, 1], [], []>} : vector<2x256xbf16>, vector<256x4xbf16>, vector<2x4xf32> -> vector<2x4xf32>
    %c0_170 = arith.constant 0 : index
    %c0_171 = arith.constant 0 : index
    %379 = vector.load %arg24[%c0_170, %c0_171] : memref<1x4xf32, #tpu.memory_space<vmem>>, vector<1x4xf32>
    %380 = vector.broadcast %379 : vector<1x4xf32> to vector<2x4xf32>
    %381 = arith.addf %378, %380 : vector<2x4xf32>
    %c0_172 = arith.constant 0 : index
    %c0_173 = arith.constant 0 : index
    %c0_174 = arith.constant 0 : index
    %382 = vector.load %arg25[%c0_172, %c0_173, %c0_174] : memref<1x2x4xf32, #tpu.memory_space<vmem>>, vector<1x2x4xf32>
    %383 = vector.shape_cast %382 : vector<1x2x4xf32> to vector<2x4xf32>
    %384 = vector.shape_cast %381 : vector<2x4xf32> to vector<1x2x4xf32>
    tpu.vector_store %arg25[%c0_172, %c0_173, %c0_174], %384 {strides = array<i32>} : memref<1x2x4xf32, #tpu.memory_space<vmem>>, vector<1x2x4xf32>,
    return
  }
  func.func @transform_0(%arg0: i32) -> (i32, i32, i32) {
    %c0_i32 = arith.constant 0 : i32
    %c0_i32_0 = arith.constant 0 : i32
    %c0_i32_1 = arith.constant 0 : i32
    return %arg0, %c0_i32, %c0_i32_0 : i32, i32, i32
  }
  func.func @transform_1(%arg0: i32) -> (i32, i32) {
    %c0_i32 = arith.constant 0 : i32
    %c0_i32_0 = arith.constant 0 : i32
    %c0_i32_1 = arith.constant 0 : i32
    return %c0_i32, %c0_i32_0 : i32, i32
  }
  func.func @transform_2(%arg0: i32) -> (i32, i32) {
    %c0_i32 = arith.constant 0 : i32
    %c0_i32_0 = arith.constant 0 : i32
    %c0_i32_1 = arith.constant 0 : i32
    return %c0_i32, %c0_i32_0 : i32, i32
  }
  func.func @transform_3(%arg0: i32) -> (i32, i32) {
    %c0_i32 = arith.constant 0 : i32
    %c0_i32_0 = arith.constant 0 : i32
    %c0_i32_1 = arith.constant 0 : i32
    return %c0_i32, %c0_i32_0 : i32, i32
  }
  func.func @transform_4(%arg0: i32) -> (i32, i32) {
    %c0_i32 = arith.constant 0 : i32
    %c0_i32_0 = arith.constant 0 : i32
    %c0_i32_1 = arith.constant 0 : i32
    return %c0_i32, %c0_i32_0 : i32, i32
  }
  func.func @transform_5(%arg0: i32) -> (i32, i32) {
    %c0_i32 = arith.constant 0 : i32
    %c0_i32_0 = arith.constant 0 : i32
    %c0_i32_1 = arith.constant 0 : i32
    return %c0_i32, %c0_i32_0 : i32, i32
  }
  func.func @transform_6(%arg0: i32) -> (i32, i32, i32) {
    %c0_i32 = arith.constant 0 : i32
    %c0_i32_0 = arith.constant 0 : i32
    %c0_i32_1 = arith.constant 0 : i32
    %c0_i32_2 = arith.constant 0 : i32
    return %c0_i32, %c0_i32_0, %c0_i32_1 : i32, i32, i32
  }
  func.func @transform_7(%arg0: i32) -> (i32, i32, i32) {
    %c0_i32 = arith.constant 0 : i32
    %c0_i32_0 = arith.constant 0 : i32
    %c0_i32_1 = arith.constant 0 : i32
    %c0_i32_2 = arith.constant 0 : i32
    return %c0_i32, %c0_i32_0, %c0_i32_1 : i32, i32, i32
  }
  func.func @transform_8(%arg0: i32) -> (i32, i32, i32) {
    %c0_i32 = arith.constant 0 : i32
    %c0_i32_0 = arith.constant 0 : i32
    %c0_i32_1 = arith.constant 0 : i32
    %c0_i32_2 = arith.constant 0 : i32
    return %c0_i32, %c0_i32_0, %c0_i32_1 : i32, i32, i32
  }
  func.func @transform_9(%arg0: i32) -> (i32, i32, i32) {
    %c0_i32 = arith.constant 0 : i32
    %c0_i32_0 = arith.constant 0 : i32
    %c0_i32_1 = arith.constant 0 : i32
    %c0_i32_2 = arith.constant 0 : i32
    return %c0_i32, %c0_i32_0, %c0_i32_1 : i32, i32, i32
  }
  func.func @transform_10(%arg0: i32) -> (i32, i32, i32) {
    %c0_i32 = arith.constant 0 : i32
    %c0_i32_0 = arith.constant 0 : i32
    %c0_i32_1 = arith.constant 0 : i32
    %c0_i32_2 = arith.constant 0 : i32
    return %c0_i32, %c0_i32_0, %c0_i32_1 : i32, i32, i32
  }
  func.func @transform_11(%arg0: i32) -> (i32, i32, i32) {
    %c0_i32 = arith.constant 0 : i32
    %c0_i32_0 = arith.constant 0 : i32
    %c0_i32_1 = arith.constant 0 : i32
    %c0_i32_2 = arith.constant 0 : i32
    return %c0_i32, %c0_i32_0, %c0_i32_1 : i32, i32, i32
  }
  func.func @transform_12(%arg0: i32) -> (i32, i32, i32) {
    %c0_i32 = arith.constant 0 : i32
    %c0_i32_0 = arith.constant 0 : i32
    %c0_i32_1 = arith.constant 0 : i32
    %c0_i32_2 = arith.constant 0 : i32
    return %c0_i32, %c0_i32_0, %c0_i32_1 : i32, i32, i32
  }
  func.func @transform_13(%arg0: i32) -> (i32, i32, i32) {
    %c0_i32 = arith.constant 0 : i32
    %c0_i32_0 = arith.constant 0 : i32
    %c0_i32_1 = arith.constant 0 : i32
    %c0_i32_2 = arith.constant 0 : i32
    return %c0_i32, %c0_i32_0, %c0_i32_1 : i32, i32, i32
  }
  func.func @transform_14(%arg0: i32) -> (i32, i32, i32) {
    %c0_i32 = arith.constant 0 : i32
    %c0_i32_0 = arith.constant 0 : i32
    %c0_i32_1 = arith.constant 0 : i32
    %c0_i32_2 = arith.constant 0 : i32
    return %c0_i32, %c0_i32_0, %c0_i32_1 : i32, i32, i32
  }
  func.func @transform_15(%arg0: i32) -> (i32, i32, i32) {
    %c0_i32 = arith.constant 0 : i32
    %c0_i32_0 = arith.constant 0 : i32
    %c0_i32_1 = arith.constant 0 : i32
    %c0_i32_2 = arith.constant 0 : i32
    return %c0_i32, %c0_i32_0, %c0_i32_1 : i32, i32, i32
  }
  func.func @transform_16(%arg0: i32) -> (i32, i32, i32) {
    %c0_i32 = arith.constant 0 : i32
    %c0_i32_0 = arith.constant 0 : i32
    %c0_i32_1 = arith.constant 0 : i32
    %c0_i32_2 = arith.constant 0 : i32
    return %c0_i32, %c0_i32_0, %c0_i32_1 : i32, i32, i32
  }
  func.func @transform_17(%arg0: i32) -> (i32, i32, i32) {
    %c0_i32 = arith.constant 0 : i32
    %c0_i32_0 = arith.constant 0 : i32
    %c0_i32_1 = arith.constant 0 : i32
    %c0_i32_2 = arith.constant 0 : i32
    return %c0_i32, %c0_i32_0, %c0_i32_1 : i32, i32, i32
  }
  func.func @transform_18(%arg0: i32) -> (i32, i32) {
    %c0_i32 = arith.constant 0 : i32
    %c0_i32_0 = arith.constant 0 : i32
    %c0_i32_1 = arith.constant 0 : i32
    return %c0_i32, %c0_i32_0 : i32, i32
  }
  func.func @transform_19(%arg0: i32) -> (i32, i32) {
    %c0_i32 = arith.constant 0 : i32
    %c0_i32_0 = arith.constant 0 : i32
    %c0_i32_1 = arith.constant 0 : i32
    return %c0_i32, %c0_i32_0 : i32, i32
  }
  func.func @transform_20(%arg0: i32) -> (i32, i32) {
    %c0_i32 = arith.constant 0 : i32
    %c0_i32_0 = arith.constant 0 : i32
    %c0_i32_1 = arith.constant 0 : i32
    return %c0_i32, %c0_i32_0 : i32, i32
  }
  func.func @transform_21(%arg0: i32) -> (i32, i32) {
    %c0_i32 = arith.constant 0 : i32
    %c0_i32_0 = arith.constant 0 : i32
    %c0_i32_1 = arith.constant 0 : i32
    return %c0_i32, %c0_i32_0 : i32, i32
  }
  func.func @transform_22(%arg0: i32) -> (i32, i32) {
    %c0_i32 = arith.constant 0 : i32
    %c0_i32_0 = arith.constant 0 : i32
    %c0_i32_1 = arith.constant 0 : i32
    return %c0_i32, %c0_i32_0 : i32, i32
  }
  func.func @transform_23(%arg0: i32) -> (i32, i32) {
    %c0_i32 = arith.constant 0 : i32
    %c0_i32_0 = arith.constant 0 : i32
    %c0_i32_1 = arith.constant 0 : i32
    return %c0_i32, %c0_i32_0 : i32, i32
  }
  func.func @transform_24(%arg0: i32) -> (i32, i32, i32) {
    %c0_i32 = arith.constant 0 : i32
    %c0_i32_0 = arith.constant 0 : i32
    %c0_i32_1 = arith.constant 0 : i32
    return %arg0, %c0_i32, %c0_i32_0 : i32, i32, i32
  }
}

</mosaic_0001>

<llo_original>
// kernel: tile.9
$region0: #{tile.9}
  %s0 = inlined_call_operand.vmem [shape: f32[4,5,32], index: 0, kind: input, shape index: {}]
  %s1 = inlined_call_operand.vmem [shape: f32[20,32], index: 1, kind: output, shape index: {}]
  %v2 = vld [vmem:[%s0] sm:$0x1f]
  %vm3 = vcmask 261120
  %4 = vst.msk [vmem:[%s1] sm:$0x1f] %vm3, %v2
  %s5 = scalar_lea.vmem %s0, 8
  %v6 = vld [vmem:[%s5] sm:$0x1f]
  %vm7 = vcmask 261120
  %s8 = scalar_lea.vmem %s1, 5
  %9 = vst.msk [vmem:[%s8] sm:$0x1f] %vm7, %v6
  %s10 = scalar_lea.vmem %s0, 16
  %v11 = vld [vmem:[%s10] sm:$0x1f]
  %vm12 = vcmask 261120
  %s13 = scalar_lea.vmem %s1, 10
  %14 = vst.msk [vmem:[%s13] sm:$0x1f] %vm12, %v11
  %s15 = scalar_lea.vmem %s0, 24
  %v16 = vld [vmem:[%s15] sm:$0x1f]
  %vm17 = vcmask 261120
  %s18 = scalar_lea.vmem %s1, 15
  %19 = vst.msk [vmem:[%s18] sm:$0x1f] %vm17, %v16

// kernel: vit_mushroom_forward.1
$region0: #{vit_mushroom_forward.1}
  #allocation0 [shape = 'u32[]', space=smem, size = 0x4, offset = 0x4, fixed_abs, tag = 'smem constant byte address 0x4 - core index']
  #allocation1 [shape = 'u32[144,128]{1,0:T(1,128)}', space=vmem, size = 0x12000, scoped, tag = 'internal scratch']
  %s0 = inlined_call_operand.vmem [shape: bf16[2,20,192], index: 0, kind: input, shape index: {}]
  %s1 = inlined_call_operand.vmem [shape: f32[20,32], index: 1, kind: input, shape index: {}]
  %s2 = inlined_call_operand.vmem [shape: s32[20,1], index: 2, kind: input, shape index: {}]
  %s3 = inlined_call_operand.vmem [shape: s32[1,20], index: 3, kind: input, shape index: {}]
  %s4 = inlined_call_operand.vmem [shape: f32[2,20], index: 4, kind: input, shape index: {}]
  %s5 = inlined_call_operand.vmem [shape: bf16[192,32], index: 5, kind: input, shape index: {}]
  %s6 = inlined_call_operand.vmem [shape: f32[2,1,32], index: 6, kind: input, shape index: {}]
  %s7 = inlined_call_operand.vmem [shape: f32[2,1,32], index: 7, kind: input, shape index: {}]
  %s8 = inlined_call_operand.vmem [shape: bf16[2,32,96], index: 8, kind: input, shape index: {}]
  %s9 = inlined_call_operand.vmem [shape: f32[2,1,96], index: 9, kind: input, shape index: {}]
  %s10 = inlined_call_operand.vmem [shape: bf16[2,32,32], index: 10, kind: input, shape index: {}]
  %s11 = inlined_call_operand.vmem [shape: f32[2,1,32], index: 11, kind: input, shape index: {}]
  %s12 = inlined_call_operand.vmem [shape: f32[2,1,32], index: 12, kind: input, shape index: {}]
  %s13 = inlined_call_operand.vmem [shape: f32[2,1,32], index: 13, kind: input, shape index: {}]
  %s14 = inlined_call_operand.vmem [shape: bf16[2,32,64], index: 14, kind: input, shape index: {}]
  %s15 = inlined_call_operand.vmem [shape: f32[2,1,64], index: 15, kind: input, shape index: {}]
  %s16 = inlined_call_operand.vmem [shape: bf16[2,64,32], index: 16, kind: input, shape index: {}]
  %s17 = inlined_call_operand.vmem [shape: f32[2,1,32], index: 17, kind: input, shape index: {}]
  %s18 = inlined_call_operand.vmem [shape: f32[1,32], index: 18, kind: input, shape index: {}]
  %s19 = inlined_call_operand.vmem [shape: f32[1,32], index: 19, kind: input, shape index: {}]
  %s20 = inlined_call_operand.vmem [shape: bf16[32,256], index: 20, kind: input, shape index: {}]
  %s21 = inlined_call_operand.vmem [shape: f32[1,256], index: 21, kind: input, shape index: {}]
  %s22 = inlined_call_operand.vmem [shape: bf16[256,4], index: 22, kind: input, shape index: {}]
  %s23 = inlined_call_operand.vmem [shape: f32[1,4], index: 23, kind: input, shape index: {}]
  %s24 = inlined_call_operand.hbm [shape: f32[2,2,4], index: 24, kind: output, shape index: {}]
  %s25 = sld [smem:[#allocation0]]
  $region129: #{vit_mushroom_forward.1} parent=0
    _
  %s27 = ssub.s32 1, %s25
  %s28 = scalar_select 0, %s27, %s25
  $region1: #{vit_mushroom_forward.1} parent=0
    #allocation2 [shape = 'u8[2048]{0}', space=vmem, size = 0x800, scoped, tag = 'output window, operand 0']
    #allocation3 [shape = 's32[2]{0}', space=sflag, size = 0x8, scoped, tag = 'scoped memory for vit_mushroom_forward.1']
    %29 = vsyncpa [#allocation3], 0
    %s30 = scalar_lea.sflag [#allocation3], 1
    %31 = vsyncpa %s30, 0
    loop: start=0, step=1, limit=4
    $region2: #{vit_mushroom_forward.1} parent=1 // loop_pre_header
      _
    $region3: #{vit_mushroom_forward.1} parent=1 // loop_header
      %s33 = sphi 0, %s37
      %p34 = scmp.ge.s32.totalorder %s33, 4
      %s43 = sphi 0, %s45
      %s46 = sphi 0, %s43
      %s47 = sphi 0, %s46
      %s63 = sphi 0, %s47
      %s67 = sphi 0, %s67
      %s69 = sphi 0, %s67
      %s70 = sphi 0, %s69
      %s84 = sphi 0, %s70
      %s88 = sphi 0, %s88
      %s90 = sphi 0, %s88
      %s91 = sphi 0, %s90
      %s105 = sphi 0, %s91
      %s109 = sphi 0, %s109
      %s111 = sphi 0, %s109
      %s112 = sphi 0, %s111
      %s126 = sphi 0, %s112
      %s130 = sphi 0, %s130
      %s132 = sphi 0, %s130
      %s133 = sphi 0, %s132
      %s147 = sphi 0, %s133
      %s151 = sphi 0, %s151
      %s153 = sphi 0, %s151
      %s154 = sphi 0, %s153
      %s168 = sphi 0, %s154
      %s172 = sphi 0, %s172
      %s174 = sphi 0, %s172
      %s175 = sphi 0, %s174
      %s189 = sphi 0, %s175
      %s193 = sphi 0, %s193
      %s195 = sphi 0, %s193
      %s196 = sphi 0, %s195
      %s210 = sphi 0, %s196
      %s214 = sphi 0, %s214
      %s216 = sphi 0, %s214
      %s217 = sphi 0, %s216
      %s231 = sphi 0, %s217
      %s235 = sphi 0, %s235
      %s237 = sphi 0, %s235
      %s238 = sphi 0, %s237
      %s252 = sphi 0, %s238
      %s256 = sphi 0, %s256
      %s258 = sphi 0, %s256
      %s259 = sphi 0, %s258
      %s273 = sphi 0, %s259
      %s277 = sphi 0, %s277
      %s279 = sphi 0, %s277
      %s280 = sphi 0, %s279
      %s294 = sphi 0, %s280
      %s298 = sphi 0, %s298
      %s300 = sphi 0, %s298
      %s301 = sphi 0, %s300
      %s315 = sphi 0, %s301
      %s319 = sphi 0, %s319
      %s321 = sphi 0, %s319
      %s322 = sphi 0, %s321
      %s336 = sphi 0, %s322
      %s340 = sphi 0, %s340
      %s342 = sphi 0, %s340
      %s343 = sphi 0, %s342
      %s357 = sphi 0, %s343
      %s361 = sphi 0, %s361
      %s363 = sphi 0, %s361
      %s364 = sphi 0, %s363
      %s378 = sphi 0, %s364
      %s382 = sphi 0, %s382
      %s384 = sphi 0, %s382
      %s385 = sphi 0, %s384
      %s399 = sphi 0, %s385
      %s403 = sphi 0, %s403
      %s405 = sphi 0, %s403
      %s406 = sphi 0, %s405
      %s420 = sphi 0, %s406
      %s424 = sphi 0, %s424
      %s426 = sphi 0, %s424
      %s427 = sphi 0, %s426
      %s441 = sphi 0, %s427
      %s445 = sphi 0, %s445
      %s447 = sphi 0, %s445
      %s448 = sphi 0, %s447
      %s462 = sphi 0, %s448
      %s466 = sphi 0, %s466
      %s468 = sphi 0, %s466
      %s469 = sphi 0, %s468
      %s483 = sphi 0, %s469
      %s487 = sphi 0, %s487
      %s489 = sphi 0, %s487
      %s490 = sphi 0, %s489
      %s504 = sphi 0, %s490
      %s508 = sphi 0, %s508
      %s510 = sphi 0, %s508
      %s511 = sphi 0, %s510
      %s525 = sphi 0, %s511
      %s529 = sphi 0, %s529
      %s531 = sphi 0, %s529
      %s532 = sphi 0, %s531
      %s546 = sphi 0, %s532
      %s552 = sphi 0, %s554
      %s555 = sphi 0, %s552
      %s556 = sphi 0, %s555
      %s572 = sphi 0, %s556
    $region4: #{vit_mushroom_forward.1} parent=1 // loop_header_branch
      %36 = sbr.rel (%p34) target = $region8
    $region5: #{vit_mushroom_forward.1} parent=1 // loop_body
      %s38 = ssub.s32 %s33, 1
      %s39 = ssub.s32 %s33, 2
      %s40 = sadd.s32 %s33, 1
      %s41 = ssub.s32 %s33, %s40
      %p42 = scmp.eq.s32.totalorder %s41, 0
      %s44 = sadd.s32 %s43, 1
      %s45 = scalar_select %p42, %s43, %s44
      %p48 = pneg %p42
      %p49 = scmp.eq.s32.totalorder %s33, 1
      %p50 = por %p48, %p49
      %p51 = scmp.ne.s32.totalorder %s43, %s46
      %p52 = scmp.eq.s32.totalorder %s33, 0
      %p53 = por %p51, %p52
      %p54 = scmp.ne.s32.totalorder %s43, %s46
      %p55 = scmp.eq.s32.totalorder %s38, 1
      %p56 = por %p54, %p55
      %p57 = scmp.ne.s32.totalorder %s46, %s47
      %p58 = scmp.eq.s32.totalorder %s38, 0
      %p59 = por %p57, %p58
      %p60 = scmp.ne.s32.totalorder %s46, %s47
      %p61 = scmp.eq.s32.totalorder %s39, 1
      %p62 = por %p60, %p61
      %p64 = scmp.ne.s32.totalorder %s47, %s63
      %p65 = scmp.eq.s32.totalorder %s39, 0
      %p66 = por %p64, %p65
      %s68 = sadd.s32 %s67, 1
      %p71 = scmp.eq.s32.totalorder %s33, 1
      %p72 = scmp.ne.s32.totalorder %s67, %s69
      %p73 = scmp.eq.s32.totalorder %s33, 0
      %p74 = por %p72, %p73
      %p75 = scmp.ne.s32.totalorder %s67, %s69
      %p76 = scmp.eq.s32.totalorder %s38, 1
      %p77 = por %p75, %p76
      %p78 = scmp.ne.s32.totalorder %s69, %s70
      %p79 = scmp.eq.s32.totalorder %s38, 0
      %p80 = por %p78, %p79
      %p81 = scmp.ne.s32.totalorder %s69, %s70
      %p82 = scmp.eq.s32.totalorder %s39, 1
      %p83 = por %p81, %p82
      %p85 = scmp.ne.s32.totalorder %s70, %s84
      %p86 = scmp.eq.s32.totalorder %s39, 0
      %p87 = por %p85, %p86
      %s89 = sadd.s32 %s88, 1
      %p92 = scmp.eq.s32.totalorder %s33, 1
      %p93 = scmp.ne.s32.totalorder %s88, %s90
      %p94 = scmp.eq.s32.totalorder %s33, 0
      %p95 = por %p93, %p94
      %p96 = scmp.ne.s32.totalorder %s88, %s90
      %p97 = scmp.eq.s32.totalorder %s38, 1
      %p98 = por %p96, %p97
      %p99 = scmp.ne.s32.totalorder %s90, %s91
      %p100 = scmp.eq.s32.totalorder %s38, 0
      %p101 = por %p99, %p100
      %p102 = scmp.ne.s32.totalorder %s90, %s91
      %p103 = scmp.eq.s32.totalorder %s39, 1
      %p104 = por %p102, %p103
      %p106 = scmp.ne.s32.totalorder %s91, %s105
      %p107 = scmp.eq.s32.totalorder %s39, 0
      %p108 = por %p106, %p107
      %s110 = sadd.s32 %s109, 1
      %p113 = scmp.eq.s32.totalorder %s33, 1
      %p114 = scmp.ne.s32.totalorder %s109, %s111
      %p115 = scmp.eq.s32.totalorder %s33, 0
      %p116 = por %p114, %p115
      %p117 = scmp.ne.s32.totalorder %s109, %s111
      %p118 = scmp.eq.s32.totalorder %s38, 1
      %p119 = por %p117, %p118
      %p120 = scmp.ne.s32.totalorder %s111, %s112
      %p121 = scmp.eq.s32.totalorder %s38, 0
      %p122 = por %p120, %p121
      %p123 = scmp.ne.s32.totalorder %s111, %s112
      %p124 = scmp.eq.s32.totalorder %s39, 1
      %p125 = por %p123, %p124
      %p127 = scmp.ne.s32.totalorder %s112, %s126
      %p128 = scmp.eq.s32.totalorder %s39, 0
      %p129 = por %p127, %p128
      %s131 = sadd.s32 %s130, 1
      %p134 = scmp.eq.s32.totalorder %s33, 1
      %p135 = scmp.ne.s32.totalorder %s130, %s132
      %p136 = scmp.eq.s32.totalorder %s33, 0
      %p137 = por %p135, %p136
      %p138 = scmp.ne.s32.totalorder %s130, %s132
      %p139 = scmp.eq.s32.totalorder %s38, 1
      %p140 = por %p138, %p139
      %p141 = scmp.ne.s32.totalorder %s132, %s133
      %p142 = scmp.eq.s32.totalorder %s38, 0
      %p143 = por %p141, %p142
      %p144 = scmp.ne.s32.totalorder %s132, %s133
      %p145 = scmp.eq.s32.totalorder %s39, 1
      %p146 = por %p144, %p145
      %p148 = scmp.ne.s32.totalorder %s133, %s147
      %p149 = scmp.eq.s32.totalorder %s39, 0
      %p150 = por %p148, %p149
      %s152 = sadd.s32 %s151, 1
      %p155 = scmp.eq.s32.totalorder %s33, 1
      %p156 = scmp.ne.s32.totalorder %s151, %s153
      %p157 = scmp.eq.s32.totalorder %s33, 0
      %p158 = por %p156, %p157
      %p159 = scmp.ne.s32.totalorder %s151, %s153
      %p160 = scmp.eq.s32.totalorder %s38, 1
      %p161 = por %p159, %p160
      %p162 = scmp.ne.s32.totalorder %s153, %s154
      %p163 = scmp.eq.s32.totalorder %s38, 0
      %p164 = por %p162, %p163
      %p165 = scmp.ne.s32.totalorder %s153, %s154
      %p166 = scmp.eq.s32.totalorder %s39, 1
      %p167 = por %p165, %p166
      %p169 = scmp.ne.s32.totalorder %s154, %s168
      %p170 = scmp.eq.s32.totalorder %s39, 0
      %p171 = por %p169, %p170
      %s173 = sadd.s32 %s172, 1
      %p176 = scmp.eq.s32.totalorder %s33, 1
      %p177 = scmp.ne.s32.totalorder %s172, %s174
      %p178 = scmp.eq.s32.totalorder %s33, 0
      %p179 = por %p177, %p178
      %p180 = scmp.ne.s32.totalorder %s172, %s174
      %p181 = scmp.eq.s32.totalorder %s38, 1
      %p182 = por %p180, %p181
      %p183 = scmp.ne.s32.totalorder %s174, %s175
      %p184 = scmp.eq.s32.totalorder %s38, 0
      %p185 = por %p183, %p184
      %p186 = scmp.ne.s32.totalorder %s174, %s175
      %p187 = scmp.eq.s32.totalorder %s39, 1
      %p188 = por %p186, %p187
      %p190 = scmp.ne.s32.totalorder %s175, %s189
      %p191 = scmp.eq.s32.totalorder %s39, 0
      %p192 = por %p190, %p191
      %s194 = sadd.s32 %s193, 1
      %p197 = scmp.eq.s32.totalorder %s33, 1
      %p198 = scmp.ne.s32.totalorder %s193, %s195
      %p199 = scmp.eq.s32.totalorder %s33, 0
      %p200 = por %p198, %p199
      %p201 = scmp.ne.s32.totalorder %s193, %s195
      %p202 = scmp.eq.s32.totalorder %s38, 1
      %p203 = por %p201, %p202
      %p204 = scmp.ne.s32.totalorder %s195, %s196
      %p205 = scmp.eq.s32.totalorder %s38, 0
      %p206 = por %p204, %p205
      %p207 = scmp.ne.s32.totalorder %s195, %s196
      %p208 = scmp.eq.s32.totalorder %s39, 1
      %p209 = por %p207, %p208
      %p211 = scmp.ne.s32.totalorder %s196, %s210
      %p212 = scmp.eq.s32.totalorder %s39, 0
      %p213 = por %p211, %p212
      %s215 = sadd.s32 %s214, 1
      %p218 = scmp.eq.s32.totalorder %s33, 1
      %p219 = scmp.ne.s32.totalorder %s214, %s216
      %p220 = scmp.eq.s32.totalorder %s33, 0
      %p221 = por %p219, %p220
      %p222 = scmp.ne.s32.totalorder %s214, %s216
      %p223 = scmp.eq.s32.totalorder %s38, 1
      %p224 = por %p222, %p223
      %p225 = scmp.ne.s32.totalorder %s216, %s217
      %p226 = scmp.eq.s32.totalorder %s38, 0
      %p227 = por %p225, %p226
      %p228 = scmp.ne.s32.totalorder %s216, %s217
      %p229 = scmp.eq.s32.totalorder %s39, 1
      %p230 = por %p228, %p229
      %p232 = scmp.ne.s32.totalorder %s217, %s231
      %p233 = scmp.eq.s32.totalorder %s39, 0
      %p234 = por %p232, %p233
      %s236 = sadd.s32 %s235, 1
      %p239 = scmp.eq.s32.totalorder %s33, 1
      %p240 = scmp.ne.s32.totalorder %s235, %s237
      %p241 = scmp.eq.s32.totalorder %s33, 0
      %p242 = por %p240, %p241
      %p243 = scmp.ne.s32.totalorder %s235, %s237
      %p244 = scmp.eq.s32.totalorder %s38, 1
      %p245 = por %p243, %p244
      %p246 = scmp.ne.s32.totalorder %s237, %s238
      %p247 = scmp.eq.s32.totalorder %s38, 0
      %p248 = por %p246, %p247
      %p249 = scmp.ne.s32.totalorder %s237, %s238
      %p250 = scmp.eq.s32.totalorder %s39, 1
      %p251 = por %p249, %p250
      %p253 = scmp.ne.s32.totalorder %s238, %s252
      %p254 = scmp.eq.s32.totalorder %s39, 0
      %p255 = por %p253, %p254
      %s257 = sadd.s32 %s256, 1
      %p260 = scmp.eq.s32.totalorder %s33, 1
      %p261 = scmp.ne.s32.totalorder %s256, %s258
      %p262 = scmp.eq.s32.totalorder %s33, 0
      %p263 = por %p261, %p262
      %p264 = scmp.ne.s32.totalorder %s256, %s258
      %p265 = scmp.eq.s32.totalorder %s38, 1
      %p266 = por %p264, %p265
      %p267 = scmp.ne.s32.totalorder %s258, %s259
      %p268 = scmp.eq.s32.totalorder %s38, 0
      %p269 = por %p267, %p268
      %p270 = scmp.ne.s32.totalorder %s258, %s259
      %p271 = scmp.eq.s32.totalorder %s39, 1
      %p272 = por %p270, %p271
      %p274 = scmp.ne.s32.totalorder %s259, %s273
      %p275 = scmp.eq.s32.totalorder %s39, 0
      %p276 = por %p274, %p275
      %s278 = sadd.s32 %s277, 1
      %p281 = scmp.eq.s32.totalorder %s33, 1
      %p282 = scmp.ne.s32.totalorder %s277, %s279
      %p283 = scmp.eq.s32.totalorder %s33, 0
      %p284 = por %p282, %p283
      %p285 = scmp.ne.s32.totalorder %s277, %s279
      %p286 = scmp.eq.s32.totalorder %s38, 1
      %p287 = por %p285, %p286
      %p288 = scmp.ne.s32.totalorder %s279, %s280
      %p289 = scmp.eq.s32.totalorder %s38, 0
      %p290 = por %p288, %p289
      %p291 = scmp.ne.s32.totalorder %s279, %s280
      %p292 = scmp.eq.s32.totalorder %s39, 1
      %p293 = por %p291, %p292
      %p295 = scmp.ne.s32.totalorder %s280, %s294
      %p296 = scmp.eq.s32.totalorder %s39, 0
      %p297 = por %p295, %p296
      %s299 = sadd.s32 %s298, 1
      %p302 = scmp.eq.s32.totalorder %s33, 1
      %p303 = scmp.ne.s32.totalorder %s298, %s300
      %p304 = scmp.eq.s32.totalorder %s33, 0
      %p305 = por %p303, %p304
      %p306 = scmp.ne.s32.totalorder %s298, %s300
      %p307 = scmp.eq.s32.totalorder %s38, 1
      %p308 = por %p306, %p307
      %p309 = scmp.ne.s32.totalorder %s300, %s301
      %p310 = scmp.eq.s32.totalorder %s38, 0
      %p311 = por %p309, %p310
      %p312 = scmp.ne.s32.totalorder %s300, %s301
      %p313 = scmp.eq.s32.totalorder %s39, 1
      %p314 = por %p312, %p313
      %p316 = scmp.ne.s32.totalorder %s301, %s315
      %p317 = scmp.eq.s32.totalorder %s39, 0
      %p318 = por %p316, %p317
      %s320 = sadd.s32 %s319, 1
      %p323 = scmp.eq.s32.totalorder %s33, 1
      %p324 = scmp.ne.s32.totalorder %s319, %s321
      %p325 = scmp.eq.s32.totalorder %s33, 0
      %p326 = por %p324, %p325
      %p327 = scmp.ne.s32.totalorder %s319, %s321
      %p328 = scmp.eq.s32.totalorder %s38, 1
      %p329 = por %p327, %p328
      %p330 = scmp.ne.s32.totalorder %s321, %s322
      %p331 = scmp.eq.s32.totalorder %s38, 0
      %p332 = por %p330, %p331
      %p333 = scmp.ne.s32.totalorder %s321, %s322
      %p334 = scmp.eq.s32.totalorder %s39, 1
      %p335 = por %p333, %p334
      %p337 = scmp.ne.s32.totalorder %s322, %s336
      %p338 = scmp.eq.s32.totalorder %s39, 0
      %p339 = por %p337, %p338
      %s341 = sadd.s32 %s340, 1
      %p344 = scmp.eq.s32.totalorder %s33, 1
      %p345 = scmp.ne.s32.totalorder %s340, %s342
      %p346 = scmp.eq.s32.totalorder %s33, 0
      %p347 = por %p345, %p346
      %p348 = scmp.ne.s32.totalorder %s340, %s342
      %p349 = scmp.eq.s32.totalorder %s38, 1
      %p350 = por %p348, %p349
      %p351 = scmp.ne.s32.totalorder %s342, %s343
      %p352 = scmp.eq.s32.totalorder %s38, 0
      %p353 = por %p351, %p352
      %p354 = scmp.ne.s32.totalorder %s342, %s343
      %p355 = scmp.eq.s32.totalorder %s39, 1
      %p356 = por %p354, %p355
      %p358 = scmp.ne.s32.totalorder %s343, %s357
      %p359 = scmp.eq.s32.totalorder %s39, 0
      %p360 = por %p358, %p359
      %s362 = sadd.s32 %s361, 1
      %p365 = scmp.eq.s32.totalorder %s33, 1
      %p366 = scmp.ne.s32.totalorder %s361, %s363
      %p367 = scmp.eq.s32.totalorder %s33, 0
      %p368 = por %p366, %p367
      %p369 = scmp.ne.s32.totalorder %s361, %s363
      %p370 = scmp.eq.s32.totalorder %s38, 1
      %p371 = por %p369, %p370
      %p372 = scmp.ne.s32.totalorder %s363, %s364
      %p373 = scmp.eq.s32.totalorder %s38, 0
      %p374 = por %p372, %p373
      %p375 = scmp.ne.s32.totalorder %s363, %s364
      %p376 = scmp.eq.s32.totalorder %s39, 1
      %p377 = por %p375, %p376
      %p379 = scmp.ne.s32.totalorder %s364, %s378
      %p380 = scmp.eq.s32.totalorder %s39, 0
      %p381 = por %p379, %p380
      %s383 = sadd.s32 %s382, 1
      %p386 = scmp.eq.s32.totalorder %s33, 1
      %p387 = scmp.ne.s32.totalorder %s382, %s384
      %p388 = scmp.eq.s32.totalorder %s33, 0
      %p389 = por %p387, %p388
      %p390 = scmp.ne.s32.totalorder %s382, %s384
      %p391 = scmp.eq.s32.totalorder %s38, 1
      %p392 = por %p390, %p391
      %p393 = scmp.ne.s32.totalorder %s384, %s385
      %p394 = scmp.eq.s32.totalorder %s38, 0
      %p395 = por %p393, %p394
      %p396 = scmp.ne.s32.totalorder %s384, %s385
      %p397 = scmp.eq.s32.totalorder %s39, 1
      %p398 = por %p396, %p397
      %p400 = scmp.ne.s32.totalorder %s385, %s399
      %p401 = scmp.eq.s32.totalorder %s39, 0
      %p402 = por %p400, %p401
      %s404 = sadd.s32 %s403, 1
      %p407 = scmp.eq.s32.totalorder %s33, 1
      %p408 = scmp.ne.s32.totalorder %s403, %s405
      %p409 = scmp.eq.s32.totalorder %s33, 0
      %p410 = por %p408, %p409
      %p411 = scmp.ne.s32.totalorder %s403, %s405
      %p412 = scmp.eq.s32.totalorder %s38, 1
      %p413 = por %p411, %p412
      %p414 = scmp.ne.s32.totalorder %s405, %s406
      %p415 = scmp.eq.s32.totalorder %s38, 0
      %p416 = por %p414, %p415
      %p417 = scmp.ne.s32.totalorder %s405, %s406
      %p418 = scmp.eq.s32.totalorder %s39, 1
      %p419 = por %p417, %p418
      %p421 = scmp.ne.s32.totalorder %s406, %s420
      %p422 = scmp.eq.s32.totalorder %s39, 0
      %p423 = por %p421, %p422
      %s425 = sadd.s32 %s424, 1
      %p428 = scmp.eq.s32.totalorder %s33, 1
      %p429 = scmp.ne.s32.totalorder %s424, %s426
      %p430 = scmp.eq.s32.totalorder %s33, 0
      %p431 = por %p429, %p430
      %p432 = scmp.ne.s32.totalorder %s424, %s426
      %p433 = scmp.eq.s32.totalorder %s38, 1
      %p434 = por %p432, %p433
      %p435 = scmp.ne.s32.totalorder %s426, %s427
      %p436 = scmp.eq.s32.totalorder %s38, 0
      %p437 = por %p435, %p436
      %p438 = scmp.ne.s32.totalorder %s426, %s427
      %p439 = scmp.eq.s32.totalorder %s39, 1
      %p440 = por %p438, %p439
      %p442 = scmp.ne.s32.totalorder %s427, %s441
      %p443 = scmp.eq.s32.totalorder %s39, 0
      %p444 = por %p442, %p443
      %s446 = sadd.s32 %s445, 1
      %p449 = scmp.eq.s32.totalorder %s33, 1
      %p450 = scmp.ne.s32.totalorder %s445, %s447
      %p451 = scmp.eq.s32.totalorder %s33, 0
      %p452 = por %p450, %p451
      %p453 = scmp.ne.s32.totalorder %s445, %s447
      %p454 = scmp.eq.s32.totalorder %s38, 1
      %p455 = por %p453, %p454
      %p456 = scmp.ne.s32.totalorder %s447, %s448
      %p457 = scmp.eq.s32.totalorder %s38, 0
      %p458 = por %p456, %p457
      %p459 = scmp.ne.s32.totalorder %s447, %s448
      %p460 = scmp.eq.s32.totalorder %s39, 1
      %p461 = por %p459, %p460
      %p463 = scmp.ne.s32.totalorder %s448, %s462
      %p464 = scmp.eq.s32.totalorder %s39, 0
      %p465 = por %p463, %p464
      %s467 = sadd.s32 %s466, 1
      %p470 = scmp.eq.s32.totalorder %s33, 1
      %p471 = scmp.ne.s32.totalorder %s466, %s468
      %p472 = scmp.eq.s32.totalorder %s33, 0
      %p473 = por %p471, %p472
      %p474 = scmp.ne.s32.totalorder %s466, %s468
      %p475 = scmp.eq.s32.totalorder %s38, 1
      %p476 = por %p474, %p475
      %p477 = scmp.ne.s32.totalorder %s468, %s469
      %p478 = scmp.eq.s32.totalorder %s38, 0
      %p479 = por %p477, %p478
      %p480 = scmp.ne.s32.totalorder %s468, %s469
      %p481 = scmp.eq.s32.totalorder %s39, 1
      %p482 = por %p480, %p481
      %p484 = scmp.ne.s32.totalorder %s469, %s483
      %p485 = scmp.eq.s32.totalorder %s39, 0
      %p486 = por %p484, %p485
      %s488 = sadd.s32 %s487, 1
      %p491 = scmp.eq.s32.totalorder %s33, 1
      %p492 = scmp.ne.s32.totalorder %s487, %s489
      %p493 = scmp.eq.s32.totalorder %s33, 0
      %p494 = por %p492, %p493
      %p495 = scmp.ne.s32.totalorder %s487, %s489
      %p496 = scmp.eq.s32.totalorder %s38, 1
      %p497 = por %p495, %p496
      %p498 = scmp.ne.s32.totalorder %s489, %s490
      %p499 = scmp.eq.s32.totalorder %s38, 0
      %p500 = por %p498, %p499
      %p501 = scmp.ne.s32.totalorder %s489, %s490
      %p502 = scmp.eq.s32.totalorder %s39, 1
      %p503 = por %p501, %p502
      %p505 = scmp.ne.s32.totalorder %s490, %s504
      %p506 = scmp.eq.s32.totalorder %s39, 0
      %p507 = por %p505, %p506
      %s509 = sadd.s32 %s508, 1
      %p512 = scmp.eq.s32.totalorder %s33, 1
      %p513 = scmp.ne.s32.totalorder %s508, %s510
      %p514 = scmp.eq.s32.totalorder %s33, 0
      %p515 = por %p513, %p514
      %p516 = scmp.ne.s32.totalorder %s508, %s510
      %p517 = scmp.eq.s32.totalorder %s38, 1
      %p518 = por %p516, %p517
      %p519 = scmp.ne.s32.totalorder %s510, %s511
      %p520 = scmp.eq.s32.totalorder %s38, 0
      %p521 = por %p519, %p520
      %p522 = scmp.ne.s32.totalorder %s510, %s511
      %p523 = scmp.eq.s32.totalorder %s39, 1
      %p524 = por %p522, %p523
      %p526 = scmp.ne.s32.totalorder %s511, %s525
      %p527 = scmp.eq.s32.totalorder %s39, 0
      %p528 = por %p526, %p527
      %s530 = sadd.s32 %s529, 1
      %p533 = scmp.eq.s32.totalorder %s33, 1
      %p534 = scmp.ne.s32.totalorder %s529, %s531
      %p535 = scmp.eq.s32.totalorder %s33, 0
      %p536 = por %p534, %p535
      %p537 = scmp.ne.s32.totalorder %s529, %s531
      %p538 = scmp.eq.s32.totalorder %s38, 1
      %p539 = por %p537, %p538
      %p540 = scmp.ne.s32.totalorder %s531, %s532
      %p541 = scmp.eq.s32.totalorder %s38, 0
      %p542 = por %p540, %p541
      %p543 = scmp.ne.s32.totalorder %s531, %s532
      %p544 = scmp.eq.s32.totalorder %s39, 1
      %p545 = por %p543, %p544
      %p547 = scmp.ne.s32.totalorder %s532, %s546
      %p548 = scmp.eq.s32.totalorder %s39, 0
      %p549 = por %p547, %p548
      %s550 = ssub.s32 %s33, %s40
      %p551 = scmp.eq.s32.totalorder %s550, 0
      %s553 = sadd.s32 %s552, 1
      %s554 = scalar_select %p551, %s552, %s553
      %p557 = pneg %p551
      %p558 = scmp.eq.s32.totalorder %s33, 1
      %p559 = por %p557, %p558
      %p560 = scmp.ne.s32.totalorder %s552, %s555
      %p561 = scmp.eq.s32.totalorder %s33, 0
      %p562 = por %p560, %p561
      %p563 = scmp.ne.s32.totalorder %s552, %s555
      %p564 = scmp.eq.s32.totalorder %s38, 1
      %p565 = por %p563, %p564
      %p566 = scmp.ne.s32.totalorder %s555, %s556
      %p567 = scmp.eq.s32.totalorder %s38, 0
      %p568 = por %p566, %p567
      %p569 = scmp.ne.s32.totalorder %s555, %s556
      %p570 = scmp.eq.s32.totalorder %s39, 1
      %p571 = por %p569, %p570
      %p573 = scmp.ne.s32.totalorder %s556, %s572
      %p574 = scmp.eq.s32.totalorder %s39, 0
      %p575 = por %p573, %p574
      %p576 = scmp.le.s32.totalorder 1, %s33
      %p577 = scmp.lt.s32.totalorder %s33, 3
      %p578 = pnand %p576, %p577
      %p579 = pneg %p578
      // Predicated region
      $region9: #{vit_mushroom_forward.1} parent=5 // pred_check
        _
      $region10: #{vit_mushroom_forward.1} parent=5 // pred_check_branch
        %581 = sbr.rel (%p578) target = $region12
      $region11: #{vit_mushroom_forward.1} parent=5 // pred_region
        %s582 = ssub.s32 %s33, 1
        // Predicated region
        $region13: #{vit_mushroom_forward.1} parent=11 // pred_check
          %p583 = pneg %p80
        $region14: #{vit_mushroom_forward.1} parent=11 // pred_check_branch
          %585 = sbr.rel (%p583) target = $region16
        $region15: #{vit_mushroom_forward.1} parent=11 // pred_region
          _
        $region16: #{vit_mushroom_forward.1} parent=11 // pred_fallthru
          _
        // Predicated region
        $region17: #{vit_mushroom_forward.1} parent=11 // pred_check
          %p586 = pneg %p101
        $region18: #{vit_mushroom_forward.1} parent=11 // pred_check_branch
          %588 = sbr.rel (%p586) target = $region20
        $region19: #{vit_mushroom_forward.1} parent=11 // pred_region
          _
        $region20: #{vit_mushroom_forward.1} parent=11 // pred_fallthru
          _
        // Predicated region
        $region21: #{vit_mushroom_forward.1} parent=11 // pred_check
          %p589 = pneg %p122
        $region22: #{vit_mushroom_forward.1} parent=11 // pred_check_branch
          %591 = sbr.rel (%p589) target = $region24
        $region23: #{vit_mushroom_forward.1} parent=11 // pred_region
          _
        $region24: #{vit_mushroom_forward.1} parent=11 // pred_fallthru
          _
        // Predicated region
        $region25: #{vit_mushroom_forward.1} parent=11 // pred_check
          %p592 = pneg %p143
        $region26: #{vit_mushroom_forward.1} parent=11 // pred_check_branch
          %594 = sbr.rel (%p592) target = $region28
        $region27: #{vit_mushroom_forward.1} parent=11 // pred_region
          _
        $region28: #{vit_mushroom_forward.1} parent=11 // pred_fallthru
          _
        // Predicated region
        $region29: #{vit_mushroom_forward.1} parent=11 // pred_check
          %p595 = pneg %p164
        $region30: #{vit_mushroom_forward.1} parent=11 // pred_check_branch
          %597 = sbr.rel (%p595) target = $region32
        $region31: #{vit_mushroom_forward.1} parent=11 // pred_region
          _
        $region32: #{vit_mushroom_forward.1} parent=11 // pred_fallthru
          _
        // Predicated region
        $region33: #{vit_mushroom_forward.1} parent=11 // pred_check
          %p598 = pneg %p185
        $region34: #{vit_mushroom_forward.1} parent=11 // pred_check_branch
          %600 = sbr.rel (%p598) target = $region36
        $region35: #{vit_mushroom_forward.1} parent=11 // pred_region
          _
        $region36: #{vit_mushroom_forward.1} parent=11 // pred_fallthru
          _
        // Predicated region
        $region37: #{vit_mushroom_forward.1} parent=11 // pred_check
          %p601 = pneg %p206
        $region38: #{vit_mushroom_forward.1} parent=11 // pred_check_branch
          %603 = sbr.rel (%p601) target = $region40
        $region39: #{vit_mushroom_forward.1} parent=11 // pred_region
          _
        $region40: #{vit_mushroom_forward.1} parent=11 // pred_fallthru
          _
        // Predicated region
        $region41: #{vit_mushroom_forward.1} parent=11 // pred_check
          %p604 = pneg %p227
        $region42: #{vit_mushroom_forward.1} parent=11 // pred_check_branch
          %606 = sbr.rel (%p604) target = $region44
        $region43: #{vit_mushroom_forward.1} parent=11 // pred_region
          _
        $region44: #{vit_mushroom_forward.1} parent=11 // pred_fallthru
          _
        // Predicated region
        $region45: #{vit_mushroom_forward.1} parent=11 // pred_check
          %p607 = pneg %p248
        $region46: #{vit_mushroom_forward.1} parent=11 // pred_check_branch
          %609 = sbr.rel (%p607) target = $region48
        $region47: #{vit_mushroom_forward.1} parent=11 // pred_region
          _
        $region48: #{vit_mushroom_forward.1} parent=11 // pred_fallthru
          _
        // Predicated region
        $region49: #{vit_mushroom_forward.1} parent=11 // pred_check
          %p610 = pneg %p269
        $region50: #{vit_mushroom_forward.1} parent=11 // pred_check_branch
          %612 = sbr.rel (%p610) target = $region52
        $region51: #{vit_mushroom_forward.1} parent=11 // pred_region
          _
        $region52: #{vit_mushroom_forward.1} parent=11 // pred_fallthru
          _
        // Predicated region
        $region53: #{vit_mushroom_forward.1} parent=11 // pred_check
          %p613 = pneg %p290
        $region54: #{vit_mushroom_forward.1} parent=11 // pred_check_branch
          %615 = sbr.rel (%p613) target = $region56
        $region55: #{vit_mushroom_forward.1} parent=11 // pred_region
          _
        $region56: #{vit_mushroom_forward.1} parent=11 // pred_fallthru
          _
        // Predicated region
        $region57: #{vit_mushroom_forward.1} parent=11 // pred_check
          %p616 = pneg %p311
        $region58: #{vit_mushroom_forward.1} parent=11 // pred_check_branch
          %618 = sbr.rel (%p616) target = $region60
        $region59: #{vit_mushroom_forward.1} parent=11 // pred_region
          _
        $region60: #{vit_mushroom_forward.1} parent=11 // pred_fallthru
          _
        // Predicated region
        $region61: #{vit_mushroom_forward.1} parent=11 // pred_check
          %p619 = pneg %p332
        $region62: #{vit_mushroom_forward.1} parent=11 // pred_check_branch
          %621 = sbr.rel (%p619) target = $region64
        $region63: #{vit_mushroom_forward.1} parent=11 // pred_region
          _
        $region64: #{vit_mushroom_forward.1} parent=11 // pred_fallthru
          _
        // Predicated region
        $region65: #{vit_mushroom_forward.1} parent=11 // pred_check
          %p622 = pneg %p353
        $region66: #{vit_mushroom_forward.1} parent=11 // pred_check_branch
          %624 = sbr.rel (%p622) target = $region68
        $region67: #{vit_mushroom_forward.1} parent=11 // pred_region
          _
        $region68: #{vit_mushroom_forward.1} parent=11 // pred_fallthru
          _
        // Predicated region
        $region69: #{vit_mushroom_forward.1} parent=11 // pred_check
          %p625 = pneg %p374
        $region70: #{vit_mushroom_forward.1} parent=11 // pred_check_branch
          %627 = sbr.rel (%p625) target = $region72
        $region71: #{vit_mushroom_forward.1} parent=11 // pred_region
          _
        $region72: #{vit_mushroom_forward.1} parent=11 // pred_fallthru
          _
        // Predicated region
        $region73: #{vit_mushroom_forward.1} parent=11 // pred_check
          %p628 = pneg %p395
        $region74: #{vit_mushroom_forward.1} parent=11 // pred_check_branch
          %630 = sbr.rel (%p628) target = $region76
        $region75: #{vit_mushroom_forward.1} parent=11 // pred_region
          _
        $region76: #{vit_mushroom_forward.1} parent=11 // pred_fallthru
          _
        // Predicated region
        $region77: #{vit_mushroom_forward.1} parent=11 // pred_check
          %p631 = pneg %p416
        $region78: #{vit_mushroom_forward.1} parent=11 // pred_check_branch
          %633 = sbr.rel (%p631) target = $region80
        $region79: #{vit_mushroom_forward.1} parent=11 // pred_region
          _
        $region80: #{vit_mushroom_forward.1} parent=11 // pred_fallthru
          _
        // Predicated region
        $region81: #{vit_mushroom_forward.1} parent=11 // pred_check
          %p634 = pneg %p437
        $region82: #{vit_mushroom_forward.1} parent=11 // pred_check_branch
          %636 = sbr.rel (%p634) target = $region84
        $region83: #{vit_mushroom_forward.1} parent=11 // pred_region
          _
        $region84: #{vit_mushroom_forward.1} parent=11 // pred_fallthru
          _
        // Predicated region
        $region85: #{vit_mushroom_forward.1} parent=11 // pred_check
          %p637 = pneg %p458
        $region86: #{vit_mushroom_forward.1} parent=11 // pred_check_branch
          %639 = sbr.rel (%p637) target = $region88
        $region87: #{vit_mushroom_forward.1} parent=11 // pred_region
          _
        $region88: #{vit_mushroom_forward.1} parent=11 // pred_fallthru
          _
        // Predicated region
        $region89: #{vit_mushroom_forward.1} parent=11 // pred_check
          %p640 = pneg %p479
        $region90: #{vit_mushroom_forward.1} parent=11 // pred_check_branch
          %642 = sbr.rel (%p640) target = $region92
        $region91: #{vit_mushroom_forward.1} parent=11 // pred_region
          _
        $region92: #{vit_mushroom_forward.1} parent=11 // pred_fallthru
          _
        // Predicated region
        $region93: #{vit_mushroom_forward.1} parent=11 // pred_check
          %p643 = pneg %p500
        $region94: #{vit_mushroom_forward.1} parent=11 // pred_check_branch
          %645 = sbr.rel (%p643) target = $region96
        $region95: #{vit_mushroom_forward.1} parent=11 // pred_region
          _
        $region96: #{vit_mushroom_forward.1} parent=11 // pred_fallthru
          _
        // Predicated region
        $region97: #{vit_mushroom_forward.1} parent=11 // pred_check
          %p646 = pneg %p521
        $region98: #{vit_mushroom_forward.1} parent=11 // pred_check_branch
          %648 = sbr.rel (%p646) target = $region100
        $region99: #{vit_mushroom_forward.1} parent=11 // pred_region
          _
        $region100: #{vit_mushroom_forward.1} parent=11 // pred_fallthru
          _
        // Predicated region
        $region101: #{vit_mushroom_forward.1} parent=11 // pred_check
          %p649 = pneg %p542
        $region102: #{vit_mushroom_forward.1} parent=11 // pred_check_branch
          %651 = sbr.rel (%p649) target = $region104
        $region103: #{vit_mushroom_forward.1} parent=11 // pred_region
          _
        $region104: #{vit_mushroom_forward.1} parent=11 // pred_fallthru
          _
      $region12: #{vit_mushroom_forward.1} parent=5 // pred_fallthru
        _
      %p652 = scmp.lt.s32.totalorder %s33, 2
      // Predicated region
      $region105: #{vit_mushroom_forward.1} parent=5 // pred_check
        %p653 = pneg %p652
      $region106: #{vit_mushroom_forward.1} parent=5 // pred_check_branch
        %655 = sbr.rel (%p653) target = $region108
      $region107: #{vit_mushroom_forward.1} parent=5 // pred_region
        // Predicated region
        $region109: #{vit_mushroom_forward.1} parent=107 // pred_check
          %p656 = pneg %p53
        $region110: #{vit_mushroom_forward.1} parent=107 // pred_check_branch
          %658 = sbr.rel (%p656) target = $region112
        $region111: #{vit_mushroom_forward.1} parent=107 // pred_region
          %p659 = scmp.lt.s32.totalorder %s33, 1
          %s660 = scalar_select %p659, %s33, 1
          %s661 = smul.addr %s660, 6
          %s662 = smul.addr %s661, 4
          %s663 = scalar_lea.vmem %s0, %s662
        $region112: #{vit_mushroom_forward.1} parent=107 // pred_fallthru
          _
      $region108: #{vit_mushroom_forward.1} parent=5 // pred_fallthru
        _
      %p664 = scmp.le.s32.totalorder 1, %s33
      %p665 = scmp.lt.s32.totalorder %s33, 3
      %p666 = pnand %p664, %p665
      %p667 = pneg %p666
      // Predicated region
      $region113: #{vit_mushroom_forward.1} parent=5 // pred_check
        _
      $region114: #{vit_mushroom_forward.1} parent=5 // pred_check_branch
        %669 = sbr.rel (%p666) target = $region116
      $region115: #{vit_mushroom_forward.1} parent=5 // pred_region
        %s670 = ssub.s32 %s33, 1
        %p671 = scmp.lt.s32.totalorder %s38, 1
        %s672 = scalar_select %p671, %s38, 1
        %s673 = smul.addr %s672, 6
        %s674 = smul.addr %s673, 4
        %s675 = scalar_lea.vmem %s0, %s674
        %p676 = pneg %p59
        %p677 = pneg %p56
        %p678 = pneg %p80
        %p679 = pneg %p77
        %p680 = pneg %p101
        %p681 = pneg %p98
        %p682 = pneg %p122
        %p683 = pneg %p119
        %p684 = pneg %p143
        %p685 = pneg %p140
        %p686 = pneg %p164
        %p687 = pneg %p161
        %p688 = pneg %p185
        %p689 = pneg %p182
        %p690 = pneg %p206
        %p691 = pneg %p203
        %p692 = pneg %p227
        %p693 = pneg %p224
        %p694 = pneg %p248
        %p695 = pneg %p245
        %p696 = pneg %p269
        %p697 = pneg %p266
        %p698 = pneg %p290
        %p699 = pneg %p287
        %p700 = pneg %p311
        %p701 = pneg %p308
        %p702 = pneg %p332
        %p703 = pneg %p329
        %p704 = pneg %p353
        %p705 = pneg %p350
        %p706 = pneg %p374
        %p707 = pneg %p371
        %p708 = pneg %p395
        %p709 = pneg %p392
        %p710 = pneg %p416
        %p711 = pneg %p413
        %p712 = pneg %p437
        %p713 = pneg %p434
        %p714 = pneg %p458
        %p715 = pneg %p455
        %p716 = pneg %p479
        %p717 = pneg %p476
        %p718 = pneg %p500
        %p719 = pneg %p497
        %p720 = pneg %p521
        %p721 = pneg %p518
        %p722 = pneg %p542
        %p723 = pneg %p539
        %p724 = pneg %p568
        %p725 = pneg %p565
        %s726 = sand.u32 %s555, 1
        %s727 = scalar_lea.sflag [#allocation3], %s726
        %s728 = sand.u32 %s555, 1
        %s729 = smul.addr %s728, 2
        %s730 = scalar_lea.vmem [#allocation2], %s729
        %p731 = scmp.lt.s32.totalorder %s38, 1
        %s732 = scalar_select %p731, %s38, 1
        %s733 = smul.addr %s732, 6
        %s734 = smul.addr %s733, 4
        %s735 = scalar_lea.vmem %s0, %s734
        %v737 = vld [vmem:[%s735] sm:$0xff]
        %v738 = vld [vmem:[%s735 + $0x8] sm:$0xff]
        %v739 = vld [vmem:[%s735 + $0x10] sm:$0x33]
        %v740 = vld [vmem:[%s5] sm:$0xf]
        %v741 = vld [vmem:[%s5 + $0x4] sm:$0xf]
        %v742 = vld [vmem:[%s5 + $0x8] sm:$0xf]
        %v743 = vld [vmem:[%s5 + $0xc] sm:$0xf]
        %v744 = vld [vmem:[%s5 + $0x10] sm:$0xf]
        %v745 = vld [vmem:[%s5 + $0x14] sm:$0xf]
        %v746 = vld [vmem:[%s5 + $0x18] sm:$0xf]
        %v747 = vld [vmem:[%s5 + $0x1c] sm:$0xf]
        %v748 = vld [vmem:[%s5 + $0x20] sm:$0xf]
        %v749 = vld [vmem:[%s5 + $0x24] sm:$0xf]
        %v750 = vld [vmem:[%s5 + $0x28] sm:$0xf]
        %v751 = vld [vmem:[%s5 + $0x2c] sm:$0xf]
        %v752 = vld [vmem:[%s5 + $0x30] sm:$0xf]
        %v753 = vld [vmem:[%s5 + $0x34] sm:$0xf]
        %v754 = vld [vmem:[%s5 + $0x38] sm:$0xf]
        %v755 = vld [vmem:[%s5 + $0x3c] sm:$0xf]
        %v756 = vld [vmem:[%s5 + $0x40] sm:$0xf]
        %v757 = vld [vmem:[%s5 + $0x44] sm:$0xf]
        %v758 = vld [vmem:[%s5 + $0x48] sm:$0xf]
        %v759 = vld [vmem:[%s5 + $0x4c] sm:$0xf]
        %v760 = vld [vmem:[%s5 + $0x50] sm:$0xf]
        %v761 = vld [vmem:[%s5 + $0x54] sm:$0xf]
        %v762 = vld [vmem:[%s5 + $0x58] sm:$0xf]
        %v763 = vld [vmem:[%s5 + $0x5c] sm:$0xf]
        %v764 = vld [vmem:[%s1] sm:$0xff]
        %v765 = vld [vmem:[%s1 + $0x8] sm:$0xff]
        %v766 = vld [vmem:[%s1 + $0x10] sm:$0xf]
        %v770 = vunpack.c.l.b16 %v737
        %v771 = vunpack.c.h.b16 %v737
        %v772 = vunpack.c.l.b16 %v738
        %v773 = vunpack.c.h.b16 %v738
        %v774 = vunpack.c.l.b16 %v739
        %v775 = vunpack.c.h.b16 %v739
        %v776 = vpack.c.b16 %v772, %v770
        %v777 = vpack.c.b16 %v773, %v771
        %v778 = vpack.c.b16 %v774, %v774
        %v779 = vpack.c.b16 %v775, %v775
        %v806 = vunpack.c.l.b16 %v740
        %v807 = vunpack.c.l.b16 %v741
        %v808 = vunpack.c.l.b16 %v742
        %v809 = vunpack.c.l.b16 %v743
        %v810 = vunpack.c.l.b16 %v744
        %v811 = vunpack.c.l.b16 %v745
        %v812 = vunpack.c.l.b16 %v746
        %v813 = vunpack.c.l.b16 %v747
        %v814 = vunpack.c.l.b16 %v748
        %v815 = vunpack.c.l.b16 %v749
        %v816 = vunpack.c.l.b16 %v750
        %v817 = vunpack.c.l.b16 %v751
        %v818 = vunpack.c.l.b16 %v752
        %v819 = vunpack.c.l.b16 %v753
        %v820 = vunpack.c.l.b16 %v754
        %v821 = vunpack.c.l.b16 %v755
        %v822 = vunpack.c.l.b16 %v756
        %v823 = vunpack.c.l.b16 %v757
        %v824 = vunpack.c.l.b16 %v758
        %v825 = vunpack.c.l.b16 %v759
        %v826 = vunpack.c.l.b16 %v760
        %v827 = vunpack.c.l.b16 %v761
        %v828 = vunpack.c.l.b16 %v762
        %v829 = vunpack.c.l.b16 %v763
        %v830 = vpack.c.b16 %v807, %v806
        %v831 = vpack.c.b16 %v809, %v808
        %v832 = vpack.c.b16 %v811, %v810
        %v833 = vpack.c.b16 %v813, %v812
        %v834 = vpack.c.b16 %v815, %v814
        %v835 = vpack.c.b16 %v817, %v816
        %v836 = vpack.c.b16 %v819, %v818
        %v837 = vpack.c.b16 %v821, %v820
        %v838 = vpack.c.b16 %v823, %v822
        %v839 = vpack.c.b16 %v825, %v824
        %v840 = vpack.c.b16 %v827, %v826
        %v841 = vpack.c.b16 %v829, %v828
        %vm854 = vcmask 523264
        %v856 = vsel %vm854, %v777, 0
        %v859 = vsel %vm854, %v779, 0
        %861 = vmatprep.subr.bf16.mxu0 0
        %862 = vmatpush1.bf16.msra.mxu0 %v830
        %863 = vmatprep.subr.bf16.mxu0 0
        %864 = vmatpush1.bf16.msra.mxu0 %v831
        %865 = vmatprep.subr.bf16.mxu0 0
        %866 = vmatpush1.bf16.msra.mxu0 %v832
        %867 = vmatprep.subr.bf16.mxu0 0
        %868 = vmatpush1.bf16.msra.mxu0 %v833
        %869 = vmatprep.subr.bf16.mxu0 0
        %870 = vmatpush1.bf16.msra.mxu0 %v834
        %871 = vmatprep.subr.bf16.mxu0 0
        %872 = vmatpush1.bf16.msra.mxu0 %v835
        %873 = vmatprep.subr.bf16.mxu0 0
        %874 = vmatpush1.bf16.msra.mxu0 %v836
        %875 = vmatprep.subr.bf16.mxu0 0
        %876 = vmatpush1.bf16.msra.mxu0 %v837
        %877 = vmatprep.subr.bf16.mxu0 0
        %878 = vmatpush1.bf16.msra.mxu0 %v838
        %879 = vmatprep.subr.bf16.mxu0 0
        %880 = vmatpush1.bf16.msra.mxu0 %v839
        %881 = vmatprep.subr.bf16.mxu0 0
        %882 = vmatpush1.bf16.msra.mxu0 %v840
        %883 = vmatprep.subr.bf16.mxu0 0
        %884 = vmatpush1.bf16.msra.mxu0 %v841
        %885 = vmatprep.subr.bf16.mxu0 0
        %886 = vmatpush1.bf16.msra.mxu0 0
        %887 = vmatprep.subr.bf16.mxu0 0
        %888 = vmatpush1.bf16.msra.mxu0 0
        %889 = vmatprep.subr.bf16.mxu0 0
        %890 = vmatpush1.bf16.msra.mxu0 0
        %891 = vmatprep.subr.bf16.mxu0 0
        %892 = vmatpush1.bf16.msra.mxu0 0
        %893 = vmatprep.mubr.bf16.mxu0 %v856
        %894 = vmatmul.mubr.bf16.gmra.mrb[0].mxu0 %v776
        %v895 = vpop.f32.mrb[0].mxu0
        %v896 = vadd.f32 %v764, %v895
        %v897 = vpop.f32.mrb[0].mxu0
        %v898 = vpop.f32.mrb[0].mxu0
        %v899 = vadd.f32 %v765, %v898
        %v900 = vpop.f32.mrb[0].mxu0
        %901 = vmatprep.mubr.bf16.mxu0 %v859
        %902 = vmatmul.mubr.bf16.gmra.mrb[0].mxu0 %v778
        %v903 = vpop.f32.mrb[0].mxu0
        %v904 = vadd.f32 %v766, %v903
        %v905 = vpop.f32.mrb[0].mxu0
        %v906 = vpop.f32.mrb[0].mxu0
        %v907 = vpop.f32.mrb[0].mxu0
        %908 = vdwg.mxu0
        %v909 = vld [vmem:[%s2] sm:$0xff]
        %v910 = vld [vmem:[%s2 + $0x8] sm:$0xff]
        %v911 = vld [vmem:[%s2 + $0x10] sm:$0xf]
        %v912 = vld [vmem:[%s3] sm:$0x1]
        %913 = vset.pattern.permute.xlu0 0
        %914 = vperm.xlu0 %913, %v909
        %v915 = vpop.permute.xlu0 %914
        %916 = vset.pattern.permute.xlu0 0
        %917 = vperm.xlu0 %916, %v910
        %v918 = vpop.permute.xlu0 %917
        %919 = vset.pattern.permute.xlu0 0
        %920 = vperm.xlu0 %919, %v911
        %v921 = vpop.permute.xlu0 %920
        %v922 = vlaneseq
        %v923 = vshrl.u32 %v922, 7
        %v924 = vsub.s32 0, %v923
        %v925 = vrot.slane %v912, %v924
        %vm926 = vcmp.eq.s32.totalorder %v915, %v925
        %vm927 = vcmp.eq.s32.totalorder %v918, %v925
        %vm928 = vcmp.eq.s32.totalorder %v921, %v925
        %v929 = vsel %vm926, 0.0, -1e+30
        %v930 = vsel %vm927, 0.0, -1e+30
        %v931 = vsel %vm928, 0.0, -1e+30
        %v932 = vld [vmem:[%s6] sm:$0x1]
        %v933 = vld [vmem:[%s7] sm:$0x1]
        %vm934 = vcmask 261120
        %v935 = vsel %vm934, %v896, 0.0
        %936 = vadd.xlane.f32.xlu0 %v935
        %v937 = vpop.xlane.xlu0 %936
        %v938 = vsel %vm934, %v899, 0.0
        %939 = vadd.xlane.f32.xlu0 %v938
        %v940 = vpop.xlane.xlu0 %939
        %vm941 = vcmask 257024
        %v942 = vsel %vm941, %v904, 0.0
        %943 = vadd.xlane.f32.xlu0 %v942
        %v944 = vpop.xlane.xlu0 %943
        %v945 = vrcp.pop 32.0
        %v946 = vmul.f32 %v937, %v945
        %v947 = vmul.f32 %v940, %v945
        %v948 = vmul.f32 %v944, %v945
        %v949 = vsub.f32 %v896, %v946
        %v950 = vsub.f32 %v899, %v947
        %v951 = vsub.f32 %v904, %v948
        %v952 = vmul.f32 %v949, %v949
        %v953 = vmul.f32 %v950, %v950
        %v954 = vmul.f32 %v951, %v951
        %v955 = vsel %vm934, %v952, 0.0
        %956 = vadd.xlane.f32.xlu0 %v955
        %v957 = vpop.xlane.xlu0 %956
        %v958 = vsel %vm934, %v953, 0.0
        %959 = vadd.xlane.f32.xlu0 %v958
        %v960 = vpop.xlane.xlu0 %959
        %v961 = vsel %vm941, %v954, 0.0
        %962 = vadd.xlane.f32.xlu0 %v961
        %v963 = vpop.xlane.xlu0 %962
        %v964 = vmul.f32 %v957, %v945
        %v965 = vmul.f32 %v960, %v945
        %v966 = vmul.f32 %v963, %v945
        %v967 = vadd.f32 %v964, 1e-06
        %v968 = vadd.f32 %v965, 1e-06
        %v969 = vadd.f32 %v966, 1e-06
        %v970 = vrsqrt.pop %v967
        %v971 = vrsqrt.pop %v968
        %v972 = vrsqrt.pop %v969
        %v973 = vmul.f32 %v949, %v970
        %v974 = vmul.f32 %v950, %v971
        %v975 = vmul.f32 %v951, %v972
        %v977 = vlaneseq
        %v978 = vshrl.u32 %v977, 7
        %v979 = vsub.s32 0, %v978
        %v980 = vrot.slane %v932, %v979
        %v982 = vmul.f32 %v973, %v980
        %v983 = vmul.f32 %v974, %v980
        %v984 = vmul.f32 %v975, %v980
        %v986 = vlaneseq
        %v987 = vshrl.u32 %v986, 7
        %v988 = vsub.s32 0, %v987
        %v989 = vrot.slane %v933, %v988
        %v991 = vadd.f32 %v982, %v989
        %v992 = vadd.f32 %v983, %v989
        %v993 = vadd.f32 %v984, %v989
        %v994 = vpack.c.bf16 %v992, %v991
        %v995 = vpack.c.bf16 %v993, %v993
        %v996 = vld [vmem:[%s8] sm:$0xf]
        %v997 = vld [vmem:[%s8 + $0x4] sm:$0xf]
        %v998 = vld [vmem:[%s8 + $0x8] sm:$0xf]
        %v999 = vld [vmem:[%s8 + $0xc] sm:$0xf]
        %v1000 = vld [vmem:[%s9] sm:$0x1]
        %v1002 = vlaneseq
        %v1003 = vshrl.u32 %v1002, 7
        %v1004 = vsub.s32 0, %v1003
        %v1005 = vrot.slane %v1000, %v1004
        %v1011 = vunpack.c.l.b16 %v996
        %v1012 = vunpack.c.l.b16 %v997
        %v1013 = vunpack.c.l.b16 %v998
        %v1014 = vunpack.c.l.b16 %v999
        %v1015 = vpack.c.b16 %v1012, %v1011
        %v1016 = vpack.c.b16 %v1014, %v1013
        %v1020 = vsel %vm934, %v994, 0
        %v1023 = vsel %vm934, %v995, 0
        %1025 = vmatprep.subr.bf16.mxu0 0
        %1026 = vmatpush1.bf16.msra.mxu0 %v1015
        %1027 = vmatprep.subr.bf16.mxu0 0
        %1028 = vmatpush1.bf16.msra.mxu0 %v1016
        %1029 = vmatprep.subr.bf16.mxu0 0
        %1030 = vmatpush1.bf16.msra.mxu0 0
        %1031 = vmatprep.subr.bf16.mxu0 0
        %1032 = vmatpush1.bf16.msra.mxu0 0
        %1033 = vmatprep.subr.bf16.mxu0 0
        %1034 = vmatpush1.bf16.msra.mxu0 0
        %1035 = vmatprep.subr.bf16.mxu0 0
        %1036 = vmatpush1.bf16.msra.mxu0 0
        %1037 = vmatprep.subr.bf16.mxu0 0
        %1038 = vmatpush1.bf16.msra.mxu0 0
        %1039 = vmatprep.subr.bf16.mxu0 0
        %1040 = vmatpush1.bf16.msra.mxu0 0
        %1041 = vmatprep.subr.bf16.mxu0 0
        %1042 = vmatpush1.bf16.msra.mxu0 0
        %1043 = vmatprep.subr.bf16.mxu0 0
        %1044 = vmatpush1.bf16.msra.mxu0 0
        %1045 = vmatprep.subr.bf16.mxu0 0
        %1046 = vmatpush1.bf16.msra.mxu0 0
        %1047 = vmatprep.subr.bf16.mxu0 0
        %1048 = vmatpush1.bf16.msra.mxu0 0
        %1049 = vmatprep.subr.bf16.mxu0 0
        %1050 = vmatpush1.bf16.msra.mxu0 0
        %1051 = vmatprep.subr.bf16.mxu0 0
        %1052 = vmatpush1.bf16.msra.mxu0 0
        %1053 = vmatprep.subr.bf16.mxu0 0
        %1054 = vmatpush1.bf16.msra.mxu0 0
        %1055 = vmatprep.subr.bf16.mxu0 0
        %1056 = vmatpush1.bf16.msra.mxu0 0
        %1057 = vmatprep.mubr.bf16.mxu0 0
        %1058 = vmatmul.mubr.bf16.gmra.mrb[0].mxu0 %v1020
        %v1059 = vpop.f32.mrb[0].mxu0
        %v1060 = vadd.f32 %v1005, %v1059
        %v1061 = vpop.f32.mrb[0].mxu0
        %v1062 = vpop.f32.mrb[0].mxu0
        %v1063 = vadd.f32 %v1005, %v1062
        %v1064 = vpop.f32.mrb[0].mxu0
        %1065 = vmatprep.mubr.bf16.mxu0 0
        %1066 = vmatmul.mubr.bf16.gmra.mrb[0].mxu0 %v1023
        %v1067 = vpop.f32.mrb[0].mxu0
        %v1068 = vadd.f32 %v1005, %v1067
        %v1069 = vpop.f32.mrb[0].mxu0
        %v1070 = vpop.f32.mrb[0].mxu0
        %v1071 = vpop.f32.mrb[0].mxu0
        %1072 = vdwg.mxu0
        %v1073 = vpack.c.bf16 %v1063, %v1060
        %v1074 = vpack.c.bf16 %v1068, %v1068
        %1077 = vrot.lane.b32.xlu0 %v1073, 96
        %v1078 = vpop.permute.xlu0 %1077
        %1079 = vrot.lane.b32.xlu0 %v1074, 96
        %v1080 = vpop.permute.xlu0 %1079
        %vm1081 = vcmask 64512
        %v1083 = vsel %vm1081, %v1073, 0
        %v1086 = vsel %vm1081, %v1074, 0
        %v1089 = vsel %vm1081, %v1078, 0
        %v1092 = vsel %vm1081, %v1080, 0
        %1094 = vmatprep.subr.bf16.mxu0 0
        %1095 = vmatpush1.bf16.xpose.msra.mxu0 %v1089
        %1096 = vmatprep.subr.bf16.mxu0 0
        %1097 = vmatpush1.bf16.xpose.msra.mxu0 %v1092
        %1098 = vmatprep.subr.bf16.mxu0 0
        %1099 = vmatpush1.bf16.xpose.msra.mxu0 0
        %1100 = vmatprep.subr.bf16.mxu0 0
        %1101 = vmatpush1.bf16.xpose.msra.mxu0 0
        %1102 = vmatprep.subr.bf16.mxu0 0
        %1103 = vmatpush1.bf16.xpose.msra.mxu0 0
        %1104 = vmatprep.subr.bf16.mxu0 0
        %1105 = vmatpush1.bf16.xpose.msra.mxu0 0
        %1106 = vmatprep.subr.bf16.mxu0 0
        %1107 = vmatpush1.bf16.xpose.msra.mxu0 0
        %1108 = vmatprep.subr.bf16.mxu0 0
        %1109 = vmatpush1.bf16.xpose.msra.mxu0 0
        %1110 = vmatprep.subr.bf16.mxu0 0
        %1111 = vmatpush1.bf16.xpose.msra.mxu0 0
        %1112 = vmatprep.subr.bf16.mxu0 0
        %1113 = vmatpush1.bf16.xpose.msra.mxu0 0
        %1114 = vmatprep.subr.bf16.mxu0 0
        %1115 = vmatpush1.bf16.xpose.msra.mxu0 0
        %1116 = vmatprep.subr.bf16.mxu0 0
        %1117 = vmatpush1.bf16.xpose.msra.mxu0 0
        %1118 = vmatprep.subr.bf16.mxu0 0
        %1119 = vmatpush1.bf16.xpose.msra.mxu0 0
        %1120 = vmatprep.subr.bf16.mxu0 0
        %1121 = vmatpush1.bf16.xpose.msra.mxu0 0
        %1122 = vmatprep.subr.bf16.mxu0 0
        %1123 = vmatpush1.bf16.xpose.msra.mxu0 0
        %1124 = vmatprep.subr.bf16.mxu0 0
        %1125 = vmatpush1.bf16.xpose.msra.mxu0 0
        %1126 = vmatprep.mubr.bf16.mxu0 0
        %1127 = vmatmul.mubr.bf16.gmra.mrb[0].mxu0 %v1083
        %v1128 = vpop.f32.mrb[0].mxu0
        %v1129 = vadd.f32 %v929, %v1128
        %v1130 = vpop.f32.mrb[0].mxu0
        %v1131 = vpop.f32.mrb[0].mxu0
        %v1132 = vadd.f32 %v930, %v1131
        %v1133 = vpop.f32.mrb[0].mxu0
        %1134 = vmatprep.mubr.bf16.mxu0 0
        %1135 = vmatmul.mubr.bf16.gmra.mrb[0].mxu0 %v1086
        %v1136 = vpop.f32.mrb[0].mxu0
        %v1137 = vadd.f32 %v931, %v1136
        %v1138 = vpop.f32.mrb[0].mxu0
        %v1139 = vpop.f32.mrb[0].mxu0
        %v1140 = vpop.f32.mrb[0].mxu0
        %1141 = vdwg.mxu0
        %vm1142 = vcmask 162816
        %v1143 = vsel %vm1142, %v1129, -inf
        %1144 = vmax.xlane.f32.xlu0 %v1143
        %v1145 = vpop.xlane.xlu0 %1144
        %v1146 = vsel %vm1142, %v1132, -inf
        %1147 = vmax.xlane.f32.xlu0 %v1146
        %v1148 = vpop.xlane.xlu0 %1147
        %vm1149 = vcmask 158720
        %v1150 = vsel %vm1149, %v1137, -inf
        %1151 = vmax.xlane.f32.xlu0 %v1150
        %v1152 = vpop.xlane.xlu0 %1151
        %v1153 = vsub.f32 %v1129, %v1145
        %v1154 = vsub.f32 %v1132, %v1148
        %v1155 = vsub.f32 %v1137, %v1152
        %v1156 = vmul.f32 %v1153, 1.442695
        %v1157 = vpow.pop %v1156
        %v1158 = vmul.f32 %v1154, 1.442695
        %v1159 = vpow.pop %v1158
        %v1160 = vmul.f32 %v1155, 1.442695
        %v1161 = vpow.pop %v1160
        %v1162 = vsel %vm1142, %v1157, 0.0
        %1163 = vadd.xlane.f32.xlu0 %v1162
        %v1164 = vpop.xlane.xlu0 %1163
        %v1165 = vsel %vm1142, %v1159, 0.0
        %1166 = vadd.xlane.f32.xlu0 %v1165
        %v1167 = vpop.xlane.xlu0 %1166
        %v1168 = vsel %vm1149, %v1161, 0.0
        %1169 = vadd.xlane.f32.xlu0 %v1168
        %v1170 = vpop.xlane.xlu0 %1169
        %v1171 = vrcp.pop %v1164
        %v1172 = vrcp.pop %v1167
        %v1173 = vrcp.pop %v1170
        %v1174 = vmul.f32 %v1157, %v1171
        %v1175 = vmul.f32 %v1159, %v1172
        %v1176 = vmul.f32 %v1161, %v1173
        %v1177 = vpack.c.bf16 %v1175, %v1174
        %v1178 = vpack.c.bf16 %v1176, %v1176
        %1179 = vrot.lane.b32.xlu0 %v1073, 64
        %v1180 = vpop.permute.xlu0 %1179
        %1181 = vrot.lane.b32.xlu0 %v1074, 64
        %v1182 = vpop.permute.xlu0 %1181
        %v1185 = vsel %vm1142, %v1177, 0
        %v1188 = vsel %vm1142, %v1178, 0
        %vm1190 = vcmask 1041408
        %v1192 = vsel %vm1190, %v1182, 0
        %1194 = vmatprep.subr.bf16.mxu0 0
        %1195 = vmatpush1.bf16.msra.mxu0 %v1180
        %1196 = vmatprep.subr.bf16.mxu0 0
        %1197 = vmatpush1.bf16.msra.mxu0 %v1192
        %1198 = vmatprep.subr.bf16.mxu0 0
        %1199 = vmatpush1.bf16.msra.mxu0 0
        %1200 = vmatprep.subr.bf16.mxu0 0
        %1201 = vmatpush1.bf16.msra.mxu0 0
        %1202 = vmatprep.subr.bf16.mxu0 0
        %1203 = vmatpush1.bf16.msra.mxu0 0
        %1204 = vmatprep.subr.bf16.mxu0 0
        %1205 = vmatpush1.bf16.msra.mxu0 0
        %1206 = vmatprep.subr.bf16.mxu0 0
        %1207 = vmatpush1.bf16.msra.mxu0 0
        %1208 = vmatprep.subr.bf16.mxu0 0
        %1209 = vmatpush1.bf16.msra.mxu0 0
        %1210 = vmatprep.subr.bf16.mxu0 0
        %1211 = vmatpush1.bf16.msra.mxu0 0
        %1212 = vmatprep.subr.bf16.mxu0 0
        %1213 = vmatpush1.bf16.msra.mxu0 0
        %1214 = vmatprep.subr.bf16.mxu0 0
        %1215 = vmatpush1.bf16.msra.mxu0 0
        %1216 = vmatprep.subr.bf16.mxu0 0
        %1217 = vmatpush1.bf16.msra.mxu0 0
        %1218 = vmatprep.subr.bf16.mxu0 0
        %1219 = vmatpush1.bf16.msra.mxu0 0
        %1220 = vmatprep.subr.bf16.mxu0 0
        %1221 = vmatpush1.bf16.msra.mxu0 0
        %1222 = vmatprep.subr.bf16.mxu0 0
        %1223 = vmatpush1.bf16.msra.mxu0 0
        %1224 = vmatprep.subr.bf16.mxu0 0
        %1225 = vmatpush1.bf16.msra.mxu0 0
        %1226 = vmatprep.mubr.bf16.mxu0 0
        %1227 = vmatmul.mubr.bf16.gmra.mrb[0].mxu0 %v1185
        %v1228 = vpop.f32.mrb[0].mxu0
        %v1229 = vadd.f32 0.0, %v1228
        %v1230 = vpop.f32.mrb[0].mxu0
        %v1231 = vpop.f32.mrb[0].mxu0
        %v1232 = vadd.f32 0.0, %v1231
        %v1233 = vpop.f32.mrb[0].mxu0
        %1234 = vmatprep.mubr.bf16.mxu0 0
        %1235 = vmatmul.mubr.bf16.gmra.mrb[0].mxu0 %v1188
        %v1236 = vpop.f32.mrb[0].mxu0
        %v1237 = vadd.f32 0.0, %v1236
        %v1238 = vpop.f32.mrb[0].mxu0
        %v1239 = vpop.f32.mrb[0].mxu0
        %v1240 = vpop.f32.mrb[0].mxu0
        %1241 = vdwg.mxu0
        %1242 = vrot.lane.b32.xlu0 %v1073, 120
        %v1243 = vpop.permute.xlu0 %1242
        %1244 = vrot.lane.b32.xlu0 %v1074, 120
        %v1245 = vpop.permute.xlu0 %1244
        %1246 = vrot.lane.b32.xlu0 %v1073, 88
        %v1247 = vpop.permute.xlu0 %1246
        %1248 = vrot.lane.b32.xlu0 %v1074, 88
        %v1249 = vpop.permute.xlu0 %1248
        %v1251 = vsel %vm1081, %v1243, 0
        %v1254 = vsel %vm1081, %v1245, 0
        %v1257 = vsel %vm1081, %v1247, 0
        %v1260 = vsel %vm1081, %v1249, 0
        %1262 = vmatprep.subr.bf16.mxu0 0
        %1263 = vmatpush1.bf16.xpose.msra.mxu0 %v1257
        %1264 = vmatprep.subr.bf16.mxu0 0
        %1265 = vmatpush1.bf16.xpose.msra.mxu0 %v1260
        %1266 = vmatprep.subr.bf16.mxu0 0
        %1267 = vmatpush1.bf16.xpose.msra.mxu0 0
        %1268 = vmatprep.subr.bf16.mxu0 0
        %1269 = vmatpush1.bf16.xpose.msra.mxu0 0
        %1270 = vmatprep.subr.bf16.mxu0 0
        %1271 = vmatpush1.bf16.xpose.msra.mxu0 0
        %1272 = vmatprep.subr.bf16.mxu0 0
        %1273 = vmatpush1.bf16.xpose.msra.mxu0 0
        %1274 = vmatprep.subr.bf16.mxu0 0
        %1275 = vmatpush1.bf16.xpose.msra.mxu0 0
        %1276 = vmatprep.subr.bf16.mxu0 0
        %1277 = vmatpush1.bf16.xpose.msra.mxu0 0
        %1278 = vmatprep.subr.bf16.mxu0 0
        %1279 = vmatpush1.bf16.xpose.msra.mxu0 0
        %1280 = vmatprep.subr.bf16.mxu0 0
        %1281 = vmatpush1.bf16.xpose.msra.mxu0 0
        %1282 = vmatprep.subr.bf16.mxu0 0
        %1283 = vmatpush1.bf16.xpose.msra.mxu0 0
        %1284 = vmatprep.subr.bf16.mxu0 0
        %1285 = vmatpush1.bf16.xpose.msra.mxu0 0
        %1286 = vmatprep.subr.bf16.mxu0 0
        %1287 = vmatpush1.bf16.xpose.msra.mxu0 0
        %1288 = vmatprep.subr.bf16.mxu0 0
        %1289 = vmatpush1.bf16.xpose.msra.mxu0 0
        %1290 = vmatprep.subr.bf16.mxu0 0
        %1291 = vmatpush1.bf16.xpose.msra.mxu0 0
        %1292 = vmatprep.subr.bf16.mxu0 0
        %1293 = vmatpush1.bf16.xpose.msra.mxu0 0
        %1294 = vmatprep.mubr.bf16.mxu0 0
        %1295 = vmatmul.mubr.bf16.gmra.mrb[0].mxu0 %v1251
        %v1296 = vpop.f32.mrb[0].mxu0
        %v1297 = vadd.f32 %v929, %v1296
        %v1298 = vpop.f32.mrb[0].mxu0
        %v1299 = vpop.f32.mrb[0].mxu0
        %v1300 = vadd.f32 %v930, %v1299
        %v1301 = vpop.f32.mrb[0].mxu0
        %1302 = vmatprep.mubr.bf16.mxu0 0
        %1303 = vmatmul.mubr.bf16.gmra.mrb[0].mxu0 %v1254
        %v1304 = vpop.f32.mrb[0].mxu0
        %v1305 = vadd.f32 %v931, %v1304
        %v1306 = vpop.f32.mrb[0].mxu0
        %v1307 = vpop.f32.mrb[0].mxu0
        %v1308 = vpop.f32.mrb[0].mxu0
        %1309 = vdwg.mxu0
        %v1310 = vsel %vm1142, %v1297, -inf
        %1311 = vmax.xlane.f32.xlu0 %v1310
        %v1312 = vpop.xlane.xlu0 %1311
        %v1313 = vsel %vm1142, %v1300, -inf
        %1314 = vmax.xlane.f32.xlu0 %v1313
        %v1315 = vpop.xlane.xlu0 %1314
        %v1316 = vsel %vm1149, %v1305, -inf
        %1317 = vmax.xlane.f32.xlu0 %v1316
        %v1318 = vpop.xlane.xlu0 %1317
        %v1319 = vsub.f32 %v1297, %v1312
        %v1320 = vsub.f32 %v1300, %v1315
        %v1321 = vsub.f32 %v1305, %v1318
        %v1322 = vmul.f32 %v1319, 1.442695
        %v1323 = vpow.pop %v1322
        %v1324 = vmul.f32 %v1320, 1.442695
        %v1325 = vpow.pop %v1324
        %v1326 = vmul.f32 %v1321, 1.442695
        %v1327 = vpow.pop %v1326
        %v1328 = vsel %vm1142, %v1323, 0.0
        %1329 = vadd.xlane.f32.xlu0 %v1328
        %v1330 = vpop.xlane.xlu0 %1329
        %v1331 = vsel %vm1142, %v1325, 0.0
        %1332 = vadd.xlane.f32.xlu0 %v1331
        %v1333 = vpop.xlane.xlu0 %1332
        %v1334 = vsel %vm1149, %v1327, 0.0
        %1335 = vadd.xlane.f32.xlu0 %v1334
        %v1336 = vpop.xlane.xlu0 %1335
        %v1337 = vrcp.pop %v1330
        %v1338 = vrcp.pop %v1333
        %v1339 = vrcp.pop %v1336
        %v1340 = vmul.f32 %v1323, %v1337
        %v1341 = vmul.f32 %v1325, %v1338
        %v1342 = vmul.f32 %v1327, %v1339
        %v1343 = vpack.c.bf16 %v1341, %v1340
        %v1344 = vpack.c.bf16 %v1342, %v1342
        %1345 = vrot.lane.b32.xlu0 %v1073, 56
        %v1346 = vpop.permute.xlu0 %1345
        %1347 = vrot.lane.b32.xlu0 %v1074, 56
        %v1348 = vpop.permute.xlu0 %1347
        %v1351 = vsel %vm1142, %v1343, 0
        %v1354 = vsel %vm1142, %v1344, 0
        %v1357 = vsel %vm1190, %v1348, 0
        %1359 = vmatprep.subr.bf16.mxu0 0
        %1360 = vmatpush1.bf16.msra.mxu0 %v1346
        %1361 = vmatprep.subr.bf16.mxu0 0
        %1362 = vmatpush1.bf16.msra.mxu0 %v1357
        %1363 = vmatprep.subr.bf16.mxu0 0
        %1364 = vmatpush1.bf16.msra.mxu0 0
        %1365 = vmatprep.subr.bf16.mxu0 0
        %1366 = vmatpush1.bf16.msra.mxu0 0
        %1367 = vmatprep.subr.bf16.mxu0 0
        %1368 = vmatpush1.bf16.msra.mxu0 0
        %1369 = vmatprep.subr.bf16.mxu0 0
        %1370 = vmatpush1.bf16.msra.mxu0 0
        %1371 = vmatprep.subr.bf16.mxu0 0
        %1372 = vmatpush1.bf16.msra.mxu0 0
        %1373 = vmatprep.subr.bf16.mxu0 0
        %1374 = vmatpush1.bf16.msra.mxu0 0
        %1375 = vmatprep.subr.bf16.mxu0 0
        %1376 = vmatpush1.bf16.msra.mxu0 0
        %1377 = vmatprep.subr.bf16.mxu0 0
        %1378 = vmatpush1.bf16.msra.mxu0 0
        %1379 = vmatprep.subr.bf16.mxu0 0
        %1380 = vmatpush1.bf16.msra.mxu0 0
        %1381 = vmatprep.subr.bf16.mxu0 0
        %1382 = vmatpush1.bf16.msra.mxu0 0
        %1383 = vmatprep.subr.bf16.mxu0 0
        %1384 = vmatpush1.bf16.msra.mxu0 0
        %1385 = vmatprep.subr.bf16.mxu0 0
        %1386 = vmatpush1.bf16.msra.mxu0 0
        %1387 = vmatprep.subr.bf16.mxu0 0
        %1388 = vmatpush1.bf16.msra.mxu0 0
        %1389 = vmatprep.subr.bf16.mxu0 0
        %1390 = vmatpush1.bf16.msra.mxu0 0
        %1391 = vmatprep.mubr.bf16.mxu0 0
        %1392 = vmatmul.mubr.bf16.gmra.mrb[0].mxu0 %v1351
        %v1393 = vpop.f32.mrb[0].mxu0
        %v1394 = vadd.f32 0.0, %v1393
        %v1395 = vpop.f32.mrb[0].mxu0
        %v1396 = vpop.f32.mrb[0].mxu0
        %v1397 = vadd.f32 0.0, %v1396
        %v1398 = vpop.f32.mrb[0].mxu0
        %1399 = vmatprep.mubr.bf16.mxu0 0
        %1400 = vmatmul.mubr.bf16.gmra.mrb[0].mxu0 %v1354
        %v1401 = vpop.f32.mrb[0].mxu0
        %v1402 = vadd.f32 0.0, %v1401
        %v1403 = vpop.f32.mrb[0].mxu0
        %v1404 = vpop.f32.mrb[0].mxu0
        %v1405 = vpop.f32.mrb[0].mxu0
        %1406 = vdwg.mxu0
        %1407 = vrot.lane.b32.xlu0 %v1073, 112
        %v1408 = vpop.permute.xlu0 %1407
        %1409 = vrot.lane.b32.xlu0 %v1074, 112
        %v1410 = vpop.permute.xlu0 %1409
        %1411 = vrot.lane.b32.xlu0 %v1073, 80
        %v1412 = vpop.permute.xlu0 %1411
        %1413 = vrot.lane.b32.xlu0 %v1074, 80
        %v1414 = vpop.permute.xlu0 %1413
        %v1416 = vsel %vm1081, %v1408, 0
        %v1419 = vsel %vm1081, %v1410, 0
        %v1422 = vsel %vm1081, %v1412, 0
        %v1425 = vsel %vm1081, %v1414, 0
        %1427 = vmatprep.subr.bf16.mxu0 0
        %1428 = vmatpush1.bf16.xpose.msra.mxu0 %v1422
        %1429 = vmatprep.subr.bf16.mxu0 0
        %1430 = vmatpush1.bf16.xpose.msra.mxu0 %v1425
        %1431 = vmatprep.subr.bf16.mxu0 0
        %1432 = vmatpush1.bf16.xpose.msra.mxu0 0
        %1433 = vmatprep.subr.bf16.mxu0 0
        %1434 = vmatpush1.bf16.xpose.msra.mxu0 0
        %1435 = vmatprep.subr.bf16.mxu0 0
        %1436 = vmatpush1.bf16.xpose.msra.mxu0 0
        %1437 = vmatprep.subr.bf16.mxu0 0
        %1438 = vmatpush1.bf16.xpose.msra.mxu0 0
        %1439 = vmatprep.subr.bf16.mxu0 0
        %1440 = vmatpush1.bf16.xpose.msra.mxu0 0
        %1441 = vmatprep.subr.bf16.mxu0 0
        %1442 = vmatpush1.bf16.xpose.msra.mxu0 0
        %1443 = vmatprep.subr.bf16.mxu0 0
        %1444 = vmatpush1.bf16.xpose.msra.mxu0 0
        %1445 = vmatprep.subr.bf16.mxu0 0
        %1446 = vmatpush1.bf16.xpose.msra.mxu0 0
        %1447 = vmatprep.subr.bf16.mxu0 0
        %1448 = vmatpush1.bf16.xpose.msra.mxu0 0
        %1449 = vmatprep.subr.bf16.mxu0 0
        %1450 = vmatpush1.bf16.xpose.msra.mxu0 0
        %1451 = vmatprep.subr.bf16.mxu0 0
        %1452 = vmatpush1.bf16.xpose.msra.mxu0 0
        %1453 = vmatprep.subr.bf16.mxu0 0
        %1454 = vmatpush1.bf16.xpose.msra.mxu0 0
        %1455 = vmatprep.subr.bf16.mxu0 0
        %1456 = vmatpush1.bf16.xpose.msra.mxu0 0
        %1457 = vmatprep.subr.bf16.mxu0 0
        %1458 = vmatpush1.bf16.xpose.msra.mxu0 0
        %1459 = vmatprep.mubr.bf16.mxu0 0
        %1460 = vmatmul.mubr.bf16.gmra.mrb[0].mxu0 %v1416
        %v1461 = vpop.f32.mrb[0].mxu0
        %v1462 = vadd.f32 %v929, %v1461
        %v1463 = vpop.f32.mrb[0].mxu0
        %v1464 = vpop.f32.mrb[0].mxu0
        %v1465 = vadd.f32 %v930, %v1464
        %v1466 = vpop.f32.mrb[0].mxu0
        %1467 = vmatprep.mubr.bf16.mxu0 0
        %1468 = vmatmul.mubr.bf16.gmra.mrb[0].mxu0 %v1419
        %v1469 = vpop.f32.mrb[0].mxu0
        %v1470 = vadd.f32 %v931, %v1469
        %v1471 = vpop.f32.mrb[0].mxu0
        %v1472 = vpop.f32.mrb[0].mxu0
        %v1473 = vpop.f32.mrb[0].mxu0
        %1474 = vdwg.mxu0
        %v1475 = vsel %vm1142, %v1462, -inf
        %1476 = vmax.xlane.f32.xlu0 %v1475
        %v1477 = vpop.xlane.xlu0 %1476
        %v1478 = vsel %vm1142, %v1465, -inf
        %1479 = vmax.xlane.f32.xlu0 %v1478
        %v1480 = vpop.xlane.xlu0 %1479
        %v1481 = vsel %vm1149, %v1470, -inf
        %1482 = vmax.xlane.f32.xlu0 %v1481
        %v1483 = vpop.xlane.xlu0 %1482
        %v1484 = vsub.f32 %v1462, %v1477
        %v1485 = vsub.f32 %v1465, %v1480
        %v1486 = vsub.f32 %v1470, %v1483
        %v1487 = vmul.f32 %v1484, 1.442695
        %v1488 = vpow.pop %v1487
        %v1489 = vmul.f32 %v1485, 1.442695
        %v1490 = vpow.pop %v1489
        %v1491 = vmul.f32 %v1486, 1.442695
        %v1492 = vpow.pop %v1491
        %v1493 = vsel %vm1142, %v1488, 0.0
        %1494 = vadd.xlane.f32.xlu0 %v1493
        %v1495 = vpop.xlane.xlu0 %1494
        %v1496 = vsel %vm1142, %v1490, 0.0
        %1497 = vadd.xlane.f32.xlu0 %v1496
        %v1498 = vpop.xlane.xlu0 %1497
        %v1499 = vsel %vm1149, %v1492, 0.0
        %1500 = vadd.xlane.f32.xlu0 %v1499
        %v1501 = vpop.xlane.xlu0 %1500
        %v1502 = vrcp.pop %v1495
        %v1503 = vrcp.pop %v1498
        %v1504 = vrcp.pop %v1501
        %v1505 = vmul.f32 %v1488, %v1502
        %v1506 = vmul.f32 %v1490, %v1503
        %v1507 = vmul.f32 %v1492, %v1504
        %v1508 = vpack.c.bf16 %v1506, %v1505
        %v1509 = vpack.c.bf16 %v1507, %v1507
        %1510 = vrot.lane.b32.xlu0 %v1073, 48
        %v1511 = vpop.permute.xlu0 %1510
        %1512 = vrot.lane.b32.xlu0 %v1074, 48
        %v1513 = vpop.permute.xlu0 %1512
        %v1516 = vsel %vm1142, %v1508, 0
        %v1519 = vsel %vm1142, %v1509, 0
        %v1522 = vsel %vm1190, %v1513, 0
        %1524 = vmatprep.subr.bf16.mxu0 0
        %1525 = vmatpush1.bf16.msra.mxu0 %v1511
        %1526 = vmatprep.subr.bf16.mxu0 0
        %1527 = vmatpush1.bf16.msra.mxu0 %v1522
        %1528 = vmatprep.subr.bf16.mxu0 0
        %1529 = vmatpush1.bf16.msra.mxu0 0
        %1530 = vmatprep.subr.bf16.mxu0 0
        %1531 = vmatpush1.bf16.msra.mxu0 0
        %1532 = vmatprep.subr.bf16.mxu0 0
        %1533 = vmatpush1.bf16.msra.mxu0 0
        %1534 = vmatprep.subr.bf16.mxu0 0
        %1535 = vmatpush1.bf16.msra.mxu0 0
        %1536 = vmatprep.subr.bf16.mxu0 0
        %1537 = vmatpush1.bf16.msra.mxu0 0
        %1538 = vmatprep.subr.bf16.mxu0 0
        %1539 = vmatpush1.bf16.msra.mxu0 0
        %1540 = vmatprep.subr.bf16.mxu0 0
        %1541 = vmatpush1.bf16.msra.mxu0 0
        %1542 = vmatprep.subr.bf16.mxu0 0
        %1543 = vmatpush1.bf16.msra.mxu0 0
        %1544 = vmatprep.subr.bf16.mxu0 0
        %1545 = vmatpush1.bf16.msra.mxu0 0
        %1546 = vmatprep.subr.bf16.mxu0 0
        %1547 = vmatpush1.bf16.msra.mxu0 0
        %1548 = vmatprep.subr.bf16.mxu0 0
        %1549 = vmatpush1.bf16.msra.mxu0 0
        %1550 = vmatprep.subr.bf16.mxu0 0
        %1551 = vmatpush1.bf16.msra.mxu0 0
        %1552 = vmatprep.subr.bf16.mxu0 0
        %1553 = vmatpush1.bf16.msra.mxu0 0
        %1554 = vmatprep.subr.bf16.mxu0 0
        %1555 = vmatpush1.bf16.msra.mxu0 0
        %1556 = vmatprep.mubr.bf16.mxu0 0
        %1557 = vmatmul.mubr.bf16.gmra.mrb[0].mxu0 %v1516
        %v1558 = vpop.f32.mrb[0].mxu0
        %v1559 = vadd.f32 0.0, %v1558
        %v1560 = vpop.f32.mrb[0].mxu0
        %v1561 = vpop.f32.mrb[0].mxu0
        %v1562 = vadd.f32 0.0, %v1561
        %v1563 = vpop.f32.mrb[0].mxu0
        %1564 = vmatprep.mubr.bf16.mxu0 0
        %1565 = vmatmul.mubr.bf16.gmra.mrb[0].mxu0 %v1519
        %v1566 = vpop.f32.mrb[0].mxu0
        %v1567 = vadd.f32 0.0, %v1566
        %v1568 = vpop.f32.mrb[0].mxu0
        %v1569 = vpop.f32.mrb[0].mxu0
        %v1570 = vpop.f32.mrb[0].mxu0
        %1571 = vdwg.mxu0
        %1572 = vrot.lane.b32.xlu0 %v1073, 104
        %v1573 = vpop.permute.xlu0 %1572
        %1574 = vrot.lane.b32.xlu0 %v1074, 104
        %v1575 = vpop.permute.xlu0 %1574
        %1576 = vrot.lane.b32.xlu0 %v1073, 72
        %v1577 = vpop.permute.xlu0 %1576
        %1578 = vrot.lane.b32.xlu0 %v1074, 72
        %v1579 = vpop.permute.xlu0 %1578
        %v1581 = vsel %vm1081, %v1573, 0
        %v1584 = vsel %vm1081, %v1575, 0
        %v1587 = vsel %vm1081, %v1577, 0
        %v1590 = vsel %vm1081, %v1579, 0
        %1592 = vmatprep.subr.bf16.mxu0 0
        %1593 = vmatpush1.bf16.xpose.msra.mxu0 %v1587
        %1594 = vmatprep.subr.bf16.mxu0 0
        %1595 = vmatpush1.bf16.xpose.msra.mxu0 %v1590
        %1596 = vmatprep.subr.bf16.mxu0 0
        %1597 = vmatpush1.bf16.xpose.msra.mxu0 0
        %1598 = vmatprep.subr.bf16.mxu0 0
        %1599 = vmatpush1.bf16.xpose.msra.mxu0 0
        %1600 = vmatprep.subr.bf16.mxu0 0
        %1601 = vmatpush1.bf16.xpose.msra.mxu0 0
        %1602 = vmatprep.subr.bf16.mxu0 0
        %1603 = vmatpush1.bf16.xpose.msra.mxu0 0
        %1604 = vmatprep.subr.bf16.mxu0 0
        %1605 = vmatpush1.bf16.xpose.msra.mxu0 0
        %1606 = vmatprep.subr.bf16.mxu0 0
        %1607 = vmatpush1.bf16.xpose.msra.mxu0 0
        %1608 = vmatprep.subr.bf16.mxu0 0
        %1609 = vmatpush1.bf16.xpose.msra.mxu0 0
        %1610 = vmatprep.subr.bf16.mxu0 0
        %1611 = vmatpush1.bf16.xpose.msra.mxu0 0
        %1612 = vmatprep.subr.bf16.mxu0 0
        %1613 = vmatpush1.bf16.xpose.msra.mxu0 0
        %1614 = vmatprep.subr.bf16.mxu0 0
        %1615 = vmatpush1.bf16.xpose.msra.mxu0 0
        %1616 = vmatprep.subr.bf16.mxu0 0
        %1617 = vmatpush1.bf16.xpose.msra.mxu0 0
        %1618 = vmatprep.subr.bf16.mxu0 0
        %1619 = vmatpush1.bf16.xpose.msra.mxu0 0
        %1620 = vmatprep.subr.bf16.mxu0 0
        %1621 = vmatpush1.bf16.xpose.msra.mxu0 0
        %1622 = vmatprep.subr.bf16.mxu0 0
        %1623 = vmatpush1.bf16.xpose.msra.mxu0 0
        %1624 = vmatprep.mubr.bf16.mxu0 0
        %1625 = vmatmul.mubr.bf16.gmra.mrb[0].mxu0 %v1581
        %v1626 = vpop.f32.mrb[0].mxu0
        %v1627 = vadd.f32 %v929, %v1626
        %v1628 = vpop.f32.mrb[0].mxu0
        %v1629 = vpop.f32.mrb[0].mxu0
        %v1630 = vadd.f32 %v930, %v1629
        %v1631 = vpop.f32.mrb[0].mxu0
        %1632 = vmatprep.mubr.bf16.mxu0 0
        %1633 = vmatmul.mubr.bf16.gmra.mrb[0].mxu0 %v1584
        %v1634 = vpop.f32.mrb[0].mxu0
        %v1635 = vadd.f32 %v931, %v1634
        %v1636 = vpop.f32.mrb[0].mxu0
        %v1637 = vpop.f32.mrb[0].mxu0
        %v1638 = vpop.f32.mrb[0].mxu0
        %1639 = vdwg.mxu0
        %v1640 = vsel %vm1142, %v1627, -inf
        %1641 = vmax.xlane.f32.xlu0 %v1640
        %v1642 = vpop.xlane.xlu0 %1641
        %v1643 = vsel %vm1142, %v1630, -inf
        %1644 = vmax.xlane.f32.xlu0 %v1643
        %v1645 = vpop.xlane.xlu0 %1644
        %v1646 = vsel %vm1149, %v1635, -inf
        %1647 = vmax.xlane.f32.xlu0 %v1646
        %v1648 = vpop.xlane.xlu0 %1647
        %v1649 = vsub.f32 %v1627, %v1642
        %v1650 = vsub.f32 %v1630, %v1645
        %v1651 = vsub.f32 %v1635, %v1648
        %v1652 = vmul.f32 %v1649, 1.442695
        %v1653 = vpow.pop %v1652
        %v1654 = vmul.f32 %v1650, 1.442695
        %v1655 = vpow.pop %v1654
        %v1656 = vmul.f32 %v1651, 1.442695
        %v1657 = vpow.pop %v1656
        %v1658 = vsel %vm1142, %v1653, 0.0
        %1659 = vadd.xlane.f32.xlu0 %v1658
        %v1660 = vpop.xlane.xlu0 %1659
        %v1661 = vsel %vm1142, %v1655, 0.0
        %1662 = vadd.xlane.f32.xlu0 %v1661
        %v1663 = vpop.xlane.xlu0 %1662
        %v1664 = vsel %vm1149, %v1657, 0.0
        %1665 = vadd.xlane.f32.xlu0 %v1664
        %v1666 = vpop.xlane.xlu0 %1665
        %v1667 = vrcp.pop %v1660
        %v1668 = vrcp.pop %v1663
        %v1669 = vrcp.pop %v1666
        %v1670 = vmul.f32 %v1653, %v1667
        %v1671 = vmul.f32 %v1655, %v1668
        %v1672 = vmul.f32 %v1657, %v1669
        %v1673 = vpack.c.bf16 %v1671, %v1670
        %v1674 = vpack.c.bf16 %v1672, %v1672
        %1675 = vrot.lane.b32.xlu0 %v1073, 40
        %v1676 = vpop.permute.xlu0 %1675
        %1677 = vrot.lane.b32.xlu0 %v1074, 40
        %v1678 = vpop.permute.xlu0 %1677
        %v1681 = vsel %vm1142, %v1673, 0
        %v1684 = vsel %vm1142, %v1674, 0
        %v1687 = vsel %vm1190, %v1678, 0
        %1689 = vmatprep.subr.bf16.mxu0 0
        %1690 = vmatpush1.bf16.msra.mxu0 %v1676
        %1691 = vmatprep.subr.bf16.mxu0 0
        %1692 = vmatpush1.bf16.msra.mxu0 %v1687
        %1693 = vmatprep.subr.bf16.mxu0 0
        %1694 = vmatpush1.bf16.msra.mxu0 0
        %1695 = vmatprep.subr.bf16.mxu0 0
        %1696 = vmatpush1.bf16.msra.mxu0 0
        %1697 = vmatprep.subr.bf16.mxu0 0
        %1698 = vmatpush1.bf16.msra.mxu0 0
        %1699 = vmatprep.subr.bf16.mxu0 0
        %1700 = vmatpush1.bf16.msra.mxu0 0
        %1701 = vmatprep.subr.bf16.mxu0 0
        %1702 = vmatpush1.bf16.msra.mxu0 0
        %1703 = vmatprep.subr.bf16.mxu0 0
        %1704 = vmatpush1.bf16.msra.mxu0 0
        %1705 = vmatprep.subr.bf16.mxu0 0
        %1706 = vmatpush1.bf16.msra.mxu0 0
        %1707 = vmatprep.subr.bf16.mxu0 0
        %1708 = vmatpush1.bf16.msra.mxu0 0
        %1709 = vmatprep.subr.bf16.mxu0 0
        %1710 = vmatpush1.bf16.msra.mxu0 0
        %1711 = vmatprep.subr.bf16.mxu0 0
        %1712 = vmatpush1.bf16.msra.mxu0 0
        %1713 = vmatprep.subr.bf16.mxu0 0
        %1714 = vmatpush1.bf16.msra.mxu0 0
        %1715 = vmatprep.subr.bf16.mxu0 0
        %1716 = vmatpush1.bf16.msra.mxu0 0
        %1717 = vmatprep.subr.bf16.mxu0 0
        %1718 = vmatpush1.bf16.msra.mxu0 0
        %1719 = vmatprep.subr.bf16.mxu0 0
        %1720 = vmatpush1.bf16.msra.mxu0 0
        %1721 = vmatprep.mubr.bf16.mxu0 0
        %1722 = vmatmul.mubr.bf16.gmra.mrb[0].mxu0 %v1681
        %v1723 = vpop.f32.mrb[0].mxu0
        %v1724 = vadd.f32 0.0, %v1723
        %v1725 = vpop.f32.mrb[0].mxu0
        %v1726 = vpop.f32.mrb[0].mxu0
        %v1727 = vadd.f32 0.0, %v1726
        %v1728 = vpop.f32.mrb[0].mxu0
        %1729 = vmatprep.mubr.bf16.mxu0 0
        %1730 = vmatmul.mubr.bf16.gmra.mrb[0].mxu0 %v1684
        %v1731 = vpop.f32.mrb[0].mxu0
        %v1732 = vadd.f32 0.0, %v1731
        %v1733 = vpop.f32.mrb[0].mxu0
        %v1734 = vpop.f32.mrb[0].mxu0
        %v1735 = vpop.f32.mrb[0].mxu0
        %1736 = vdwg.mxu0
        %1740 = vrot.lane.b32.xlu0 %v1394, 8
        %v1741 = vpop.permute.xlu0 %1740
        %1742 = vrot.lane.b32.xlu0 %v1397, 8
        %v1743 = vpop.permute.xlu0 %1742
        %1744 = vrot.lane.b32.xlu0 %v1402, 8
        %v1745 = vpop.permute.xlu0 %1744
        %1752 = vrot.lane.b32.xlu0 %v1559, 16
        %v1753 = vpop.permute.xlu0 %1752
        %1754 = vrot.lane.b32.xlu0 %v1562, 16
        %v1755 = vpop.permute.xlu0 %1754
        %1756 = vrot.lane.b32.xlu0 %v1567, 16
        %v1757 = vpop.permute.xlu0 %1756
        %1764 = vrot.lane.b32.xlu0 %v1724, 24
        %v1765 = vpop.permute.xlu0 %1764
        %1766 = vrot.lane.b32.xlu0 %v1727, 24
        %v1767 = vpop.permute.xlu0 %1766
        %1768 = vrot.lane.b32.xlu0 %v1732, 24
        %v1769 = vpop.permute.xlu0 %1768
        %v1773 = vsel %vm1081, %v1229, %v1741
        %v1774 = vsel %vm1081, %v1232, %v1743
        %v1775 = vsel %vm1081, %v1237, %v1745
        %vm1776 = vcmask 130048
        %v1777 = vsel %vm1776, %v1773, %v1753
        %v1778 = vsel %vm1776, %v1774, %v1755
        %v1779 = vsel %vm1776, %v1775, %v1757
        %vm1780 = vcmask 195584
        %v1781 = vsel %vm1780, %v1777, %v1765
        %v1782 = vsel %vm1780, %v1778, %v1767
        %v1783 = vsel %vm1780, %v1779, %v1769
        %v1784 = vpack.c.bf16 %v1782, %v1781
        %v1785 = vpack.c.bf16 %v1783, %v1783
        %v1786 = vld [vmem:[%s10] sm:$0xf]
        %v1787 = vld [vmem:[%s10 + $0x4] sm:$0xf]
        %v1788 = vld [vmem:[%s10 + $0x8] sm:$0xf]
        %v1789 = vld [vmem:[%s10 + $0xc] sm:$0xf]
        %v1790 = vld [vmem:[%s11] sm:$0x1]
        %v1792 = vlaneseq
        %v1793 = vshrl.u32 %v1792, 7
        %v1794 = vsub.s32 0, %v1793
        %v1795 = vrot.slane %v1790, %v1794
        %v1801 = vunpack.c.l.b16 %v1786
        %v1802 = vunpack.c.l.b16 %v1787
        %v1803 = vunpack.c.l.b16 %v1788
        %v1804 = vunpack.c.l.b16 %v1789
        %v1805 = vpack.c.b16 %v1802, %v1801
        %v1806 = vpack.c.b16 %v1804, %v1803
        %v1810 = vsel %vm934, %v1784, 0
        %v1813 = vsel %vm934, %v1785, 0
        %1815 = vmatprep.subr.bf16.mxu0 0
        %1816 = vmatpush1.bf16.msra.mxu0 %v1805
        %1817 = vmatprep.subr.bf16.mxu0 0
        %1818 = vmatpush1.bf16.msra.mxu0 %v1806
        %1819 = vmatprep.subr.bf16.mxu0 0
        %1820 = vmatpush1.bf16.msra.mxu0 0
        %1821 = vmatprep.subr.bf16.mxu0 0
        %1822 = vmatpush1.bf16.msra.mxu0 0
        %1823 = vmatprep.subr.bf16.mxu0 0
        %1824 = vmatpush1.bf16.msra.mxu0 0
        %1825 = vmatprep.subr.bf16.mxu0 0
        %1826 = vmatpush1.bf16.msra.mxu0 0
        %1827 = vmatprep.subr.bf16.mxu0 0
        %1828 = vmatpush1.bf16.msra.mxu0 0
        %1829 = vmatprep.subr.bf16.mxu0 0
        %1830 = vmatpush1.bf16.msra.mxu0 0
        %1831 = vmatprep.subr.bf16.mxu0 0
        %1832 = vmatpush1.bf16.msra.mxu0 0
        %1833 = vmatprep.subr.bf16.mxu0 0
        %1834 = vmatpush1.bf16.msra.mxu0 0
        %1835 = vmatprep.subr.bf16.mxu0 0
        %1836 = vmatpush1.bf16.msra.mxu0 0
        %1837 = vmatprep.subr.bf16.mxu0 0
        %1838 = vmatpush1.bf16.msra.mxu0 0
        %1839 = vmatprep.subr.bf16.mxu0 0
        %1840 = vmatpush1.bf16.msra.mxu0 0
        %1841 = vmatprep.subr.bf16.mxu0 0
        %1842 = vmatpush1.bf16.msra.mxu0 0
        %1843 = vmatprep.subr.bf16.mxu0 0
        %1844 = vmatpush1.bf16.msra.mxu0 0
        %1845 = vmatprep.subr.bf16.mxu0 0
        %1846 = vmatpush1.bf16.msra.mxu0 0
        %1847 = vmatprep.mubr.bf16.mxu0 0
        %1848 = vmatmul.mubr.bf16.gmra.mrb[0].mxu0 %v1810
        %v1849 = vpop.f32.mrb[0].mxu0
        %v1850 = vadd.f32 %v1795, %v1849
        %v1851 = vpop.f32.mrb[0].mxu0
        %v1852 = vpop.f32.mrb[0].mxu0
        %v1853 = vadd.f32 %v1795, %v1852
        %v1854 = vpop.f32.mrb[0].mxu0
        %1855 = vmatprep.mubr.bf16.mxu0 0
        %1856 = vmatmul.mubr.bf16.gmra.mrb[0].mxu0 %v1813
        %v1857 = vpop.f32.mrb[0].mxu0
        %v1858 = vadd.f32 %v1795, %v1857
        %v1859 = vpop.f32.mrb[0].mxu0
        %v1860 = vpop.f32.mrb[0].mxu0
        %v1861 = vpop.f32.mrb[0].mxu0
        %1862 = vdwg.mxu0
        %v1863 = vadd.f32 %v896, %v1850
        %v1864 = vadd.f32 %v899, %v1853
        %v1865 = vadd.f32 %v904, %v1858
        %v1866 = vld [vmem:[%s12] sm:$0x1]
        %v1867 = vld [vmem:[%s13] sm:$0x1]
        %v1868 = vsel %vm934, %v1863, 0.0
        %1869 = vadd.xlane.f32.xlu0 %v1868
        %v1870 = vpop.xlane.xlu0 %1869
        %v1871 = vsel %vm934, %v1864, 0.0
        %1872 = vadd.xlane.f32.xlu0 %v1871
        %v1873 = vpop.xlane.xlu0 %1872
        %v1874 = vsel %vm941, %v1865, 0.0
        %1875 = vadd.xlane.f32.xlu0 %v1874
        %v1876 = vpop.xlane.xlu0 %1875
        %v1877 = vmul.f32 %v1870, %v945
        %v1878 = vmul.f32 %v1873, %v945
        %v1879 = vmul.f32 %v1876, %v945
        %v1880 = vsub.f32 %v1863, %v1877
        %v1881 = vsub.f32 %v1864, %v1878
        %v1882 = vsub.f32 %v1865, %v1879
        %v1883 = vmul.f32 %v1880, %v1880
        %v1884 = vmul.f32 %v1881, %v1881
        %v1885 = vmul.f32 %v1882, %v1882
        %v1886 = vsel %vm934, %v1883, 0.0
        %1887 = vadd.xlane.f32.xlu0 %v1886
        %v1888 = vpop.xlane.xlu0 %1887
        %v1889 = vsel %vm934, %v1884, 0.0
        %1890 = vadd.xlane.f32.xlu0 %v1889
        %v1891 = vpop.xlane.xlu0 %1890
        %v1892 = vsel %vm941, %v1885, 0.0
        %1893 = vadd.xlane.f32.xlu0 %v1892
        %v1894 = vpop.xlane.xlu0 %1893
        %v1895 = vmul.f32 %v1888, %v945
        %v1896 = vmul.f32 %v1891, %v945
        %v1897 = vmul.f32 %v1894, %v945
        %v1898 = vadd.f32 %v1895, 1e-06
        %v1899 = vadd.f32 %v1896, 1e-06
        %v1900 = vadd.f32 %v1897, 1e-06
        %v1901 = vrsqrt.pop %v1898
        %v1902 = vrsqrt.pop %v1899
        %v1903 = vrsqrt.pop %v1900
        %v1904 = vmul.f32 %v1880, %v1901
        %v1905 = vmul.f32 %v1881, %v1902
        %v1906 = vmul.f32 %v1882, %v1903
        %v1908 = vlaneseq
        %v1909 = vshrl.u32 %v1908, 7
        %v1910 = vsub.s32 0, %v1909
        %v1911 = vrot.slane %v1866, %v1910
        %v1913 = vmul.f32 %v1904, %v1911
        %v1914 = vmul.f32 %v1905, %v1911
        %v1915 = vmul.f32 %v1906, %v1911
        %v1917 = vlaneseq
        %v1918 = vshrl.u32 %v1917, 7
        %v1919 = vsub.s32 0, %v1918
        %v1920 = vrot.slane %v1867, %v1919
        %v1922 = vadd.f32 %v1913, %v1920
        %v1923 = vadd.f32 %v1914, %v1920
        %v1924 = vadd.f32 %v1915, %v1920
        %v1925 = vpack.c.bf16 %v1923, %v1922
        %v1926 = vpack.c.bf16 %v1924, %v1924
        %v1927 = vld [vmem:[%s14] sm:$0xf]
        %v1928 = vld [vmem:[%s14 + $0x4] sm:$0xf]
        %v1929 = vld [vmem:[%s14 + $0x8] sm:$0xf]
        %v1930 = vld [vmem:[%s14 + $0xc] sm:$0xf]
        %v1931 = vld [vmem:[%s15] sm:$0x1]
        %v1933 = vlaneseq
        %v1934 = vshrl.u32 %v1933, 7
        %v1935 = vsub.s32 0, %v1934
        %v1936 = vrot.slane %v1931, %v1935
        %v1942 = vunpack.c.l.b16 %v1927
        %v1943 = vunpack.c.l.b16 %v1928
        %v1944 = vunpack.c.l.b16 %v1929
        %v1945 = vunpack.c.l.b16 %v1930
        %v1946 = vpack.c.b16 %v1943, %v1942
        %v1947 = vpack.c.b16 %v1945, %v1944
        %v1951 = vsel %vm934, %v1925, 0
        %v1954 = vsel %vm934, %v1926, 0
        %1956 = vmatprep.subr.bf16.mxu0 0
        %1957 = vmatpush1.bf16.msra.mxu0 %v1946
        %1958 = vmatprep.subr.bf16.mxu0 0
        %1959 = vmatpush1.bf16.msra.mxu0 %v1947
        %1960 = vmatprep.subr.bf16.mxu0 0
        %1961 = vmatpush1.bf16.msra.mxu0 0
        %1962 = vmatprep.subr.bf16.mxu0 0
        %1963 = vmatpush1.bf16.msra.mxu0 0
        %1964 = vmatprep.subr.bf16.mxu0 0
        %1965 = vmatpush1.bf16.msra.mxu0 0
        %1966 = vmatprep.subr.bf16.mxu0 0
        %1967 = vmatpush1.bf16.msra.mxu0 0
        %1968 = vmatprep.subr.bf16.mxu0 0
        %1969 = vmatpush1.bf16.msra.mxu0 0
        %1970 = vmatprep.subr.bf16.mxu0 0
        %1971 = vmatpush1.bf16.msra.mxu0 0
        %1972 = vmatprep.subr.bf16.mxu0 0
        %1973 = vmatpush1.bf16.msra.mxu0 0
        %1974 = vmatprep.subr.bf16.mxu0 0
        %1975 = vmatpush1.bf16.msra.mxu0 0
        %1976 = vmatprep.subr.bf16.mxu0 0
        %1977 = vmatpush1.bf16.msra.mxu0 0
        %1978 = vmatprep.subr.bf16.mxu0 0
        %1979 = vmatpush1.bf16.msra.mxu0 0
        %1980 = vmatprep.subr.bf16.mxu0 0
        %1981 = vmatpush1.bf16.msra.mxu0 0
        %1982 = vmatprep.subr.bf16.mxu0 0
        %1983 = vmatpush1.bf16.msra.mxu0 0
        %1984 = vmatprep.subr.bf16.mxu0 0
        %1985 = vmatpush1.bf16.msra.mxu0 0
        %1986 = vmatprep.subr.bf16.mxu0 0
        %1987 = vmatpush1.bf16.msra.mxu0 0
        %1988 = vmatprep.mubr.bf16.mxu0 0
        %1989 = vmatmul.mubr.bf16.gmra.mrb[0].mxu0 %v1951
        %v1990 = vpop.f32.mrb[0].mxu0
        %v1991 = vadd.f32 %v1936, %v1990
        %v1992 = vpop.f32.mrb[0].mxu0
        %v1993 = vpop.f32.mrb[0].mxu0
        %v1994 = vadd.f32 %v1936, %v1993
        %v1995 = vpop.f32.mrb[0].mxu0
        %1996 = vmatprep.mubr.bf16.mxu0 0
        %1997 = vmatmul.mubr.bf16.gmra.mrb[0].mxu0 %v1954
        %v1998 = vpop.f32.mrb[0].mxu0
        %v1999 = vadd.f32 %v1936, %v1998
        %v2000 = vpop.f32.mrb[0].mxu0
        %v2001 = vpop.f32.mrb[0].mxu0
        %v2002 = vpop.f32.mrb[0].mxu0
        %2003 = vdwg.mxu0
        %v2004 = vmul.f32 %v1991, 0.5
        %v2005 = vmul.f32 %v1994, 0.5
        %v2006 = vmul.f32 %v1999, 0.5
        %v2007 = vmul.f32 %v1991, 0.70710677
        %v2008 = vmul.f32 %v1994, 0.70710677
        %v2009 = vmul.f32 %v1999, 0.70710677
        %v2010 = verf.f32.pop %v2007
        %v2011 = verf.f32.pop %v2008
        %v2012 = verf.f32.pop %v2009
        %v2013 = vadd.f32 %v2010, 1.0
        %v2014 = vadd.f32 %v2011, 1.0
        %v2015 = vadd.f32 %v2012, 1.0
        %v2016 = vmul.f32 %v2004, %v2013
        %v2017 = vmul.f32 %v2005, %v2014
        %v2018 = vmul.f32 %v2006, %v2015
        %v2019 = vpack.c.bf16 %v2017, %v2016
        %v2020 = vpack.c.bf16 %v2018, %v2018
        %v2021 = vld [vmem:[%s16] sm:$0xf]
        %v2022 = vld [vmem:[%s16 + $0x4] sm:$0xf]
        %v2023 = vld [vmem:[%s16 + $0x8] sm:$0xf]
        %v2024 = vld [vmem:[%s16 + $0xc] sm:$0xf]
        %v2025 = vld [vmem:[%s16 + $0x10] sm:$0xf]
        %v2026 = vld [vmem:[%s16 + $0x14] sm:$0xf]
        %v2027 = vld [vmem:[%s16 + $0x18] sm:$0xf]
        %v2028 = vld [vmem:[%s16 + $0x1c] sm:$0xf]
        %v2029 = vld [vmem:[%s17] sm:$0x1]
        %v2031 = vlaneseq
        %v2032 = vshrl.u32 %v2031, 7
        %v2033 = vsub.s32 0, %v2032
        %v2034 = vrot.slane %v2029, %v2033
        %v2044 = vunpack.c.l.b16 %v2021
        %v2045 = vunpack.c.l.b16 %v2022
        %v2046 = vunpack.c.l.b16 %v2023
        %v2047 = vunpack.c.l.b16 %v2024
        %v2048 = vunpack.c.l.b16 %v2025
        %v2049 = vunpack.c.l.b16 %v2026
        %v2050 = vunpack.c.l.b16 %v2027
        %v2051 = vunpack.c.l.b16 %v2028
        %v2052 = vpack.c.b16 %v2045, %v2044
        %v2053 = vpack.c.b16 %v2047, %v2046
        %v2054 = vpack.c.b16 %v2049, %v2048
        %v2055 = vpack.c.b16 %v2051, %v2050
        %v2061 = vsel %vm854, %v2019, 0
        %v2064 = vsel %vm854, %v2020, 0
        %2066 = vmatprep.subr.bf16.mxu0 0
        %2067 = vmatpush1.bf16.msra.mxu0 %v2052
        %2068 = vmatprep.subr.bf16.mxu0 0
        %2069 = vmatpush1.bf16.msra.mxu0 %v2053
        %2070 = vmatprep.subr.bf16.mxu0 0
        %2071 = vmatpush1.bf16.msra.mxu0 %v2054
        %2072 = vmatprep.subr.bf16.mxu0 0
        %2073 = vmatpush1.bf16.msra.mxu0 %v2055
        %2074 = vmatprep.subr.bf16.mxu0 0
        %2075 = vmatpush1.bf16.msra.mxu0 0
        %2076 = vmatprep.subr.bf16.mxu0 0
        %2077 = vmatpush1.bf16.msra.mxu0 0
        %2078 = vmatprep.subr.bf16.mxu0 0
        %2079 = vmatpush1.bf16.msra.mxu0 0
        %2080 = vmatprep.subr.bf16.mxu0 0
        %2081 = vmatpush1.bf16.msra.mxu0 0
        %2082 = vmatprep.subr.bf16.mxu0 0
        %2083 = vmatpush1.bf16.msra.mxu0 0
        %2084 = vmatprep.subr.bf16.mxu0 0
        %2085 = vmatpush1.bf16.msra.mxu0 0
        %2086 = vmatprep.subr.bf16.mxu0 0
        %2087 = vmatpush1.bf16.msra.mxu0 0
        %2088 = vmatprep.subr.bf16.mxu0 0
        %2089 = vmatpush1.bf16.msra.mxu0 0
        %2090 = vmatprep.subr.bf16.mxu0 0
        %2091 = vmatpush1.bf16.msra.mxu0 0
        %2092 = vmatprep.subr.bf16.mxu0 0
        %2093 = vmatpush1.bf16.msra.mxu0 0
        %2094 = vmatprep.subr.bf16.mxu0 0
        %2095 = vmatpush1.bf16.msra.mxu0 0
        %2096 = vmatprep.subr.bf16.mxu0 0
        %2097 = vmatpush1.bf16.msra.mxu0 0
        %2098 = vmatprep.mubr.bf16.mxu0 0
        %2099 = vmatmul.mubr.bf16.gmra.mrb[0].mxu0 %v2061
        %v2100 = vpop.f32.mrb[0].mxu0
        %v2101 = vadd.f32 %v2034, %v2100
        %v2102 = vpop.f32.mrb[0].mxu0
        %v2103 = vpop.f32.mrb[0].mxu0
        %v2104 = vadd.f32 %v2034, %v2103
        %v2105 = vpop.f32.mrb[0].mxu0
        %2106 = vmatprep.mubr.bf16.mxu0 0
        %2107 = vmatmul.mubr.bf16.gmra.mrb[0].mxu0 %v2064
        %v2108 = vpop.f32.mrb[0].mxu0
        %v2109 = vadd.f32 %v2034, %v2108
        %v2110 = vpop.f32.mrb[0].mxu0
        %v2111 = vpop.f32.mrb[0].mxu0
        %v2112 = vpop.f32.mrb[0].mxu0
        %2113 = vdwg.mxu0
        %v2114 = vadd.f32 %v1863, %v2101
        %v2115 = vadd.f32 %v1864, %v2104
        %v2116 = vadd.f32 %v1865, %v2109
        %s2117 = scalar_lea.vmem %s6, 1
        %v2118 = vld [vmem:[%s2117] sm:$0x1]
        %s2119 = scalar_lea.vmem %s7, 1
        %v2120 = vld [vmem:[%s2119] sm:$0x1]
        %v2121 = vsel %vm934, %v2114, 0.0
        %2122 = vadd.xlane.f32.xlu0 %v2121
        %v2123 = vpop.xlane.xlu0 %2122
        %v2124 = vsel %vm934, %v2115, 0.0
        %2125 = vadd.xlane.f32.xlu0 %v2124
        %v2126 = vpop.xlane.xlu0 %2125
        %v2127 = vsel %vm941, %v2116, 0.0
        %2128 = vadd.xlane.f32.xlu0 %v2127
        %v2129 = vpop.xlane.xlu0 %2128
        %v2130 = vmul.f32 %v2123, %v945
        %v2131 = vmul.f32 %v2126, %v945
        %v2132 = vmul.f32 %v2129, %v945
        %v2133 = vsub.f32 %v2114, %v2130
        %v2134 = vsub.f32 %v2115, %v2131
        %v2135 = vsub.f32 %v2116, %v2132
        %v2136 = vmul.f32 %v2133, %v2133
        %v2137 = vmul.f32 %v2134, %v2134
        %v2138 = vmul.f32 %v2135, %v2135
        %v2139 = vsel %vm934, %v2136, 0.0
        %2140 = vadd.xlane.f32.xlu0 %v2139
        %v2141 = vpop.xlane.xlu0 %2140
        %v2142 = vsel %vm934, %v2137, 0.0
        %2143 = vadd.xlane.f32.xlu0 %v2142
        %v2144 = vpop.xlane.xlu0 %2143
        %v2145 = vsel %vm941, %v2138, 0.0
        %2146 = vadd.xlane.f32.xlu0 %v2145
        %v2147 = vpop.xlane.xlu0 %2146
        %v2148 = vmul.f32 %v2141, %v945
        %v2149 = vmul.f32 %v2144, %v945
        %v2150 = vmul.f32 %v2147, %v945
        %v2151 = vadd.f32 %v2148, 1e-06
        %v2152 = vadd.f32 %v2149, 1e-06
        %v2153 = vadd.f32 %v2150, 1e-06
        %v2154 = vrsqrt.pop %v2151
        %v2155 = vrsqrt.pop %v2152
        %v2156 = vrsqrt.pop %v2153
        %v2157 = vmul.f32 %v2133, %v2154
        %v2158 = vmul.f32 %v2134, %v2155
        %v2159 = vmul.f32 %v2135, %v2156
        %v2161 = vlaneseq
        %v2162 = vshrl.u32 %v2161, 7
        %v2163 = vsub.s32 0, %v2162
        %v2164 = vrot.slane %v2118, %v2163
        %v2166 = vmul.f32 %v2157, %v2164
        %v2167 = vmul.f32 %v2158, %v2164
        %v2168 = vmul.f32 %v2159, %v2164
        %v2170 = vlaneseq
        %v2171 = vshrl.u32 %v2170, 7
        %v2172 = vsub.s32 0, %v2171
        %v2173 = vrot.slane %v2120, %v2172
        %v2175 = vadd.f32 %v2166, %v2173
        %v2176 = vadd.f32 %v2167, %v2173
        %v2177 = vadd.f32 %v2168, %v2173
        %v2178 = vpack.c.bf16 %v2176, %v2175
        %v2179 = vpack.c.bf16 %v2177, %v2177
        %s2180 = scalar_lea.vmem %s8, 16
        %v2181 = vld [vmem:[%s2180] sm:$0xf]
        %v2182 = vld [vmem:[%s2180 + $0x4] sm:$0xf]
        %v2183 = vld [vmem:[%s2180 + $0x8] sm:$0xf]
        %v2184 = vld [vmem:[%s2180 + $0xc] sm:$0xf]
        %s2185 = scalar_lea.vmem %s9, 1
        %v2186 = vld [vmem:[%s2185] sm:$0x1]
        %v2188 = vlaneseq
        %v2189 = vshrl.u32 %v2188, 7
        %v2190 = vsub.s32 0, %v2189
        %v2191 = vrot.slane %v2186, %v2190
        %v2197 = vunpack.c.l.b16 %v2181
        %v2198 = vunpack.c.l.b16 %v2182
        %v2199 = vunpack.c.l.b16 %v2183
        %v2200 = vunpack.c.l.b16 %v2184
        %v2201 = vpack.c.b16 %v2198, %v2197
        %v2202 = vpack.c.b16 %v2200, %v2199
        %v2206 = vsel %vm934, %v2178, 0
        %v2209 = vsel %vm934, %v2179, 0
        %2211 = vmatprep.subr.bf16.mxu0 0
        %2212 = vmatpush1.bf16.msra.mxu0 %v2201
        %2213 = vmatprep.subr.bf16.mxu0 0
        %2214 = vmatpush1.bf16.msra.mxu0 %v2202
        %2215 = vmatprep.subr.bf16.mxu0 0
        %2216 = vmatpush1.bf16.msra.mxu0 0
        %2217 = vmatprep.subr.bf16.mxu0 0
        %2218 = vmatpush1.bf16.msra.mxu0 0
        %2219 = vmatprep.subr.bf16.mxu0 0
        %2220 = vmatpush1.bf16.msra.mxu0 0
        %2221 = vmatprep.subr.bf16.mxu0 0
        %2222 = vmatpush1.bf16.msra.mxu0 0
        %2223 = vmatprep.subr.bf16.mxu0 0
        %2224 = vmatpush1.bf16.msra.mxu0 0
        %2225 = vmatprep.subr.bf16.mxu0 0
        %2226 = vmatpush1.bf16.msra.mxu0 0
        %2227 = vmatprep.subr.bf16.mxu0 0
        %2228 = vmatpush1.bf16.msra.mxu0 0
        %2229 = vmatprep.subr.bf16.mxu0 0
        %2230 = vmatpush1.bf16.msra.mxu0 0
        %2231 = vmatprep.subr.bf16.mxu0 0
        %2232 = vmatpush1.bf16.msra.mxu0 0
        %2233 = vmatprep.subr.bf16.mxu0 0
        %2234 = vmatpush1.bf16.msra.mxu0 0
        %2235 = vmatprep.subr.bf16.mxu0 0
        %2236 = vmatpush1.bf16.msra.mxu0 0
        %2237 = vmatprep.subr.bf16.mxu0 0
        %2238 = vmatpush1.bf16.msra.mxu0 0
        %2239 = vmatprep.subr.bf16.mxu0 0
        %2240 = vmatpush1.bf16.msra.mxu0 0
        %2241 = vmatprep.subr.bf16.mxu0 0
        %2242 = vmatpush1.bf16.msra.mxu0 0
        %2243 = vmatprep.mubr.bf16.mxu0 0
        %2244 = vmatmul.mubr.bf16.gmra.mrb[0].mxu0 %v2206
        %v2245 = vpop.f32.mrb[0].mxu0
        %v2246 = vadd.f32 %v2191, %v2245
        %v2247 = vpop.f32.mrb[0].mxu0
        %v2248 = vpop.f32.mrb[0].mxu0
        %v2249 = vadd.f32 %v2191, %v2248
        %v2250 = vpop.f32.mrb[0].mxu0
        %2251 = vmatprep.mubr.bf16.mxu0 0
        %2252 = vmatmul.mubr.bf16.gmra.mrb[0].mxu0 %v2209
        %v2253 = vpop.f32.mrb[0].mxu0
        %v2254 = vadd.f32 %v2191, %v2253
        %v2255 = vpop.f32.mrb[0].mxu0
        %v2256 = vpop.f32.mrb[0].mxu0
        %v2257 = vpop.f32.mrb[0].mxu0
        %2258 = vdwg.mxu0
        %v2259 = vpack.c.bf16 %v2249, %v2246
        %v2260 = vpack.c.bf16 %v2254, %v2254
        %2263 = vrot.lane.b32.xlu0 %v2259, 96
        %v2264 = vpop.permute.xlu0 %2263
        %2265 = vrot.lane.b32.xlu0 %v2260, 96
        %v2266 = vpop.permute.xlu0 %2265
        %v2268 = vsel %vm1081, %v2259, 0
        %v2271 = vsel %vm1081, %v2260, 0
        %v2274 = vsel %vm1081, %v2264, 0
        %v2277 = vsel %vm1081, %v2266, 0
        %2279 = vmatprep.subr.bf16.mxu0 0
        %2280 = vmatpush1.bf16.xpose.msra.mxu0 %v2274
        %2281 = vmatprep.subr.bf16.mxu0 0
        %2282 = vmatpush1.bf16.xpose.msra.mxu0 %v2277
        %2283 = vmatprep.subr.bf16.mxu0 0
        %2284 = vmatpush1.bf16.xpose.msra.mxu0 0
        %2285 = vmatprep.subr.bf16.mxu0 0
        %2286 = vmatpush1.bf16.xpose.msra.mxu0 0
        %2287 = vmatprep.subr.bf16.mxu0 0
        %2288 = vmatpush1.bf16.xpose.msra.mxu0 0
        %2289 = vmatprep.subr.bf16.mxu0 0
        %2290 = vmatpush1.bf16.xpose.msra.mxu0 0
        %2291 = vmatprep.subr.bf16.mxu0 0
        %2292 = vmatpush1.bf16.xpose.msra.mxu0 0
        %2293 = vmatprep.subr.bf16.mxu0 0
        %2294 = vmatpush1.bf16.xpose.msra.mxu0 0
        %2295 = vmatprep.subr.bf16.mxu0 0
        %2296 = vmatpush1.bf16.xpose.msra.mxu0 0
        %2297 = vmatprep.subr.bf16.mxu0 0
        %2298 = vmatpush1.bf16.xpose.msra.mxu0 0
        %2299 = vmatprep.subr.bf16.mxu0 0
        %2300 = vmatpush1.bf16.xpose.msra.mxu0 0
        %2301 = vmatprep.subr.bf16.mxu0 0
        %2302 = vmatpush1.bf16.xpose.msra.mxu0 0
        %2303 = vmatprep.subr.bf16.mxu0 0
        %2304 = vmatpush1.bf16.xpose.msra.mxu0 0
        %2305 = vmatprep.subr.bf16.mxu0 0
        %2306 = vmatpush1.bf16.xpose.msra.mxu0 0
        %2307 = vmatprep.subr.bf16.mxu0 0
        %2308 = vmatpush1.bf16.xpose.msra.mxu0 0
        %2309 = vmatprep.subr.bf16.mxu0 0
        %2310 = vmatpush1.bf16.xpose.msra.mxu0 0
        %2311 = vmatprep.mubr.bf16.mxu0 0
        %2312 = vmatmul.mubr.bf16.gmra.mrb[0].mxu0 %v2268
        %v2313 = vpop.f32.mrb[0].mxu0
        %v2314 = vadd.f32 %v929, %v2313
        %v2315 = vpop.f32.mrb[0].mxu0
        %v2316 = vpop.f32.mrb[0].mxu0
        %v2317 = vadd.f32 %v930, %v2316
        %v2318 = vpop.f32.mrb[0].mxu0
        %2319 = vmatprep.mubr.bf16.mxu0 0
        %2320 = vmatmul.mubr.bf16.gmra.mrb[0].mxu0 %v2271
        %v2321 = vpop.f32.mrb[0].mxu0
        %v2322 = vadd.f32 %v931, %v2321
        %v2323 = vpop.f32.mrb[0].mxu0
        %v2324 = vpop.f32.mrb[0].mxu0
        %v2325 = vpop.f32.mrb[0].mxu0
        %2326 = vdwg.mxu0
        %v2327 = vsel %vm1142, %v2314, -inf
        %2328 = vmax.xlane.f32.xlu0 %v2327
        %v2329 = vpop.xlane.xlu0 %2328
        %v2330 = vsel %vm1142, %v2317, -inf
        %2331 = vmax.xlane.f32.xlu0 %v2330
        %v2332 = vpop.xlane.xlu0 %2331
        %v2333 = vsel %vm1149, %v2322, -inf
        %2334 = vmax.xlane.f32.xlu0 %v2333
        %v2335 = vpop.xlane.xlu0 %2334
        %v2336 = vsub.f32 %v2314, %v2329
        %v2337 = vsub.f32 %v2317, %v2332
        %v2338 = vsub.f32 %v2322, %v2335
        %v2339 = vmul.f32 %v2336, 1.442695
        %v2340 = vpow.pop %v2339
        %v2341 = vmul.f32 %v2337, 1.442695
        %v2342 = vpow.pop %v2341
        %v2343 = vmul.f32 %v2338, 1.442695
        %v2344 = vpow.pop %v2343
        %v2345 = vsel %vm1142, %v2340, 0.0
        %2346 = vadd.xlane.f32.xlu0 %v2345
        %v2347 = vpop.xlane.xlu0 %2346
        %v2348 = vsel %vm1142, %v2342, 0.0
        %2349 = vadd.xlane.f32.xlu0 %v2348
        %v2350 = vpop.xlane.xlu0 %2349
        %v2351 = vsel %vm1149, %v2344, 0.0
        %2352 = vadd.xlane.f32.xlu0 %v2351
        %v2353 = vpop.xlane.xlu0 %2352
        %v2354 = vrcp.pop %v2347
        %v2355 = vrcp.pop %v2350
        %v2356 = vrcp.pop %v2353
        %v2357 = vmul.f32 %v2340, %v2354
        %v2358 = vmul.f32 %v2342, %v2355
        %v2359 = vmul.f32 %v2344, %v2356
        %v2360 = vpack.c.bf16 %v2358, %v2357
        %v2361 = vpack.c.bf16 %v2359, %v2359
        %2362 = vrot.lane.b32.xlu0 %v2259, 64
        %v2363 = vpop.permute.xlu0 %2362
        %2364 = vrot.lane.b32.xlu0 %v2260, 64
        %v2365 = vpop.permute.xlu0 %2364
        %v2368 = vsel %vm1142, %v2360, 0
        %v2371 = vsel %vm1142, %v2361, 0
        %v2374 = vsel %vm1190, %v2365, 0
        %2376 = vmatprep.subr.bf16.mxu0 0
        %2377 = vmatpush1.bf16.msra.mxu0 %v2363
        %2378 = vmatprep.subr.bf16.mxu0 0
        %2379 = vmatpush1.bf16.msra.mxu0 %v2374
        %2380 = vmatprep.subr.bf16.mxu0 0
        %2381 = vmatpush1.bf16.msra.mxu0 0
        %2382 = vmatprep.subr.bf16.mxu0 0
        %2383 = vmatpush1.bf16.msra.mxu0 0
        %2384 = vmatprep.subr.bf16.mxu0 0
        %2385 = vmatpush1.bf16.msra.mxu0 0
        %2386 = vmatprep.subr.bf16.mxu0 0
        %2387 = vmatpush1.bf16.msra.mxu0 0
        %2388 = vmatprep.subr.bf16.mxu0 0
        %2389 = vmatpush1.bf16.msra.mxu0 0
        %2390 = vmatprep.subr.bf16.mxu0 0
        %2391 = vmatpush1.bf16.msra.mxu0 0
        %2392 = vmatprep.subr.bf16.mxu0 0
        %2393 = vmatpush1.bf16.msra.mxu0 0
        %2394 = vmatprep.subr.bf16.mxu0 0
        %2395 = vmatpush1.bf16.msra.mxu0 0
        %2396 = vmatprep.subr.bf16.mxu0 0
        %2397 = vmatpush1.bf16.msra.mxu0 0
        %2398 = vmatprep.subr.bf16.mxu0 0
        %2399 = vmatpush1.bf16.msra.mxu0 0
        %2400 = vmatprep.subr.bf16.mxu0 0
        %2401 = vmatpush1.bf16.msra.mxu0 0
        %2402 = vmatprep.subr.bf16.mxu0 0
        %2403 = vmatpush1.bf16.msra.mxu0 0
        %2404 = vmatprep.subr.bf16.mxu0 0
        %2405 = vmatpush1.bf16.msra.mxu0 0
        %2406 = vmatprep.subr.bf16.mxu0 0
        %2407 = vmatpush1.bf16.msra.mxu0 0
        %2408 = vmatprep.mubr.bf16.mxu0 0
        %2409 = vmatmul.mubr.bf16.gmra.mrb[0].mxu0 %v2368
        %v2410 = vpop.f32.mrb[0].mxu0
        %v2411 = vadd.f32 0.0, %v2410
        %v2412 = vpop.f32.mrb[0].mxu0
        %v2413 = vpop.f32.mrb[0].mxu0
        %v2414 = vadd.f32 0.0, %v2413
        %v2415 = vpop.f32.mrb[0].mxu0
        %2416 = vmatprep.mubr.bf16.mxu0 0
        %2417 = vmatmul.mubr.bf16.gmra.mrb[0].mxu0 %v2371
        %v2418 = vpop.f32.mrb[0].mxu0
        %v2419 = vadd.f32 0.0, %v2418
        %v2420 = vpop.f32.mrb[0].mxu0
        %v2421 = vpop.f32.mrb[0].mxu0
        %v2422 = vpop.f32.mrb[0].mxu0
        %2423 = vdwg.mxu0
        %2424 = vrot.lane.b32.xlu0 %v2259, 120
        %v2425 = vpop.permute.xlu0 %2424
        %2426 = vrot.lane.b32.xlu0 %v2260, 120
        %v2427 = vpop.permute.xlu0 %2426
        %2428 = vrot.lane.b32.xlu0 %v2259, 88
        %v2429 = vpop.permute.xlu0 %2428
        %2430 = vrot.lane.b32.xlu0 %v2260, 88
        %v2431 = vpop.permute.xlu0 %2430
        %v2433 = vsel %vm1081, %v2425, 0
        %v2436 = vsel %vm1081, %v2427, 0
        %v2439 = vsel %vm1081, %v2429, 0
        %v2442 = vsel %vm1081, %v2431, 0
        %2444 = vmatprep.subr.bf16.mxu0 0
        %2445 = vmatpush1.bf16.xpose.msra.mxu0 %v2439
        %2446 = vmatprep.subr.bf16.mxu0 0
        %2447 = vmatpush1.bf16.xpose.msra.mxu0 %v2442
        %2448 = vmatprep.subr.bf16.mxu0 0
        %2449 = vmatpush1.bf16.xpose.msra.mxu0 0
        %2450 = vmatprep.subr.bf16.mxu0 0
        %2451 = vmatpush1.bf16.xpose.msra.mxu0 0
        %2452 = vmatprep.subr.bf16.mxu0 0
        %2453 = vmatpush1.bf16.xpose.msra.mxu0 0
        %2454 = vmatprep.subr.bf16.mxu0 0
        %2455 = vmatpush1.bf16.xpose.msra.mxu0 0
        %2456 = vmatprep.subr.bf16.mxu0 0
        %2457 = vmatpush1.bf16.xpose.msra.mxu0 0
        %2458 = vmatprep.subr.bf16.mxu0 0
        %2459 = vmatpush1.bf16.xpose.msra.mxu0 0
        %2460 = vmatprep.subr.bf16.mxu0 0
        %2461 = vmatpush1.bf16.xpose.msra.mxu0 0
        %2462 = vmatprep.subr.bf16.mxu0 0
        %2463 = vmatpush1.bf16.xpose.msra.mxu0 0
        %2464 = vmatprep.subr.bf16.mxu0 0
        %2465 = vmatpush1.bf16.xpose.msra.mxu0 0
        %2466 = vmatprep.subr.bf16.mxu0 0
        %2467 = vmatpush1.bf16.xpose.msra.mxu0 0
        %2468 = vmatprep.subr.bf16.mxu0 0
        %2469 = vmatpush1.bf16.xpose.msra.mxu0 0
        %2470 = vmatprep.subr.bf16.mxu0 0
        %2471 = vmatpush1.bf16.xpose.msra.mxu0 0
        %2472 = vmatprep.subr.bf16.mxu0 0
        %2473 = vmatpush1.bf16.xpose.msra.mxu0 0
        %2474 = vmatprep.subr.bf16.mxu0 0
        %2475 = vmatpush1.bf16.xpose.msra.mxu0 0
        %2476 = vmatprep.mubr.bf16.mxu0 0
        %2477 = vmatmul.mubr.bf16.gmra.mrb[0].mxu0 %v2433
        %v2478 = vpop.f32.mrb[0].mxu0
        %v2479 = vadd.f32 %v929, %v2478
        %v2480 = vpop.f32.mrb[0].mxu0
        %v2481 = vpop.f32.mrb[0].mxu0
        %v2482 = vadd.f32 %v930, %v2481
        %v2483 = vpop.f32.mrb[0].mxu0
        %2484 = vmatprep.mubr.bf16.mxu0 0
        %2485 = vmatmul.mubr.bf16.gmra.mrb[0].mxu0 %v2436
        %v2486 = vpop.f32.mrb[0].mxu0
        %v2487 = vadd.f32 %v931, %v2486
        %v2488 = vpop.f32.mrb[0].mxu0
        %v2489 = vpop.f32.mrb[0].mxu0
        %v2490 = vpop.f32.mrb[0].mxu0
        %2491 = vdwg.mxu0
        %v2492 = vsel %vm1142, %v2479, -inf
        %2493 = vmax.xlane.f32.xlu0 %v2492
        %v2494 = vpop.xlane.xlu0 %2493
        %v2495 = vsel %vm1142, %v2482, -inf
        %2496 = vmax.xlane.f32.xlu0 %v2495
        %v2497 = vpop.xlane.xlu0 %2496
        %v2498 = vsel %vm1149, %v2487, -inf
        %2499 = vmax.xlane.f32.xlu0 %v2498
        %v2500 = vpop.xlane.xlu0 %2499
        %v2501 = vsub.f32 %v2479, %v2494
        %v2502 = vsub.f32 %v2482, %v2497
        %v2503 = vsub.f32 %v2487, %v2500
        %v2504 = vmul.f32 %v2501, 1.442695
        %v2505 = vpow.pop %v2504
        %v2506 = vmul.f32 %v2502, 1.442695
        %v2507 = vpow.pop %v2506
        %v2508 = vmul.f32 %v2503, 1.442695
        %v2509 = vpow.pop %v2508
        %v2510 = vsel %vm1142, %v2505, 0.0
        %2511 = vadd.xlane.f32.xlu0 %v2510
        %v2512 = vpop.xlane.xlu0 %2511
        %v2513 = vsel %vm1142, %v2507, 0.0
        %2514 = vadd.xlane.f32.xlu0 %v2513
        %v2515 = vpop.xlane.xlu0 %2514
        %v2516 = vsel %vm1149, %v2509, 0.0
        %2517 = vadd.xlane.f32.xlu0 %v2516
        %v2518 = vpop.xlane.xlu0 %2517
        %v2519 = vrcp.pop %v2512
        %v2520 = vrcp.pop %v2515
        %v2521 = vrcp.pop %v2518
        %v2522 = vmul.f32 %v2505, %v2519
        %v2523 = vmul.f32 %v2507, %v2520
        %v2524 = vmul.f32 %v2509, %v2521
        %v2525 = vpack.c.bf16 %v2523, %v2522
        %v2526 = vpack.c.bf16 %v2524, %v2524
        %2527 = vrot.lane.b32.xlu0 %v2259, 56
        %v2528 = vpop.permute.xlu0 %2527
        %2529 = vrot.lane.b32.xlu0 %v2260, 56
        %v2530 = vpop.permute.xlu0 %2529
        %v2533 = vsel %vm1142, %v2525, 0
        %v2536 = vsel %vm1142, %v2526, 0
        %v2539 = vsel %vm1190, %v2530, 0
        %2541 = vmatprep.subr.bf16.mxu0 0
        %2542 = vmatpush1.bf16.msra.mxu0 %v2528
        %2543 = vmatprep.subr.bf16.mxu0 0
        %2544 = vmatpush1.bf16.msra.mxu0 %v2539
        %2545 = vmatprep.subr.bf16.mxu0 0
        %2546 = vmatpush1.bf16.msra.mxu0 0
        %2547 = vmatprep.subr.bf16.mxu0 0
        %2548 = vmatpush1.bf16.msra.mxu0 0
        %2549 = vmatprep.subr.bf16.mxu0 0
        %2550 = vmatpush1.bf16.msra.mxu0 0
        %2551 = vmatprep.subr.bf16.mxu0 0
        %2552 = vmatpush1.bf16.msra.mxu0 0
        %2553 = vmatprep.subr.bf16.mxu0 0
        %2554 = vmatpush1.bf16.msra.mxu0 0
        %2555 = vmatprep.subr.bf16.mxu0 0
        %2556 = vmatpush1.bf16.msra.mxu0 0
        %2557 = vmatprep.subr.bf16.mxu0 0
        %2558 = vmatpush1.bf16.msra.mxu0 0
        %2559 = vmatprep.subr.bf16.mxu0 0
        %2560 = vmatpush1.bf16.msra.mxu0 0
        %2561 = vmatprep.subr.bf16.mxu0 0
        %2562 = vmatpush1.bf16.msra.mxu0 0
        %2563 = vmatprep.subr.bf16.mxu0 0
        %2564 = vmatpush1.bf16.msra.mxu0 0
        %2565 = vmatprep.subr.bf16.mxu0 0
        %2566 = vmatpush1.bf16.msra.mxu0 0
        %2567 = vmatprep.subr.bf16.mxu0 0
        %2568 = vmatpush1.bf16.msra.mxu0 0
        %2569 = vmatprep.subr.bf16.mxu0 0
        %2570 = vmatpush1.bf16.msra.mxu0 0
        %2571 = vmatprep.subr.bf16.mxu0 0
        %2572 = vmatpush1.bf16.msra.mxu0 0
        %2573 = vmatprep.mubr.bf16.mxu0 0
        %2574 = vmatmul.mubr.bf16.gmra.mrb[0].mxu0 %v2533
        %v2575 = vpop.f32.mrb[0].mxu0
        %v2576 = vadd.f32 0.0, %v2575
        %v2577 = vpop.f32.mrb[0].mxu0
        %v2578 = vpop.f32.mrb[0].mxu0
        %v2579 = vadd.f32 0.0, %v2578
        %v2580 = vpop.f32.mrb[0].mxu0
        %2581 = vmatprep.mubr.bf16.mxu0 0
        %2582 = vmatmul.mubr.bf16.gmra.mrb[0].mxu0 %v2536
        %v2583 = vpop.f32.mrb[0].mxu0
        %v2584 = vadd.f32 0.0, %v2583
        %v2585 = vpop.f32.mrb[0].mxu0
        %v2586 = vpop.f32.mrb[0].mxu0
        %v2587 = vpop.f32.mrb[0].mxu0
        %2588 = vdwg.mxu0
        %2589 = vrot.lane.b32.xlu0 %v2259, 112
        %v2590 = vpop.permute.xlu0 %2589
        %2591 = vrot.lane.b32.xlu0 %v2260, 112
        %v2592 = vpop.permute.xlu0 %2591
        %2593 = vrot.lane.b32.xlu0 %v2259, 80
        %v2594 = vpop.permute.xlu0 %2593
        %2595 = vrot.lane.b32.xlu0 %v2260, 80
        %v2596 = vpop.permute.xlu0 %2595
        %v2598 = vsel %vm1081, %v2590, 0
        %v2601 = vsel %vm1081, %v2592, 0
        %v2604 = vsel %vm1081, %v2594, 0
        %v2607 = vsel %vm1081, %v2596, 0
        %2609 = vmatprep.subr.bf16.mxu0 0
        %2610 = vmatpush1.bf16.xpose.msra.mxu0 %v2604
        %2611 = vmatprep.subr.bf16.mxu0 0
        %2612 = vmatpush1.bf16.xpose.msra.mxu0 %v2607
        %2613 = vmatprep.subr.bf16.mxu0 0
        %2614 = vmatpush1.bf16.xpose.msra.mxu0 0
        %2615 = vmatprep.subr.bf16.mxu0 0
        %2616 = vmatpush1.bf16.xpose.msra.mxu0 0
        %2617 = vmatprep.subr.bf16.mxu0 0
        %2618 = vmatpush1.bf16.xpose.msra.mxu0 0
        %2619 = vmatprep.subr.bf16.mxu0 0
        %2620 = vmatpush1.bf16.xpose.msra.mxu0 0
        %2621 = vmatprep.subr.bf16.mxu0 0
        %2622 = vmatpush1.bf16.xpose.msra.mxu0 0
        %2623 = vmatprep.subr.bf16.mxu0 0
        %2624 = vmatpush1.bf16.xpose.msra.mxu0 0
        %2625 = vmatprep.subr.bf16.mxu0 0
        %2626 = vmatpush1.bf16.xpose.msra.mxu0 0
        %2627 = vmatprep.subr.bf16.mxu0 0
        %2628 = vmatpush1.bf16.xpose.msra.mxu0 0
        %2629 = vmatprep.subr.bf16.mxu0 0
        %2630 = vmatpush1.bf16.xpose.msra.mxu0 0
        %2631 = vmatprep.subr.bf16.mxu0 0
        %2632 = vmatpush1.bf16.xpose.msra.mxu0 0
        %2633 = vmatprep.subr.bf16.mxu0 0
        %2634 = vmatpush1.bf16.xpose.msra.mxu0 0
        %2635 = vmatprep.subr.bf16.mxu0 0
        %2636 = vmatpush1.bf16.xpose.msra.mxu0 0
        %2637 = vmatprep.subr.bf16.mxu0 0
        %2638 = vmatpush1.bf16.xpose.msra.mxu0 0
        %2639 = vmatprep.subr.bf16.mxu0 0
        %2640 = vmatpush1.bf16.xpose.msra.mxu0 0
        %2641 = vmatprep.mubr.bf16.mxu0 0
        %2642 = vmatmul.mubr.bf16.gmra.mrb[0].mxu0 %v2598
        %v2643 = vpop.f32.mrb[0].mxu0
        %v2644 = vadd.f32 %v929, %v2643
        %v2645 = vpop.f32.mrb[0].mxu0
        %v2646 = vpop.f32.mrb[0].mxu0
        %v2647 = vadd.f32 %v930, %v2646
        %v2648 = vpop.f32.mrb[0].mxu0
        %2649 = vmatprep.mubr.bf16.mxu0 0
        %2650 = vmatmul.mubr.bf16.gmra.mrb[0].mxu0 %v2601
        %v2651 = vpop.f32.mrb[0].mxu0
        %v2652 = vadd.f32 %v931, %v2651
        %v2653 = vpop.f32.mrb[0].mxu0
        %v2654 = vpop.f32.mrb[0].mxu0
        %v2655 = vpop.f32.mrb[0].mxu0
        %2656 = vdwg.mxu0
        %v2657 = vsel %vm1142, %v2644, -inf
        %2658 = vmax.xlane.f32.xlu0 %v2657
        %v2659 = vpop.xlane.xlu0 %2658
        %v2660 = vsel %vm1142, %v2647, -inf
        %2661 = vmax.xlane.f32.xlu0 %v2660
        %v2662 = vpop.xlane.xlu0 %2661
        %v2663 = vsel %vm1149, %v2652, -inf
        %2664 = vmax.xlane.f32.xlu0 %v2663
        %v2665 = vpop.xlane.xlu0 %2664
        %v2666 = vsub.f32 %v2644, %v2659
        %v2667 = vsub.f32 %v2647, %v2662
        %v2668 = vsub.f32 %v2652, %v2665
        %v2669 = vmul.f32 %v2666, 1.442695
        %v2670 = vpow.pop %v2669
        %v2671 = vmul.f32 %v2667, 1.442695
        %v2672 = vpow.pop %v2671
        %v2673 = vmul.f32 %v2668, 1.442695
        %v2674 = vpow.pop %v2673
        %v2675 = vsel %vm1142, %v2670, 0.0
        %2676 = vadd.xlane.f32.xlu0 %v2675
        %v2677 = vpop.xlane.xlu0 %2676
        %v2678 = vsel %vm1142, %v2672, 0.0
        %2679 = vadd.xlane.f32.xlu0 %v2678
        %v2680 = vpop.xlane.xlu0 %2679
        %v2681 = vsel %vm1149, %v2674, 0.0
        %2682 = vadd.xlane.f32.xlu0 %v2681
        %v2683 = vpop.xlane.xlu0 %2682
        %v2684 = vrcp.pop %v2677
        %v2685 = vrcp.pop %v2680
        %v2686 = vrcp.pop %v2683
        %v2687 = vmul.f32 %v2670, %v2684
        %v2688 = vmul.f32 %v2672, %v2685
        %v2689 = vmul.f32 %v2674, %v2686
        %v2690 = vpack.c.bf16 %v2688, %v2687
        %v2691 = vpack.c.bf16 %v2689, %v2689
        %2692 = vrot.lane.b32.xlu0 %v2259, 48
        %v2693 = vpop.permute.xlu0 %2692
        %2694 = vrot.lane.b32.xlu0 %v2260, 48
        %v2695 = vpop.permute.xlu0 %2694
        %v2698 = vsel %vm1142, %v2690, 0
        %v2701 = vsel %vm1142, %v2691, 0
        %v2704 = vsel %vm1190, %v2695, 0
        %2706 = vmatprep.subr.bf16.mxu0 0
        %2707 = vmatpush1.bf16.msra.mxu0 %v2693
        %2708 = vmatprep.subr.bf16.mxu0 0
        %2709 = vmatpush1.bf16.msra.mxu0 %v2704
        %2710 = vmatprep.subr.bf16.mxu0 0
        %2711 = vmatpush1.bf16.msra.mxu0 0
        %2712 = vmatprep.subr.bf16.mxu0 0
        %2713 = vmatpush1.bf16.msra.mxu0 0
        %2714 = vmatprep.subr.bf16.mxu0 0
        %2715 = vmatpush1.bf16.msra.mxu0 0
        %2716 = vmatprep.subr.bf16.mxu0 0
        %2717 = vmatpush1.bf16.msra.mxu0 0
        %2718 = vmatprep.subr.bf16.mxu0 0
        %2719 = vmatpush1.bf16.msra.mxu0 0
        %2720 = vmatprep.subr.bf16.mxu0 0
        %2721 = vmatpush1.bf16.msra.mxu0 0
        %2722 = vmatprep.subr.bf16.mxu0 0
        %2723 = vmatpush1.bf16.msra.mxu0 0
        %2724 = vmatprep.subr.bf16.mxu0 0
        %2725 = vmatpush1.bf16.msra.mxu0 0
        %2726 = vmatprep.subr.bf16.mxu0 0
        %2727 = vmatpush1.bf16.msra.mxu0 0
        %2728 = vmatprep.subr.bf16.mxu0 0
        %2729 = vmatpush1.bf16.msra.mxu0 0
        %2730 = vmatprep.subr.bf16.mxu0 0
        %2731 = vmatpush1.bf16.msra.mxu0 0
        %2732 = vmatprep.subr.bf16.mxu0 0
        %2733 = vmatpush1.bf16.msra.mxu0 0
        %2734 = vmatprep.subr.bf16.mxu0 0
        %2735 = vmatpush1.bf16.msra.mxu0 0
        %2736 = vmatprep.subr.bf16.mxu0 0
        %2737 = vmatpush1.bf16.msra.mxu0 0
        %2738 = vmatprep.mubr.bf16.mxu0 0
        %2739 = vmatmul.mubr.bf16.gmra.mrb[0].mxu0 %v2698
        %v2740 = vpop.f32.mrb[0].mxu0
        %v2741 = vadd.f32 0.0, %v2740
        %v2742 = vpop.f32.mrb[0].mxu0
        %v2743 = vpop.f32.mrb[0].mxu0
        %v2744 = vadd.f32 0.0, %v2743
        %v2745 = vpop.f32.mrb[0].mxu0
        %2746 = vmatprep.mubr.bf16.mxu0 0
        %2747 = vmatmul.mubr.bf16.gmra.mrb[0].mxu0 %v2701
        %v2748 = vpop.f32.mrb[0].mxu0
        %v2749 = vadd.f32 0.0, %v2748
        %v2750 = vpop.f32.mrb[0].mxu0
        %v2751 = vpop.f32.mrb[0].mxu0
        %v2752 = vpop.f32.mrb[0].mxu0
        %2753 = vdwg.mxu0
        %2754 = vrot.lane.b32.xlu0 %v2259, 104
        %v2755 = vpop.permute.xlu0 %2754
        %2756 = vrot.lane.b32.xlu0 %v2260, 104
        %v2757 = vpop.permute.xlu0 %2756
        %2758 = vrot.lane.b32.xlu0 %v2259, 72
        %v2759 = vpop.permute.xlu0 %2758
        %2760 = vrot.lane.b32.xlu0 %v2260, 72
        %v2761 = vpop.permute.xlu0 %2760
        %v2763 = vsel %vm1081, %v2755, 0
        %v2766 = vsel %vm1081, %v2757, 0
        %v2769 = vsel %vm1081, %v2759, 0
        %v2772 = vsel %vm1081, %v2761, 0
        %2774 = vmatprep.subr.bf16.mxu0 0
        %2775 = vmatpush1.bf16.xpose.msra.mxu0 %v2769
        %2776 = vmatprep.subr.bf16.mxu0 0
        %2777 = vmatpush1.bf16.xpose.msra.mxu0 %v2772
        %2778 = vmatprep.subr.bf16.mxu0 0
        %2779 = vmatpush1.bf16.xpose.msra.mxu0 0
        %2780 = vmatprep.subr.bf16.mxu0 0
        %2781 = vmatpush1.bf16.xpose.msra.mxu0 0
        %2782 = vmatprep.subr.bf16.mxu0 0
        %2783 = vmatpush1.bf16.xpose.msra.mxu0 0
        %2784 = vmatprep.subr.bf16.mxu0 0
        %2785 = vmatpush1.bf16.xpose.msra.mxu0 0
        %2786 = vmatprep.subr.bf16.mxu0 0
        %2787 = vmatpush1.bf16.xpose.msra.mxu0 0
        %2788 = vmatprep.subr.bf16.mxu0 0
        %2789 = vmatpush1.bf16.xpose.msra.mxu0 0
        %2790 = vmatprep.subr.bf16.mxu0 0
        %2791 = vmatpush1.bf16.xpose.msra.mxu0 0
        %2792 = vmatprep.subr.bf16.mxu0 0
        %2793 = vmatpush1.bf16.xpose.msra.mxu0 0
        %2794 = vmatprep.subr.bf16.mxu0 0
        %2795 = vmatpush1.bf16.xpose.msra.mxu0 0
        %2796 = vmatprep.subr.bf16.mxu0 0
        %2797 = vmatpush1.bf16.xpose.msra.mxu0 0
        %2798 = vmatprep.subr.bf16.mxu0 0
        %2799 = vmatpush1.bf16.xpose.msra.mxu0 0
        %2800 = vmatprep.subr.bf16.mxu0 0
        %2801 = vmatpush1.bf16.xpose.msra.mxu0 0
        %2802 = vmatprep.subr.bf16.mxu0 0
        %2803 = vmatpush1.bf16.xpose.msra.mxu0 0
        %2804 = vmatprep.subr.bf16.mxu0 0
        %2805 = vmatpush1.bf16.xpose.msra.mxu0 0
        %2806 = vmatprep.mubr.bf16.mxu0 0
        %2807 = vmatmul.mubr.bf16.gmra.mrb[0].mxu0 %v2763
        %v2808 = vpop.f32.mrb[0].mxu0
        %v2809 = vadd.f32 %v929, %v2808
        %v2810 = vpop.f32.mrb[0].mxu0
        %v2811 = vpop.f32.mrb[0].mxu0
        %v2812 = vadd.f32 %v930, %v2811
        %v2813 = vpop.f32.mrb[0].mxu0
        %2814 = vmatprep.mubr.bf16.mxu0 0
        %2815 = vmatmul.mubr.bf16.gmra.mrb[0].mxu0 %v2766
        %v2816 = vpop.f32.mrb[0].mxu0
        %v2817 = vadd.f32 %v931, %v2816
        %v2818 = vpop.f32.mrb[0].mxu0
        %v2819 = vpop.f32.mrb[0].mxu0
        %v2820 = vpop.f32.mrb[0].mxu0
        %2821 = vdwg.mxu0
        %v2822 = vsel %vm1142, %v2809, -inf
        %2823 = vmax.xlane.f32.xlu0 %v2822
        %v2824 = vpop.xlane.xlu0 %2823
        %v2825 = vsel %vm1142, %v2812, -inf
        %2826 = vmax.xlane.f32.xlu0 %v2825
        %v2827 = vpop.xlane.xlu0 %2826
        %v2828 = vsel %vm1149, %v2817, -inf
        %2829 = vmax.xlane.f32.xlu0 %v2828
        %v2830 = vpop.xlane.xlu0 %2829
        %v2831 = vsub.f32 %v2809, %v2824
        %v2832 = vsub.f32 %v2812, %v2827
        %v2833 = vsub.f32 %v2817, %v2830
        %v2834 = vmul.f32 %v2831, 1.442695
        %v2835 = vpow.pop %v2834
        %v2836 = vmul.f32 %v2832, 1.442695
        %v2837 = vpow.pop %v2836
        %v2838 = vmul.f32 %v2833, 1.442695
        %v2839 = vpow.pop %v2838
        %v2840 = vsel %vm1142, %v2835, 0.0
        %2841 = vadd.xlane.f32.xlu0 %v2840
        %v2842 = vpop.xlane.xlu0 %2841
        %v2843 = vsel %vm1142, %v2837, 0.0
        %2844 = vadd.xlane.f32.xlu0 %v2843
        %v2845 = vpop.xlane.xlu0 %2844
        %v2846 = vsel %vm1149, %v2839, 0.0
        %2847 = vadd.xlane.f32.xlu0 %v2846
        %v2848 = vpop.xlane.xlu0 %2847
        %v2849 = vrcp.pop %v2842
        %v2850 = vrcp.pop %v2845
        %v2851 = vrcp.pop %v2848
        %v2852 = vmul.f32 %v2835, %v2849
        %v2853 = vmul.f32 %v2837, %v2850
        %v2854 = vmul.f32 %v2839, %v2851
        %v2855 = vpack.c.bf16 %v2853, %v2852
        %v2856 = vpack.c.bf16 %v2854, %v2854
        %2857 = vrot.lane.b32.xlu0 %v2259, 40
        %v2858 = vpop.permute.xlu0 %2857
        %2859 = vrot.lane.b32.xlu0 %v2260, 40
        %v2860 = vpop.permute.xlu0 %2859
        %v2863 = vsel %vm1142, %v2855, 0
        %v2866 = vsel %vm1142, %v2856, 0
        %v2869 = vsel %vm1190, %v2860, 0
        %2871 = vmatprep.subr.bf16.mxu0 0
        %2872 = vmatpush1.bf16.msra.mxu0 %v2858
        %2873 = vmatprep.subr.bf16.mxu0 0
        %2874 = vmatpush1.bf16.msra.mxu0 %v2869
        %2875 = vmatprep.subr.bf16.mxu0 0
        %2876 = vmatpush1.bf16.msra.mxu0 0
        %2877 = vmatprep.subr.bf16.mxu0 0
        %2878 = vmatpush1.bf16.msra.mxu0 0
        %2879 = vmatprep.subr.bf16.mxu0 0
        %2880 = vmatpush1.bf16.msra.mxu0 0
        %2881 = vmatprep.subr.bf16.mxu0 0
        %2882 = vmatpush1.bf16.msra.mxu0 0
        %2883 = vmatprep.subr.bf16.mxu0 0
        %2884 = vmatpush1.bf16.msra.mxu0 0
        %2885 = vmatprep.subr.bf16.mxu0 0
        %2886 = vmatpush1.bf16.msra.mxu0 0
        %2887 = vmatprep.subr.bf16.mxu0 0
        %2888 = vmatpush1.bf16.msra.mxu0 0
        %2889 = vmatprep.subr.bf16.mxu0 0
        %2890 = vmatpush1.bf16.msra.mxu0 0
        %2891 = vmatprep.subr.bf16.mxu0 0
        %2892 = vmatpush1.bf16.msra.mxu0 0
        %2893 = vmatprep.subr.bf16.mxu0 0
        %2894 = vmatpush1.bf16.msra.mxu0 0
        %2895 = vmatprep.subr.bf16.mxu0 0
        %2896 = vmatpush1.bf16.msra.mxu0 0
        %2897 = vmatprep.subr.bf16.mxu0 0
        %2898 = vmatpush1.bf16.msra.mxu0 0
        %2899 = vmatprep.subr.bf16.mxu0 0
        %2900 = vmatpush1.bf16.msra.mxu0 0
        %2901 = vmatprep.subr.bf16.mxu0 0
        %2902 = vmatpush1.bf16.msra.mxu0 0
        %2903 = vmatprep.mubr.bf16.mxu0 0
        %2904 = vmatmul.mubr.bf16.gmra.mrb[0].mxu0 %v2863
        %v2905 = vpop.f32.mrb[0].mxu0
        %v2906 = vadd.f32 0.0, %v2905
        %v2907 = vpop.f32.mrb[0].mxu0
        %v2908 = vpop.f32.mrb[0].mxu0
        %v2909 = vadd.f32 0.0, %v2908
        %v2910 = vpop.f32.mrb[0].mxu0
        %2911 = vmatprep.mubr.bf16.mxu0 0
        %2912 = vmatmul.mubr.bf16.gmra.mrb[0].mxu0 %v2866
        %v2913 = vpop.f32.mrb[0].mxu0
        %v2914 = vadd.f32 0.0, %v2913
        %v2915 = vpop.f32.mrb[0].mxu0
        %v2916 = vpop.f32.mrb[0].mxu0
        %v2917 = vpop.f32.mrb[0].mxu0
        %2918 = vdwg.mxu0
        %2922 = vrot.lane.b32.xlu0 %v2576, 8
        %v2923 = vpop.permute.xlu0 %2922
        %2924 = vrot.lane.b32.xlu0 %v2579, 8
        %v2925 = vpop.permute.xlu0 %2924
        %2926 = vrot.lane.b32.xlu0 %v2584, 8
        %v2927 = vpop.permute.xlu0 %2926
        %2934 = vrot.lane.b32.xlu0 %v2741, 16
        %v2935 = vpop.permute.xlu0 %2934
        %2936 = vrot.lane.b32.xlu0 %v2744, 16
        %v2937 = vpop.permute.xlu0 %2936
        %2938 = vrot.lane.b32.xlu0 %v2749, 16
        %v2939 = vpop.permute.xlu0 %2938
        %2946 = vrot.lane.b32.xlu0 %v2906, 24
        %v2947 = vpop.permute.xlu0 %2946
        %2948 = vrot.lane.b32.xlu0 %v2909, 24
        %v2949 = vpop.permute.xlu0 %2948
        %2950 = vrot.lane.b32.xlu0 %v2914, 24
        %v2951 = vpop.permute.xlu0 %2950
        %v2955 = vsel %vm1081, %v2411, %v2923
        %v2956 = vsel %vm1081, %v2414, %v2925
        %v2957 = vsel %vm1081, %v2419, %v2927
        %v2958 = vsel %vm1776, %v2955, %v2935
        %v2959 = vsel %vm1776, %v2956, %v2937
        %v2960 = vsel %vm1776, %v2957, %v2939
        %v2961 = vsel %vm1780, %v2958, %v2947
        %v2962 = vsel %vm1780, %v2959, %v2949
        %v2963 = vsel %vm1780, %v2960, %v2951
        %v2964 = vpack.c.bf16 %v2962, %v2961
        %v2965 = vpack.c.bf16 %v2963, %v2963
        %s2966 = scalar_lea.vmem %s10, 16
        %v2967 = vld [vmem:[%s2966] sm:$0xf]
        %v2968 = vld [vmem:[%s2966 + $0x4] sm:$0xf]
        %v2969 = vld [vmem:[%s2966 + $0x8] sm:$0xf]
        %v2970 = vld [vmem:[%s2966 + $0xc] sm:$0xf]
        %s2971 = scalar_lea.vmem %s11, 1
        %v2972 = vld [vmem:[%s2971] sm:$0x1]
        %v2974 = vlaneseq
        %v2975 = vshrl.u32 %v2974, 7
        %v2976 = vsub.s32 0, %v2975
        %v2977 = vrot.slane %v2972, %v2976
        %v2983 = vunpack.c.l.b16 %v2967
        %v2984 = vunpack.c.l.b16 %v2968
        %v2985 = vunpack.c.l.b16 %v2969
        %v2986 = vunpack.c.l.b16 %v2970
        %v2987 = vpack.c.b16 %v2984, %v2983
        %v2988 = vpack.c.b16 %v2986, %v2985
        %v2992 = vsel %vm934, %v2964, 0
        %v2995 = vsel %vm934, %v2965, 0
        %2997 = vmatprep.subr.bf16.mxu0 0
        %2998 = vmatpush1.bf16.msra.mxu0 %v2987
        %2999 = vmatprep.subr.bf16.mxu0 0
        %3000 = vmatpush1.bf16.msra.mxu0 %v2988
        %3001 = vmatprep.subr.bf16.mxu0 0
        %3002 = vmatpush1.bf16.msra.mxu0 0
        %3003 = vmatprep.subr.bf16.mxu0 0
        %3004 = vmatpush1.bf16.msra.mxu0 0
        %3005 = vmatprep.subr.bf16.mxu0 0
        %3006 = vmatpush1.bf16.msra.mxu0 0
        %3007 = vmatprep.subr.bf16.mxu0 0
        %3008 = vmatpush1.bf16.msra.mxu0 0
        %3009 = vmatprep.subr.bf16.mxu0 0
        %3010 = vmatpush1.bf16.msra.mxu0 0
        %3011 = vmatprep.subr.bf16.mxu0 0
        %3012 = vmatpush1.bf16.msra.mxu0 0
        %3013 = vmatprep.subr.bf16.mxu0 0
        %3014 = vmatpush1.bf16.msra.mxu0 0
        %3015 = vmatprep.subr.bf16.mxu0 0
        %3016 = vmatpush1.bf16.msra.mxu0 0
        %3017 = vmatprep.subr.bf16.mxu0 0
        %3018 = vmatpush1.bf16.msra.mxu0 0
        %3019 = vmatprep.subr.bf16.mxu0 0
        %3020 = vmatpush1.bf16.msra.mxu0 0
        %3021 = vmatprep.subr.bf16.mxu0 0
        %3022 = vmatpush1.bf16.msra.mxu0 0
        %3023 = vmatprep.subr.bf16.mxu0 0
        %3024 = vmatpush1.bf16.msra.mxu0 0
        %3025 = vmatprep.subr.bf16.mxu0 0
        %3026 = vmatpush1.bf16.msra.mxu0 0
        %3027 = vmatprep.subr.bf16.mxu0 0
        %3028 = vmatpush1.bf16.msra.mxu0 0
        %3029 = vmatprep.mubr.bf16.mxu0 0
        %3030 = vmatmul.mubr.bf16.gmra.mrb[0].mxu0 %v2992
        %v3031 = vpop.f32.mrb[0].mxu0
        %v3032 = vadd.f32 %v2977, %v3031
        %v3033 = vpop.f32.mrb[0].mxu0
        %v3034 = vpop.f32.mrb[0].mxu0
        %v3035 = vadd.f32 %v2977, %v3034
        %v3036 = vpop.f32.mrb[0].mxu0
        %3037 = vmatprep.mubr.bf16.mxu0 0
        %3038 = vmatmul.mubr.bf16.gmra.mrb[0].mxu0 %v2995
        %v3039 = vpop.f32.mrb[0].mxu0
        %v3040 = vadd.f32 %v2977, %v3039
        %v3041 = vpop.f32.mrb[0].mxu0
        %v3042 = vpop.f32.mrb[0].mxu0
        %v3043 = vpop.f32.mrb[0].mxu0
        %3044 = vdwg.mxu0
        %v3045 = vadd.f32 %v2114, %v3032
        %v3046 = vadd.f32 %v2115, %v3035
        %v3047 = vadd.f32 %v2116, %v3040
        %s3048 = scalar_lea.vmem %s12, 1
        %v3049 = vld [vmem:[%s3048] sm:$0x1]
        %s3050 = scalar_lea.vmem %s13, 1
        %v3051 = vld [vmem:[%s3050] sm:$0x1]
        %v3052 = vsel %vm934, %v3045, 0.0
        %3053 = vadd.xlane.f32.xlu0 %v3052
        %v3054 = vpop.xlane.xlu0 %3053
        %v3055 = vsel %vm934, %v3046, 0.0
        %3056 = vadd.xlane.f32.xlu0 %v3055
        %v3057 = vpop.xlane.xlu0 %3056
        %v3058 = vsel %vm941, %v3047, 0.0
        %3059 = vadd.xlane.f32.xlu0 %v3058
        %v3060 = vpop.xlane.xlu0 %3059
        %v3061 = vmul.f32 %v3054, %v945
        %v3062 = vmul.f32 %v3057, %v945
        %v3063 = vmul.f32 %v3060, %v945
        %v3064 = vsub.f32 %v3045, %v3061
        %v3065 = vsub.f32 %v3046, %v3062
        %v3066 = vsub.f32 %v3047, %v3063
        %v3067 = vmul.f32 %v3064, %v3064
        %v3068 = vmul.f32 %v3065, %v3065
        %v3069 = vmul.f32 %v3066, %v3066
        %v3070 = vsel %vm934, %v3067, 0.0
        %3071 = vadd.xlane.f32.xlu0 %v3070
        %v3072 = vpop.xlane.xlu0 %3071
        %v3073 = vsel %vm934, %v3068, 0.0
        %3074 = vadd.xlane.f32.xlu0 %v3073
        %v3075 = vpop.xlane.xlu0 %3074
        %v3076 = vsel %vm941, %v3069, 0.0
        %3077 = vadd.xlane.f32.xlu0 %v3076
        %v3078 = vpop.xlane.xlu0 %3077
        %v3079 = vmul.f32 %v3072, %v945
        %v3080 = vmul.f32 %v3075, %v945
        %v3081 = vmul.f32 %v3078, %v945
        %v3082 = vadd.f32 %v3079, 1e-06
        %v3083 = vadd.f32 %v3080, 1e-06
        %v3084 = vadd.f32 %v3081, 1e-06
        %v3085 = vrsqrt.pop %v3082
        %v3086 = vrsqrt.pop %v3083
        %v3087 = vrsqrt.pop %v3084
        %v3088 = vmul.f32 %v3064, %v3085
        %v3089 = vmul.f32 %v3065, %v3086
        %v3090 = vmul.f32 %v3066, %v3087
        %v3092 = vlaneseq
        %v3093 = vshrl.u32 %v3092, 7
        %v3094 = vsub.s32 0, %v3093
        %v3095 = vrot.slane %v3049, %v3094
        %v3097 = vmul.f32 %v3088, %v3095
        %v3098 = vmul.f32 %v3089, %v3095
        %v3099 = vmul.f32 %v3090, %v3095
        %v3101 = vlaneseq
        %v3102 = vshrl.u32 %v3101, 7
        %v3103 = vsub.s32 0, %v3102
        %v3104 = vrot.slane %v3051, %v3103
        %v3106 = vadd.f32 %v3097, %v3104
        %v3107 = vadd.f32 %v3098, %v3104
        %v3108 = vadd.f32 %v3099, %v3104
        %v3109 = vpack.c.bf16 %v3107, %v3106
        %v3110 = vpack.c.bf16 %v3108, %v3108
        %s3111 = scalar_lea.vmem %s14, 16
        %v3112 = vld [vmem:[%s3111] sm:$0xf]
        %v3113 = vld [vmem:[%s3111 + $0x4] sm:$0xf]
        %v3114 = vld [vmem:[%s3111 + $0x8] sm:$0xf]
        %v3115 = vld [vmem:[%s3111 + $0xc] sm:$0xf]
        %s3116 = scalar_lea.vmem %s15, 1
        %v3117 = vld [vmem:[%s3116] sm:$0x1]
        %v3119 = vlaneseq
        %v3120 = vshrl.u32 %v3119, 7
        %v3121 = vsub.s32 0, %v3120
        %v3122 = vrot.slane %v3117, %v3121
        %v3128 = vunpack.c.l.b16 %v3112
        %v3129 = vunpack.c.l.b16 %v3113
        %v3130 = vunpack.c.l.b16 %v3114
        %v3131 = vunpack.c.l.b16 %v3115
        %v3132 = vpack.c.b16 %v3129, %v3128
        %v3133 = vpack.c.b16 %v3131, %v3130
        %v3137 = vsel %vm934, %v3109, 0
        %v3140 = vsel %vm934, %v3110, 0
        %3142 = vmatprep.subr.bf16.mxu0 0
        %3143 = vmatpush1.bf16.msra.mxu0 %v3132
        %3144 = vmatprep.subr.bf16.mxu0 0
        %3145 = vmatpush1.bf16.msra.mxu0 %v3133
        %3146 = vmatprep.subr.bf16.mxu0 0
        %3147 = vmatpush1.bf16.msra.mxu0 0
        %3148 = vmatprep.subr.bf16.mxu0 0
        %3149 = vmatpush1.bf16.msra.mxu0 0
        %3150 = vmatprep.subr.bf16.mxu0 0
        %3151 = vmatpush1.bf16.msra.mxu0 0
        %3152 = vmatprep.subr.bf16.mxu0 0
        %3153 = vmatpush1.bf16.msra.mxu0 0
        %3154 = vmatprep.subr.bf16.mxu0 0
        %3155 = vmatpush1.bf16.msra.mxu0 0
        %3156 = vmatprep.subr.bf16.mxu0 0
        %3157 = vmatpush1.bf16.msra.mxu0 0
        %3158 = vmatprep.subr.bf16.mxu0 0
        %3159 = vmatpush1.bf16.msra.mxu0 0
        %3160 = vmatprep.subr.bf16.mxu0 0
        %3161 = vmatpush1.bf16.msra.mxu0 0
        %3162 = vmatprep.subr.bf16.mxu0 0
        %3163 = vmatpush1.bf16.msra.mxu0 0
        %3164 = vmatprep.subr.bf16.mxu0 0
        %3165 = vmatpush1.bf16.msra.mxu0 0
        %3166 = vmatprep.subr.bf16.mxu0 0
        %3167 = vmatpush1.bf16.msra.mxu0 0
        %3168 = vmatprep.subr.bf16.mxu0 0
        %3169 = vmatpush1.bf16.msra.mxu0 0
        %3170 = vmatprep.subr.bf16.mxu0 0
        %3171 = vmatpush1.bf16.msra.mxu0 0
        %3172 = vmatprep.subr.bf16.mxu0 0
        %3173 = vmatpush1.bf16.msra.mxu0 0
        %3174 = vmatprep.mubr.bf16.mxu0 0
        %3175 = vmatmul.mubr.bf16.gmra.mrb[0].mxu0 %v3137
        %v3176 = vpop.f32.mrb[0].mxu0
        %v3177 = vadd.f32 %v3122, %v3176
        %v3178 = vpop.f32.mrb[0].mxu0
        %v3179 = vpop.f32.mrb[0].mxu0
        %v3180 = vadd.f32 %v3122, %v3179
        %v3181 = vpop.f32.mrb[0].mxu0
        %3182 = vmatprep.mubr.bf16.mxu0 0
        %3183 = vmatmul.mubr.bf16.gmra.mrb[0].mxu0 %v3140
        %v3184 = vpop.f32.mrb[0].mxu0
        %v3185 = vadd.f32 %v3122, %v3184
        %v3186 = vpop.f32.mrb[0].mxu0
        %v3187 = vpop.f32.mrb[0].mxu0
        %v3188 = vpop.f32.mrb[0].mxu0
        %3189 = vdwg.mxu0
        %v3190 = vmul.f32 %v3177, 0.5
        %v3191 = vmul.f32 %v3180, 0.5
        %v3192 = vmul.f32 %v3185, 0.5
        %v3193 = vmul.f32 %v3177, 0.70710677
        %v3194 = vmul.f32 %v3180, 0.70710677
        %v3195 = vmul.f32 %v3185, 0.70710677
        %v3196 = verf.f32.pop %v3193
        %v3197 = verf.f32.pop %v3194
        %v3198 = verf.f32.pop %v3195
        %v3199 = vadd.f32 %v3196, 1.0
        %v3200 = vadd.f32 %v3197, 1.0
        %v3201 = vadd.f32 %v3198, 1.0
        %v3202 = vmul.f32 %v3190, %v3199
        %v3203 = vmul.f32 %v3191, %v3200
        %v3204 = vmul.f32 %v3192, %v3201
        %v3205 = vpack.c.bf16 %v3203, %v3202
        %v3206 = vpack.c.bf16 %v3204, %v3204
        %s3207 = scalar_lea.vmem %s16, 32
        %v3208 = vld [vmem:[%s3207] sm:$0xf]
        %v3209 = vld [vmem:[%s3207 + $0x4] sm:$0xf]
        %v3210 = vld [vmem:[%s3207 + $0x8] sm:$0xf]
        %v3211 = vld [vmem:[%s3207 + $0xc] sm:$0xf]
        %v3212 = vld [vmem:[%s3207 + $0x10] sm:$0xf]
        %v3213 = vld [vmem:[%s3207 + $0x14] sm:$0xf]
        %v3214 = vld [vmem:[%s3207 + $0x18] sm:$0xf]
        %v3215 = vld [vmem:[%s3207 + $0x1c] sm:$0xf]
        %s3216 = scalar_lea.vmem %s17, 1
        %v3217 = vld [vmem:[%s3216] sm:$0x1]
        %v3219 = vlaneseq
        %v3220 = vshrl.u32 %v3219, 7
        %v3221 = vsub.s32 0, %v3220
        %v3222 = vrot.slane %v3217, %v3221
        %v3232 = vunpack.c.l.b16 %v3208
        %v3233 = vunpack.c.l.b16 %v3209
        %v3234 = vunpack.c.l.b16 %v3210
        %v3235 = vunpack.c.l.b16 %v3211
        %v3236 = vunpack.c.l.b16 %v3212
        %v3237 = vunpack.c.l.b16 %v3213
        %v3238 = vunpack.c.l.b16 %v3214
        %v3239 = vunpack.c.l.b16 %v3215
        %v3240 = vpack.c.b16 %v3233, %v3232
        %v3241 = vpack.c.b16 %v3235, %v3234
        %v3242 = vpack.c.b16 %v3237, %v3236
        %v3243 = vpack.c.b16 %v3239, %v3238
        %v3249 = vsel %vm854, %v3205, 0
        %v3252 = vsel %vm854, %v3206, 0
        %3254 = vmatprep.subr.bf16.mxu0 0
        %3255 = vmatpush1.bf16.msra.mxu0 %v3240
        %3256 = vmatprep.subr.bf16.mxu0 0
        %3257 = vmatpush1.bf16.msra.mxu0 %v3241
        %3258 = vmatprep.subr.bf16.mxu0 0
        %3259 = vmatpush1.bf16.msra.mxu0 %v3242
        %3260 = vmatprep.subr.bf16.mxu0 0
        %3261 = vmatpush1.bf16.msra.mxu0 %v3243
        %3262 = vmatprep.subr.bf16.mxu0 0
        %3263 = vmatpush1.bf16.msra.mxu0 0
        %3264 = vmatprep.subr.bf16.mxu0 0
        %3265 = vmatpush1.bf16.msra.mxu0 0
        %3266 = vmatprep.subr.bf16.mxu0 0
        %3267 = vmatpush1.bf16.msra.mxu0 0
        %3268 = vmatprep.subr.bf16.mxu0 0
        %3269 = vmatpush1.bf16.msra.mxu0 0
        %3270 = vmatprep.subr.bf16.mxu0 0
        %3271 = vmatpush1.bf16.msra.mxu0 0
        %3272 = vmatprep.subr.bf16.mxu0 0
        %3273 = vmatpush1.bf16.msra.mxu0 0
        %3274 = vmatprep.subr.bf16.mxu0 0
        %3275 = vmatpush1.bf16.msra.mxu0 0
        %3276 = vmatprep.subr.bf16.mxu0 0
        %3277 = vmatpush1.bf16.msra.mxu0 0
        %3278 = vmatprep.subr.bf16.mxu0 0
        %3279 = vmatpush1.bf16.msra.mxu0 0
        %3280 = vmatprep.subr.bf16.mxu0 0
        %3281 = vmatpush1.bf16.msra.mxu0 0
        %3282 = vmatprep.subr.bf16.mxu0 0
        %3283 = vmatpush1.bf16.msra.mxu0 0
        %3284 = vmatprep.subr.bf16.mxu0 0
        %3285 = vmatpush1.bf16.msra.mxu0 0
        %3286 = vmatprep.mubr.bf16.mxu0 0
        %3287 = vmatmul.mubr.bf16.gmra.mrb[0].mxu0 %v3249
        %v3288 = vpop.f32.mrb[0].mxu0
        %v3289 = vadd.f32 %v3222, %v3288
        %v3290 = vpop.f32.mrb[0].mxu0
        %v3291 = vpop.f32.mrb[0].mxu0
        %v3292 = vadd.f32 %v3222, %v3291
        %v3293 = vpop.f32.mrb[0].mxu0
        %3294 = vmatprep.mubr.bf16.mxu0 0
        %3295 = vmatmul.mubr.bf16.gmra.mrb[0].mxu0 %v3252
        %v3296 = vpop.f32.mrb[0].mxu0
        %v3297 = vadd.f32 %v3222, %v3296
        %v3298 = vpop.f32.mrb[0].mxu0
        %v3299 = vpop.f32.mrb[0].mxu0
        %v3300 = vpop.f32.mrb[0].mxu0
        %3301 = vdwg.mxu0
        %v3302 = vadd.f32 %v3045, %v3289
        %v3303 = vadd.f32 %v3046, %v3292
        %v3304 = vadd.f32 %v3047, %v3297
        %v3305 = vld [vmem:[%s18] sm:$0x1]
        %v3306 = vld [vmem:[%s19] sm:$0x1]
        %v3307 = vsel %vm934, %v3302, 0.0
        %3308 = vadd.xlane.f32.xlu0 %v3307
        %v3309 = vpop.xlane.xlu0 %3308
        %v3310 = vsel %vm934, %v3303, 0.0
        %3311 = vadd.xlane.f32.xlu0 %v3310
        %v3312 = vpop.xlane.xlu0 %3311
        %v3313 = vsel %vm941, %v3304, 0.0
        %3314 = vadd.xlane.f32.xlu0 %v3313
        %v3315 = vpop.xlane.xlu0 %3314
        %v3316 = vmul.f32 %v3309, %v945
        %v3317 = vmul.f32 %v3312, %v945
        %v3318 = vmul.f32 %v3315, %v945
        %v3319 = vsub.f32 %v3302, %v3316
        %v3320 = vsub.f32 %v3303, %v3317
        %v3321 = vsub.f32 %v3304, %v3318
        %v3322 = vmul.f32 %v3319, %v3319
        %v3323 = vmul.f32 %v3320, %v3320
        %v3324 = vmul.f32 %v3321, %v3321
        %v3325 = vsel %vm934, %v3322, 0.0
        %3326 = vadd.xlane.f32.xlu0 %v3325
        %v3327 = vpop.xlane.xlu0 %3326
        %v3328 = vsel %vm934, %v3323, 0.0
        %3329 = vadd.xlane.f32.xlu0 %v3328
        %v3330 = vpop.xlane.xlu0 %3329
        %v3331 = vsel %vm941, %v3324, 0.0
        %3332 = vadd.xlane.f32.xlu0 %v3331
        %v3333 = vpop.xlane.xlu0 %3332
        %v3334 = vmul.f32 %v3327, %v945
        %v3335 = vmul.f32 %v3330, %v945
        %v3336 = vmul.f32 %v3333, %v945
        %v3337 = vadd.f32 %v3334, 1e-06
        %v3338 = vadd.f32 %v3335, 1e-06
        %v3339 = vadd.f32 %v3336, 1e-06
        %v3340 = vrsqrt.pop %v3337
        %v3341 = vrsqrt.pop %v3338
        %v3342 = vrsqrt.pop %v3339
        %v3343 = vmul.f32 %v3319, %v3340
        %v3344 = vmul.f32 %v3320, %v3341
        %v3345 = vmul.f32 %v3321, %v3342
        %v3347 = vlaneseq
        %v3348 = vshrl.u32 %v3347, 7
        %v3349 = vsub.s32 0, %v3348
        %v3350 = vrot.slane %v3305, %v3349
        %v3352 = vmul.f32 %v3343, %v3350
        %v3353 = vmul.f32 %v3344, %v3350
        %v3354 = vmul.f32 %v3345, %v3350
        %v3356 = vlaneseq
        %v3357 = vshrl.u32 %v3356, 7
        %v3358 = vsub.s32 0, %v3357
        %v3359 = vrot.slane %v3306, %v3358
        %v3361 = vadd.f32 %v3352, %v3359
        %v3362 = vadd.f32 %v3353, %v3359
        %v3363 = vadd.f32 %v3354, %v3359
        %v3364 = vld [vmem:[%s4] sm:$0x3]
        %v3366 = vsel %vm1142, %v3364, 0
        %vm3368 = vcmask 1043456
        %v3370 = vsel %vm3368, %v3363, 0
        %3372 = vmatprep.subr.mxu0 0.0
        %3373 = vmatpush1.msra.mxu0 %v3361
        %3374 = vmatprep.subr.mxu0 0.0
        %3375 = vmatpush1.msra.mxu0 %v3362
        %3376 = vmatprep.subr.mxu0 0.0
        %3377 = vmatpush1.msra.mxu0 %v3370
        %3378 = vmatprep.subr.mxu0 0.0
        %3379 = vmatpush1.msra.mxu0 0.0
        %3380 = vmatprep.subr.mxu0 0.0
        %3381 = vmatpush1.msra.mxu0 0.0
        %3382 = vmatprep.subr.mxu0 0.0
        %3383 = vmatpush1.msra.mxu0 0.0
        %3384 = vmatprep.subr.mxu0 0.0
        %3385 = vmatpush1.msra.mxu0 0.0
        %3386 = vmatprep.subr.mxu0 0.0
        %3387 = vmatpush1.msra.mxu0 0.0
        %3388 = vmatprep.subr.mxu0 0.0
        %3389 = vmatpush1.msra.mxu0 0.0
        %3390 = vmatprep.subr.mxu0 0.0
        %3391 = vmatpush1.msra.mxu0 0.0
        %3392 = vmatprep.subr.mxu0 0.0
        %3393 = vmatpush1.msra.mxu0 0.0
        %3394 = vmatprep.subr.mxu0 0.0
        %3395 = vmatpush1.msra.mxu0 0.0
        %3396 = vmatprep.subr.mxu0 0.0
        %3397 = vmatpush1.msra.mxu0 0.0
        %3398 = vmatprep.subr.mxu0 0.0
        %3399 = vmatpush1.msra.mxu0 0.0
        %3400 = vmatprep.subr.mxu0 0.0
        %3401 = vmatpush1.msra.mxu0 0.0
        %3402 = vmatprep.subr.mxu0 0.0
        %3403 = vmatpush1.msra.mxu0 0.0
        %3404 = vmatprep.subr.mxu0 0.0
        %3405 = vmatpush1.msra.mxu0 0.0
        %3406 = vmatprep.subr.mxu0 0.0
        %3407 = vmatpush1.msra.mxu0 0.0
        %3408 = vmatprep.subr.mxu0 0.0
        %3409 = vmatpush1.msra.mxu0 0.0
        %3410 = vmatprep.subr.mxu0 0.0
        %3411 = vmatpush1.msra.mxu0 0.0
        %3412 = vmatprep.subr.mxu0 0.0
        %3413 = vmatpush1.msra.mxu0 0.0
        %3414 = vmatprep.subr.mxu0 0.0
        %3415 = vmatpush1.msra.mxu0 0.0
        %3416 = vmatprep.subr.mxu0 0.0
        %3417 = vmatpush1.msra.mxu0 0.0
        %3418 = vmatprep.subr.mxu0 0.0
        %3419 = vmatpush1.msra.mxu0 0.0
        %3420 = vmatprep.subr.mxu0 0.0
        %3421 = vmatpush1.msra.mxu0 0.0
        %3422 = vmatprep.subr.mxu0 0.0
        %3423 = vmatpush1.msra.mxu0 0.0
        %3424 = vmatprep.subr.mxu0 0.0
        %3425 = vmatpush1.msra.mxu0 0.0
        %3426 = vmatprep.subr.mxu0 0.0
        %3427 = vmatpush1.msra.mxu0 0.0
        %3428 = vmatprep.subr.mxu0 0.0
        %3429 = vmatpush1.msra.mxu0 0.0
        %3430 = vmatprep.subr.mxu0 0.0
        %3431 = vmatpush1.msra.mxu0 0.0
        %3432 = vmatprep.subr.mxu0 0.0
        %3433 = vmatpush1.msra.mxu0 0.0
        %3434 = vmatprep.subr.mxu0 0.0
        %3435 = vmatpush1.msra.mxu0 0.0
        %3436 = vmatprep.mubr.f32.mxu0 0.0
        %3437 = vmatmul.mubr.f32.gmra.mrb[0].mxu0 %v3366
        %v3438 = vpop.f32.mrb[0].mxu0
        %v3439 = vadd.f32 0.0, %v3438
        %v3440 = vpop.f32.mrb[0].mxu0
        %3441 = vdwg.mxu0
        %v3442 = vpack.c.bf16 %v3439, %v3439
        %v3443 = vld [vmem:[%s20] sm:$0xff]
        %v3444 = vld [vmem:[%s20 + $0x8] sm:$0xff]
        %v3445 = vld [vmem:[%s20 + $0x10] sm:$0xff]
        %v3446 = vld [vmem:[%s20 + $0x18] sm:$0xff]
        %v3447 = vld [vmem:[%s21] sm:$0x3]
        %v3449 = vlaneseq
        %v3450 = vshrl.u32 %v3449, 7
        %v3451 = vsub.s32 0, %v3450
        %v3452 = vrot.slane %v3447, %v3451
        %v3453 = vlaneseq
        %v3454 = vshrl.u32 %v3453, 7
        %v3455 = vsub.s32 1, %v3454
        %v3456 = vrot.slane %v3447, %v3455
        %v3463 = vunpack.c.l.b16 %v3443
        %v3464 = vunpack.c.h.b16 %v3443
        %v3465 = vunpack.c.l.b16 %v3444
        %v3466 = vunpack.c.h.b16 %v3444
        %v3467 = vunpack.c.l.b16 %v3445
        %v3468 = vunpack.c.h.b16 %v3445
        %v3469 = vunpack.c.l.b16 %v3446
        %v3470 = vunpack.c.h.b16 %v3446
        %v3471 = vpack.c.b16 %v3465, %v3463
        %v3472 = vpack.c.b16 %v3466, %v3464
        %v3473 = vpack.c.b16 %v3469, %v3467
        %v3474 = vpack.c.b16 %v3470, %v3468
        %v3480 = vsel %vm934, %v3442, 0
        %3482 = vmatprep.subr.bf16.mxu0 %v3472
        %3483 = vmatpush1.bf16.msra.mxu0 %v3471
        %3484 = vmatprep.subr.bf16.mxu0 %v3474
        %3485 = vmatpush1.bf16.msra.mxu0 %v3473
        %3486 = vmatprep.subr.bf16.mxu0 0
        %3487 = vmatpush1.bf16.msra.mxu0 0
        %3488 = vmatprep.subr.bf16.mxu0 0
        %3489 = vmatpush1.bf16.msra.mxu0 0
        %3490 = vmatprep.subr.bf16.mxu0 0
        %3491 = vmatpush1.bf16.msra.mxu0 0
        %3492 = vmatprep.subr.bf16.mxu0 0
        %3493 = vmatpush1.bf16.msra.mxu0 0
        %3494 = vmatprep.subr.bf16.mxu0 0
        %3495 = vmatpush1.bf16.msra.mxu0 0
        %3496 = vmatprep.subr.bf16.mxu0 0
        %3497 = vmatpush1.bf16.msra.mxu0 0
        %3498 = vmatprep.subr.bf16.mxu0 0
        %3499 = vmatpush1.bf16.msra.mxu0 0
        %3500 = vmatprep.subr.bf16.mxu0 0
        %3501 = vmatpush1.bf16.msra.mxu0 0
        %3502 = vmatprep.subr.bf16.mxu0 0
        %3503 = vmatpush1.bf16.msra.mxu0 0
        %3504 = vmatprep.subr.bf16.mxu0 0
        %3505 = vmatpush1.bf16.msra.mxu0 0
        %3506 = vmatprep.subr.bf16.mxu0 0
        %3507 = vmatpush1.bf16.msra.mxu0 0
        %3508 = vmatprep.subr.bf16.mxu0 0
        %3509 = vmatpush1.bf16.msra.mxu0 0
        %3510 = vmatprep.subr.bf16.mxu0 0
        %3511 = vmatpush1.bf16.msra.mxu0 0
        %3512 = vmatprep.subr.bf16.mxu0 0
        %3513 = vmatpush1.bf16.msra.mxu0 0
        %3514 = vmatprep.mubr.bf16.mxu0 0
        %3515 = vmatmul.mubr.bf16.gmra.mrb[0].mxu0 %v3480
        %v3516 = vpop.f32.mrb[0].mxu0
        %v3517 = vadd.f32 %v3452, %v3516
        %v3518 = vpop.f32.mrb[0].mxu0
        %v3519 = vadd.f32 %v3456, %v3518
        %v3520 = vpop.f32.mrb[0].mxu0
        %v3521 = vpop.f32.mrb[0].mxu0
        %3522 = vdwg.mxu0
        %v3523 = vmax.f32 %v3517, 0.0
        %v3524 = vmax.f32 %v3519, 0.0
        %v3525 = vpack.c.bf16 %v3523, %v3523
        %v3526 = vpack.c.bf16 %v3524, %v3524
        %v3527 = vld [vmem:[%s22] sm:$0xf]
        %v3528 = vld [vmem:[%s22 + $0x4] sm:$0xf]
        %v3529 = vld [vmem:[%s22 + $0x8] sm:$0xf]
        %v3530 = vld [vmem:[%s22 + $0xc] sm:$0xf]
        %v3531 = vld [vmem:[%s22 + $0x10] sm:$0xf]
        %v3532 = vld [vmem:[%s22 + $0x14] sm:$0xf]
        %v3533 = vld [vmem:[%s22 + $0x18] sm:$0xf]
        %v3534 = vld [vmem:[%s22 + $0x1c] sm:$0xf]
        %v3535 = vld [vmem:[%s22 + $0x20] sm:$0xf]
        %v3536 = vld [vmem:[%s22 + $0x24] sm:$0xf]
        %v3537 = vld [vmem:[%s22 + $0x28] sm:$0xf]
        %v3538 = vld [vmem:[%s22 + $0x2c] sm:$0xf]
        %v3539 = vld [vmem:[%s22 + $0x30] sm:$0xf]
        %v3540 = vld [vmem:[%s22 + $0x34] sm:$0xf]
        %v3541 = vld [vmem:[%s22 + $0x38] sm:$0xf]
        %v3542 = vld [vmem:[%s22 + $0x3c] sm:$0xf]
        %v3543 = vld [vmem:[%s22 + $0x40] sm:$0xf]
        %v3544 = vld [vmem:[%s22 + $0x44] sm:$0xf]
        %v3545 = vld [vmem:[%s22 + $0x48] sm:$0xf]
        %v3546 = vld [vmem:[%s22 + $0x4c] sm:$0xf]
        %v3547 = vld [vmem:[%s22 + $0x50] sm:$0xf]
        %v3548 = vld [vmem:[%s22 + $0x54] sm:$0xf]
        %v3549 = vld [vmem:[%s22 + $0x58] sm:$0xf]
        %v3550 = vld [vmem:[%s22 + $0x5c] sm:$0xf]
        %v3551 = vld [vmem:[%s22 + $0x60] sm:$0xf]
        %v3552 = vld [vmem:[%s22 + $0x64] sm:$0xf]
        %v3553 = vld [vmem:[%s22 + $0x68] sm:$0xf]
        %v3554 = vld [vmem:[%s22 + $0x6c] sm:$0xf]
        %v3555 = vld [vmem:[%s22 + $0x70] sm:$0xf]
        %v3556 = vld [vmem:[%s22 + $0x74] sm:$0xf]
        %v3557 = vld [vmem:[%s22 + $0x78] sm:$0xf]
        %v3558 = vld [vmem:[%s22 + $0x7c] sm:$0xf]
        %v3559 = vld [vmem:[%s23] sm:$0x1]
        %v3561 = vlaneseq
        %v3562 = vshrl.u32 %v3561, 7
        %v3563 = vsub.s32 0, %v3562
        %v3564 = vrot.slane %v3559, %v3563
        %v3598 = vunpack.c.l.b16 %v3527
        %v3599 = vunpack.c.l.b16 %v3528
        %v3600 = vunpack.c.l.b16 %v3529
        %v3601 = vunpack.c.l.b16 %v3530
        %v3602 = vunpack.c.l.b16 %v3531
        %v3603 = vunpack.c.l.b16 %v3532
        %v3604 = vunpack.c.l.b16 %v3533
        %v3605 = vunpack.c.l.b16 %v3534
        %v3606 = vunpack.c.l.b16 %v3535
        %v3607 = vunpack.c.l.b16 %v3536
        %v3608 = vunpack.c.l.b16 %v3537
        %v3609 = vunpack.c.l.b16 %v3538
        %v3610 = vunpack.c.l.b16 %v3539
        %v3611 = vunpack.c.l.b16 %v3540
        %v3612 = vunpack.c.l.b16 %v3541
        %v3613 = vunpack.c.l.b16 %v3542
        %v3614 = vunpack.c.l.b16 %v3543
        %v3615 = vunpack.c.l.b16 %v3544
        %v3616 = vunpack.c.l.b16 %v3545
        %v3617 = vunpack.c.l.b16 %v3546
        %v3618 = vunpack.c.l.b16 %v3547
        %v3619 = vunpack.c.l.b16 %v3548
        %v3620 = vunpack.c.l.b16 %v3549
        %v3621 = vunpack.c.l.b16 %v3550
        %v3622 = vunpack.c.l.b16 %v3551
        %v3623 = vunpack.c.l.b16 %v3552
        %v3624 = vunpack.c.l.b16 %v3553
        %v3625 = vunpack.c.l.b16 %v3554
        %v3626 = vunpack.c.l.b16 %v3555
        %v3627 = vunpack.c.l.b16 %v3556
        %v3628 = vunpack.c.l.b16 %v3557
        %v3629 = vunpack.c.l.b16 %v3558
        %v3630 = vpack.c.b16 %v3599, %v3598
        %v3631 = vpack.c.b16 %v3601, %v3600
        %v3632 = vpack.c.b16 %v3603, %v3602
        %v3633 = vpack.c.b16 %v3605, %v3604
        %v3634 = vpack.c.b16 %v3607, %v3606
        %v3635 = vpack.c.b16 %v3609, %v3608
        %v3636 = vpack.c.b16 %v3611, %v3610
        %v3637 = vpack.c.b16 %v3613, %v3612
        %v3638 = vpack.c.b16 %v3615, %v3614
        %v3639 = vpack.c.b16 %v3617, %v3616
        %v3640 = vpack.c.b16 %v3619, %v3618
        %v3641 = vpack.c.b16 %v3621, %v3620
        %v3642 = vpack.c.b16 %v3623, %v3622
        %v3643 = vpack.c.b16 %v3625, %v3624
        %v3644 = vpack.c.b16 %v3627, %v3626
        %v3645 = vpack.c.b16 %v3629, %v3628
        %3662 = vmatprep.subr.bf16.mxu0 0
        %3663 = vmatpush1.bf16.msra.mxu0 %v3630
        %3664 = vmatprep.subr.bf16.mxu0 0
        %3665 = vmatpush1.bf16.msra.mxu0 %v3631
        %3666 = vmatprep.subr.bf16.mxu0 0
        %3667 = vmatpush1.bf16.msra.mxu0 %v3632
        %3668 = vmatprep.subr.bf16.mxu0 0
        %3669 = vmatpush1.bf16.msra.mxu0 %v3633
        %3670 = vmatprep.subr.bf16.mxu0 0
        %3671 = vmatpush1.bf16.msra.mxu0 %v3634
        %3672 = vmatprep.subr.bf16.mxu0 0
        %3673 = vmatpush1.bf16.msra.mxu0 %v3635
        %3674 = vmatprep.subr.bf16.mxu0 0
        %3675 = vmatpush1.bf16.msra.mxu0 %v3636
        %3676 = vmatprep.subr.bf16.mxu0 0
        %3677 = vmatpush1.bf16.msra.mxu0 %v3637
        %3678 = vmatprep.subr.bf16.mxu0 0
        %3679 = vmatpush1.bf16.msra.mxu0 %v3638
        %3680 = vmatprep.subr.bf16.mxu0 0
        %3681 = vmatpush1.bf16.msra.mxu0 %v3639
        %3682 = vmatprep.subr.bf16.mxu0 0
        %3683 = vmatpush1.bf16.msra.mxu0 %v3640
        %3684 = vmatprep.subr.bf16.mxu0 0
        %3685 = vmatpush1.bf16.msra.mxu0 %v3641
        %3686 = vmatprep.subr.bf16.mxu0 0
        %3687 = vmatpush1.bf16.msra.mxu0 %v3642
        %3688 = vmatprep.subr.bf16.mxu0 0
        %3689 = vmatpush1.bf16.msra.mxu0 %v3643
        %3690 = vmatprep.subr.bf16.mxu0 0
        %3691 = vmatpush1.bf16.msra.mxu0 %v3644
        %3692 = vmatprep.subr.bf16.mxu0 0
        %3693 = vmatpush1.bf16.msra.mxu0 %v3645
        %3694 = vmatprep.mubr.bf16.mxu0 %v3526
        %3695 = vmatmul.mubr.bf16.gmra.mrb[0].mxu0 %v3525
        %v3696 = vpop.f32.mrb[0].mxu0
        %v3697 = vadd.f32 %v3564, %v3696
        %v3698 = vpop.f32.mrb[0].mxu0
        %v3699 = vpop.f32.mrb[0].mxu0
        %v3700 = vpop.f32.mrb[0].mxu0
        %3701 = vdwg.mxu0
        %vm3702 = vcmask 25600
        %3703 = vst.msk [vmem:[%s730] sm:$0x3] %vm3702, %v3697
        %s3704 = sand.u32 %s555, 1
        %s3705 = scalar_lea.sflag [#allocation3], %s3704
        %s3706 = sand.u32 %s555, 1
        %s3707 = smul.addr %s3706, 2
        %s3708 = scalar_lea.vmem [#allocation2], %s3707
        // Predicated region
        $region117: #{vit_mushroom_forward.1} parent=115 // pred_check
          %p3709 = pneg %p565
        $region118: #{vit_mushroom_forward.1} parent=115 // pred_check_branch
          %3711 = sbr.rel (%p3709) target = $region120
        $region119: #{vit_mushroom_forward.1} parent=115 // pred_region
          %s3713 = ssub.s32 32, 32
          %3714 = vsyncadd %s3705, %s3713
          %s3715 = smul.addr %s38, 32
          %s3716 = scalar_lea.hbm %s24, %s3715
          %s3718 = sshll.u32 %s3708, 4
          %s3719 = int_to_ptr.vmem [resolvable:$true] %s3718
          %3721 = dma.vmem_to_hbm [thread:$0]  %s3719, 32, %s3716, %s3705
        $region120: #{vit_mushroom_forward.1} parent=115 // pred_fallthru
          _
      $region116: #{vit_mushroom_forward.1} parent=5 // pred_fallthru
        _
      %p3722 = scmp.le.s32.totalorder 2, %s33
      // Predicated region
      $region121: #{vit_mushroom_forward.1} parent=5 // pred_check
        %p3723 = pneg %p3722
      $region122: #{vit_mushroom_forward.1} parent=5 // pred_check_branch
        %3725 = sbr.rel (%p3723) target = $region124
      $region123: #{vit_mushroom_forward.1} parent=5 // pred_region
        %s3726 = ssub.s32 %s33, 2
        // Predicated region
        $region125: #{vit_mushroom_forward.1} parent=123 // pred_check
          %p3727 = pneg %p571
        $region126: #{vit_mushroom_forward.1} parent=123 // pred_check_branch
          %3729 = sbr.rel (%p3727) target = $region128
        $region127: #{vit_mushroom_forward.1} parent=123 // pred_region
          %s3730 = sand.u32 %s556, 1
          %s3731 = scalar_lea.sflag [#allocation3], %s3730
          %s3732 = sand.u32 %s556, 1
          %s3733 = smul.addr %s3732, 2
          %s3734 = scalar_lea.vmem [#allocation2], %s3733
          %3735 = dma.done %s3731, 32
        $region128: #{vit_mushroom_forward.1} parent=123 // pred_fallthru
          _
      $region124: #{vit_mushroom_forward.1} parent=5 // pred_fallthru
        _
    $region6: #{vit_mushroom_forward.1} parent=1 // loop_footer
      %s37 = sadd.s32 1, %s33
    $region7: #{vit_mushroom_forward.1} parent=1 // loop_footer_branch
      %32 = sbr.rel target = $region3
    $region8: #{vit_mushroom_forward.1} parent=1 // loop_exit
      _
    %3736 = vsyncpa [#allocation3], 1
    %s3737 = scalar_lea.sflag [#allocation3], 1
    %3738 = vsyncpa %s3737, 1

</llo_original>
